<compile_context>
chip_gen: v7x
topology: tpu7x:2x2x1
jax: 0.10.0
libtpu: 0.0.40
codegen_flags: <defaults>
</compile_context>

<pallas_src>
import functools
import numpy as np
import jax
import jax.numpy as jnp
from jax.experimental import pallas as pl
from jax.experimental.pallas import tpu as pltpu


def _round_up(x, m):
    return (x + m - 1) // m * m


def _conv_out(size, stride, k=3, pad=1):
    return (size + 2 * pad - k) // stride + 1


# ----------------------------- Pallas kernel ------------------------------- #

def _conv3x3_relu_kernel(ph_ref, w_ref, b_ref, o_ref, *, stride, Ho, Wo):
    """Fused 3x3 conv (padding=1, given stride) + bias + ReLU for one image.

    ph_ref: (1, s*s, Hps, Wps, Cin) bf16 stride-phase view of the padded
            input: ph[0, py*s+px, i, j, c] == x_padded[s*i+py, s*j+px, c].
    w_ref : (9, Cin, Cout_pad) bf16, tap-major (t = dy*3 + dx).
    b_ref : (1, Cout_pad) f32 bias (zero in the padded channels).
    o_ref : (1, Ho*Wo, Cout_pad) bf16 (lane-dense 128-wide stores).

    Every 3x3 tap (dy, dx) is a contiguous (Ho, Wo, Cin) window of one phase,
    so the patch gather is 9 static VMEM slices + 9 accumulating MXU matmuls
    with f32 accumulation; no im2col tensor ever touches HBM.
    """
    s = stride
    cin = ph_ref.shape[-1]
    cout_p = o_ref.shape[-1]
    acc = jnp.zeros((Ho * Wo, cout_p), jnp.float32)
    for dy in range(3):
        for dx in range(3):
            t = dy * 3 + dx
            phase = (dy % s) * s + (dx % s)
            oy, ox = dy // s, dx // s
            tap = ph_ref[0, phase, oy:oy + Ho, ox:ox + Wo, :]   # (Ho, Wo, Cin)
            acc = acc + jnp.dot(tap.reshape(Ho * Wo, cin), w_ref[t],
                                preferred_element_type=jnp.float32)
    acc = acc + b_ref[...]                                      # VPU add, hidden under MXU
    o_ref[0] = jnp.maximum(acc, 0.0).astype(o_ref.dtype)


# ------------------------------ JAX wrappers ------------------------------- #

def _phases_from_nchw(x_nchw, stride):
    """Padded NCHW input -> bf16 stride-phase tensor (N, s*s, Hps, Wps, C).

    Single fused XLA pad+transpose pass (byte-neutral); avoids materializing a
    channels-last intermediate whose last dim is only C=3."""
    N, C, H, W = x_nchw.shape
    s = stride
    Hp = _round_up(H + 2, s)
    Wp = _round_up(W + 2, s)
    xp = jnp.pad(x_nchw, ((0, 0), (0, 0), (1, Hp - H - 1), (1, Wp - W - 1)))
    ph = xp.reshape(N, C, Hp // s, s, Wp // s, s)
    ph = jnp.transpose(ph, (0, 3, 5, 2, 4, 1))          # (N, s, s, Hps, Wps, C)
    return ph.reshape(N, s * s, Hp // s, Wp // s, C).astype(jnp.bfloat16)


def _phases_from_nhwc(x_nhwc, stride):
    """Padded NHWC activation -> stride-phase tensor (N, s*s, Hps, Wps, C)."""
    N, H, W, C = x_nhwc.shape
    s = stride
    Hp = _round_up(H + 2, s)
    Wp = _round_up(W + 2, s)
    xp = jnp.pad(x_nhwc, ((0, 0), (1, Hp - H - 1), (1, Wp - W - 1), (0, 0)))
    ph = xp.reshape(N, Hp // s, s, Wp // s, s, C)
    ph = jnp.transpose(ph, (0, 2, 4, 1, 3, 5))
    return ph.reshape(N, s * s, Hp // s, Wp // s, C)


def conv3x3_relu_pallas(phases, w, b, Ho, Wo, stride):
    """Run the fused conv kernel; returns (N, Ho*Wo, Cout_pad) bf16 rows."""
    N, s2, Hps, Wps, cin = phases.shape
    n_tap, cin_w, cout_p = w.shape
    assert n_tap == 9 and cin_w == cin and cout_p % 128 == 0
    assert s2 == stride * stride

    kernel = functools.partial(_conv3x3_relu_kernel,
                               stride=stride, Ho=Ho, Wo=Wo)
    out = pl.pallas_call(
        kernel,
        out_shape=jax.ShapeDtypeStruct((N, Ho * Wo, cout_p), jnp.bfloat16),
        grid_spec=pltpu.PrefetchScalarGridSpec(
            num_scalar_prefetch=0,
            grid=(N,),                       # >=2 parallel steps feeds both v7x TCs
            in_specs=[
                pl.BlockSpec((1, s2, Hps, Wps, cin),
                             lambda n: (n, 0, 0, 0, 0)),
                pl.BlockSpec((9, cin, cout_p), lambda n: (0, 0, 0)),
                pl.BlockSpec((1, cout_p), lambda n: (0, 0)),
            ],
            out_specs=pl.BlockSpec((1, Ho * Wo, cout_p), lambda n: (n, 0, 0)),
        ),
        compiler_params=pltpu.CompilerParams(
            dimension_semantics=("parallel",),
        ),
        cost_estimate=pl.CostEstimate(
            flops=2 * N * Ho * Wo * 9 * cin * cout_p,
            transcendentals=0,
            bytes_accessed=(phases.size * 2 + w.size * 2 + b.size * 4
                            + N * Ho * Wo * cout_p * 2),
        ),
    )(phases, w, b)
    return out


def mask_out_padding(N, H, W, limits):
    """MaskedBackbone.mask_out_padding for one level as fused XLA compares.

    limits: (N, 2) int32 of (ceil(h/stride), ceil(w/stride)); True = padded."""
    rows = jax.lax.broadcasted_iota(jnp.int32, (N, H, W), 1)
    cols = jax.lax.broadcasted_iota(jnp.int32, (N, H, W), 2)
    return (rows >= limits[:, 0, None, None]) | (cols >= limits[:, 1, None, None])


def _forward_impl(level_channels, params, images_nchw, limits1, limits2):
    c1, c2 = level_channels
    N, _, H, W = images_nchw.shape
    Ho1, Wo1 = _conv_out(H, 2), _conv_out(W, 2)
    Ho2, Wo2 = _conv_out(Ho1, 2), _conv_out(Wo1, 2)

    # Level 1: stride-2 conv straight off the padded NCHW input.
    ph1 = _phases_from_nchw(images_nchw, stride=2)
    f1 = conv3x3_relu_pallas(ph1, params["w1"], params["b1"], Ho1, Wo1, 2)
    f1 = f1.reshape(N, Ho1, Wo1, -1)          # contiguous -> free reshape

    # Level 2 consumes the 128-channel padded f1 directly (w2's extra input
    # rows are zero), so no channel-slice copy is materialized between levels.
    ph2 = _phases_from_nhwc(f1, stride=2)
    f2 = conv3x3_relu_pallas(ph2, params["w2"], params["b2"], Ho2, Wo2, 2)
    f2 = f2.reshape(N, Ho2, Wo2, -1)

    m1 = mask_out_padding(N, Ho1, Wo1, limits1)
    m2 = mask_out_padding(N, Ho2, Wo2, limits2)

    # NestedTensor(features[k], masks[i]) -> (NCHW f32 tensor, bool mask); the
    # slice + transpose + f32 cast fuse into a single XLA pass per level.
    # TODO(synk): return bf16 NHWC features directly if downstream tolerates it.
    p1 = jnp.transpose(f1[..., :c1], (0, 3, 1, 2)).astype(jnp.float32)
    p2 = jnp.transpose(f2[..., :c2], (0, 3, 1, 2)).astype(jnp.float32)
    return {"p1": (p1, m1), "p2": (p2, m2)}


class MaskedBackbonePallas:
    """Synthetic 2-level conv backbone + per-level padding masks
    (mirrors MaskedBackbone.forward / mask_out_padding)."""

    def __init__(self, key, in_channels=3, level_channels=(32, 64)):
        c1, c2 = level_channels
        k1, k2, k3, k4 = jax.random.split(key, 4)

        def make_wb(kw, kb, cin, cin_pad, cout, cout_pad):
            # Layout (tap, cin, cout) with tap = dy*3 + dx.  Zero-padded on the
            # input-channel axis (so level 2 can consume level 1's padded
            # 128-channel output with no slice) and on the output-channel axis
            # (lane-dense 128-wide MXU stores).
            # NOTE: real torch weights (Cout, Cin, kh, kw) would be transposed
            # to (kh*kw, Cin, Cout) before padding to this layout.
            w = jax.random.normal(kw, (9, cin, cout), jnp.float32) * 0.1
            b = jax.random.normal(kb, (cout,), jnp.float32) * 0.1
            w = jnp.pad(w, ((0, 0), (0, cin_pad - cin), (0, cout_pad - cout)))
            b = jnp.pad(b, (0, cout_pad - cout))
            return (w.astype(jnp.bfloat16),
                    b.reshape(1, cout_pad).astype(jnp.float32))

        w1, b1 = make_wb(k1, k2, in_channels, in_channels, c1, 128)
        w2, b2 = make_wb(k3, k4, c1, 128, c2, 128)
        self.params = {"w1": w1, "b1": b1, "w2": w2, "b2": b2}
        self.level_channels = tuple(level_channels)
        self.feature_strides = [2, 4]
        self.num_channels = c2
        self._forward = jax.jit(
            functools.partial(_forward_impl, self.level_channels))

    def __call__(self, images_tensor, image_sizes):
        limits = []
        for stride in self.feature_strides:
            lim = np.array(
                [[int(np.ceil(float(h) / stride)),
                  int(np.ceil(float(w) / stride))] for (h, w) in image_sizes],
                dtype=np.int32)
            limits.append(jnp.asarray(lim))
        return self._forward(self.params, images_tensor, limits[0], limits[1])


# --------------------------------- driver ---------------------------------- #

if __name__ == "__main__":
    key = jax.random.PRNGKey(0)
    kx, kp = jax.random.split(key)

    N, C, H, W = 2, 3, 16, 16
    images_tensor = jax.random.normal(kx, (N, C, H, W), jnp.float32)
    # per-image (h, w) actual sizes before padding to (16, 16)
    image_sizes = [(13, 10), (16, 16)]

    model = MaskedBackbonePallas(kp, in_channels=C, level_channels=(32, 64))
    out = model(images_tensor, image_sizes)
    for feat, mask in out.values():
        jax.block_until_ready(feat)
        jax.block_until_ready(mask)

    # shapes / dtypes
    assert out["p1"][0].shape == (N, 32, 8, 8) and out["p1"][0].dtype == jnp.float32
    assert out["p2"][0].shape == (N, 64, 4, 4) and out["p2"][0].dtype == jnp.float32
    assert out["p1"][1].shape == (N, 8, 8) and out["p1"][1].dtype == jnp.bool_
    assert out["p2"][1].shape == (N, 4, 4) and out["p2"][1].dtype == jnp.bool_

    # mask semantics (True = padded) == MaskedBackbone.mask_out_padding
    m1 = np.asarray(out["p1"][1])
    assert not m1[0, :7, :5].any() and m1[0, 7, :].all() and m1[0, :, 5:].all()
    assert not m1[1].any()
    m2 = np.asarray(out["p2"][1])
    assert not m2[0, :4, :3].any() and m2[0, :, 3:].all()
    assert not m2[1].any()

    # numerics vs an XLA conv reference (bf16 inputs, f32 accumulation; loose
    # tolerance covers bf16 rounding of the stored activations)
    def ref_conv(x_nhwc_f32, w, b, cout):
        cin = x_nhwc_f32.shape[-1]
        w_hwio = w.astype(jnp.float32)[:, :cin, :cout].reshape(3, 3, cin, cout)
        y = jax.lax.conv_general_dilated(
            x_nhwc_f32, w_hwio, window_strides=(2, 2),
            padding=((1, 1), (1, 1)),
            dimension_numbers=("NHWC", "HWIO", "NHWC"))
        return jnp.maximum(y + b[0, :cout].astype(jnp.float32), 0.0)

    x0 = jnp.transpose(images_tensor, (0, 2, 3, 1)).astype(jnp.bfloat16)
    x0 = x0.astype(jnp.float32)
    r1 = ref_conv(x0, model.params["w1"], model.params["b1"], 32)
    r2 = ref_conv(r1.astype(jnp.bfloat16).astype(jnp.float32),
                  model.params["w2"], model.params["b2"], 64)
    np.testing.assert_allclose(np.asarray(out["p1"][0]),
                               np.asarray(jnp.transpose(r1, (0, 3, 1, 2))),
                               rtol=0.1, atol=0.1)
    np.testing.assert_allclose(np.asarray(out["p2"][0]),
                               np.asarray(jnp.transpose(r2, (0, 3, 1, 2))),
                               rtol=0.1, atol=0.1)

    print("KERNEL_OK")
</pallas_src>

<mosaic_0001>
module attributes {stable_mosaic.version = 11 : i64} {
  func.func @_conv3x3_relu_kernel(%arg0: i32, %arg1: memref<1x4x9x9x3xbf16, #tpu.memory_space<vmem>>, %arg2: memref<9x3x128xbf16, #tpu.memory_space<vmem>>, %arg3: memref<1x128xf32, #tpu.memory_space<vmem>>, %arg4: memref<1x64x128xbf16, #tpu.memory_space<vmem>>) attributes {dimension_semantics = [#tpu.dimension_semantics<parallel>], iteration_bounds = array<i64: 2>, scalar_prefetch = 0 : i64, scratch_operands = 0 : i64, tpu.core_type = #tpu.core_type<tc>, window_params = [{transform_indices = @transform_0, window_bounds = array<i64: 1, 4, 9, 9, 3>}, {pipeline_mode = #tpu.pipeline_mode<synchronous>, transform_indices = @transform_1, window_bounds = array<i64: 9, 3, 128>}, {pipeline_mode = #tpu.pipeline_mode<synchronous>, transform_indices = @transform_2, window_bounds = array<i64: 1, 128>}, {transform_indices = @transform_3, window_bounds = array<i64: 1, 64, 128>}]} {
    %cst = arith.constant 0.000000e+00 : f32
    %0 = vector.broadcast %cst : f32 to vector<64x128xf32>
    %c0 = arith.constant 0 : index
    %c0_0 = arith.constant 0 : index
    %c0_1 = arith.constant 0 : index
    %c0_2 = arith.constant 0 : index
    %c0_3 = arith.constant 0 : index
    %1 = vector.load %arg1[%c0, %c0_0, %c0_1, %c0_2, %c0_3] : memref<1x4x9x9x3xbf16, #tpu.memory_space<vmem>>, vector<1x1x8x8x3xbf16>
    %2 = vector.shape_cast %1 : vector<1x1x8x8x3xbf16> to vector<8x8x3xbf16>
    %3 = vector.shape_cast %2 : vector<8x8x3xbf16> to vector<64x3xbf16>
    %c0_4 = arith.constant 0 : index
    %c0_5 = arith.constant 0 : index
    %c0_6 = arith.constant 0 : index
    %4 = vector.load %arg2[%c0_4, %c0_5, %c0_6] : memref<9x3x128xbf16, #tpu.memory_space<vmem>>, vector<1x3x128xbf16>
    %5 = vector.shape_cast %4 : vector<1x3x128xbf16> to vector<3x128xbf16>
    %cst_7 = arith.constant dense<0.000000e+00> : vector<64x128xf32>
    %6 = tpu.matmul %3, %5, %cst_7 {dimension_numbers = #tpu.dot_dimension_numbers<[1], [0], [0], [1], [0, 0, 1, 1], [], []>} : vector<64x3xbf16>, vector<3x128xbf16>, vector<64x128xf32> -> vector<64x128xf32>
    %7 = arith.addf %0, %6 : vector<64x128xf32>
    %c0_8 = arith.constant 0 : index
    %c1 = arith.constant 1 : index
    %c0_9 = arith.constant 0 : index
    %c0_10 = arith.constant 0 : index
    %c0_11 = arith.constant 0 : index
    %8 = vector.load %arg1[%c0_8, %c1, %c0_9, %c0_10, %c0_11] : memref<1x4x9x9x3xbf16, #tpu.memory_space<vmem>>, vector<1x1x8x8x3xbf16>
    %9 = vector.shape_cast %8 : vector<1x1x8x8x3xbf16> to vector<8x8x3xbf16>
    %10 = vector.shape_cast %9 : vector<8x8x3xbf16> to vector<64x3xbf16>
    %c1_12 = arith.constant 1 : index
    %c0_13 = arith.constant 0 : index
    %c0_14 = arith.constant 0 : index
    %11 = vector.load %arg2[%c1_12, %c0_13, %c0_14] : memref<9x3x128xbf16, #tpu.memory_space<vmem>>, vector<1x3x128xbf16>
    %12 = vector.shape_cast %11 : vector<1x3x128xbf16> to vector<3x128xbf16>
    %cst_15 = arith.constant dense<0.000000e+00> : vector<64x128xf32>
    %13 = tpu.matmul %10, %12, %cst_15 {dimension_numbers = #tpu.dot_dimension_numbers<[1], [0], [0], [1], [0, 0, 1, 1], [], []>} : vector<64x3xbf16>, vector<3x128xbf16>, vector<64x128xf32> -> vector<64x128xf32>
    %14 = arith.addf %7, %13 : vector<64x128xf32>
    %c0_16 = arith.constant 0 : index
    %c0_17 = arith.constant 0 : index
    %c0_18 = arith.constant 0 : index
    %c1_19 = arith.constant 1 : index
    %c0_20 = arith.constant 0 : index
    %15 = vector.load %arg1[%c0_16, %c0_17, %c0_18, %c1_19, %c0_20] : memref<1x4x9x9x3xbf16, #tpu.memory_space<vmem>>, vector<1x1x8x8x3xbf16>
    %16 = vector.shape_cast %15 : vector<1x1x8x8x3xbf16> to vector<8x8x3xbf16>
    %17 = vector.shape_cast %16 : vector<8x8x3xbf16> to vector<64x3xbf16>
    %c2 = arith.constant 2 : index
    %c0_21 = arith.constant 0 : index
    %c0_22 = arith.constant 0 : index
    %18 = vector.load %arg2[%c2, %c0_21, %c0_22] : memref<9x3x128xbf16, #tpu.memory_space<vmem>>, vector<1x3x128xbf16>
    %19 = vector.shape_cast %18 : vector<1x3x128xbf16> to vector<3x128xbf16>
    %cst_23 = arith.constant dense<0.000000e+00> : vector<64x128xf32>
    %20 = tpu.matmul %17, %19, %cst_23 {dimension_numbers = #tpu.dot_dimension_numbers<[1], [0], [0], [1], [0, 0, 1, 1], [], []>} : vector<64x3xbf16>, vector<3x128xbf16>, vector<64x128xf32> -> vector<64x128xf32>
    %21 = arith.addf %14, %20 : vector<64x128xf32>
    %c0_24 = arith.constant 0 : index
    %c2_25 = arith.constant 2 : index
    %c0_26 = arith.constant 0 : index
    %c0_27 = arith.constant 0 : index
    %c0_28 = arith.constant 0 : index
    %22 = vector.load %arg1[%c0_24, %c2_25, %c0_26, %c0_27, %c0_28] : memref<1x4x9x9x3xbf16, #tpu.memory_space<vmem>>, vector<1x1x8x8x3xbf16>
    %23 = vector.shape_cast %22 : vector<1x1x8x8x3xbf16> to vector<8x8x3xbf16>
    %24 = vector.shape_cast %23 : vector<8x8x3xbf16> to vector<64x3xbf16>
    %c3 = arith.constant 3 : index
    %c0_29 = arith.constant 0 : index
    %c0_30 = arith.constant 0 : index
    %25 = vector.load %arg2[%c3, %c0_29, %c0_30] : memref<9x3x128xbf16, #tpu.memory_space<vmem>>, vector<1x3x128xbf16>
    %26 = vector.shape_cast %25 : vector<1x3x128xbf16> to vector<3x128xbf16>
    %cst_31 = arith.constant dense<0.000000e+00> : vector<64x128xf32>
    %27 = tpu.matmul %24, %26, %cst_31 {dimension_numbers = #tpu.dot_dimension_numbers<[1], [0], [0], [1], [0, 0, 1, 1], [], []>} : vector<64x3xbf16>, vector<3x128xbf16>, vector<64x128xf32> -> vector<64x128xf32>
    %28 = arith.addf %21, %27 : vector<64x128xf32>
    %c0_32 = arith.constant 0 : index
    %c3_33 = arith.constant 3 : index
    %c0_34 = arith.constant 0 : index
    %c0_35 = arith.constant 0 : index
    %c0_36 = arith.constant 0 : index
    %29 = vector.load %arg1[%c0_32, %c3_33, %c0_34, %c0_35, %c0_36] : memref<1x4x9x9x3xbf16, #tpu.memory_space<vmem>>, vector<1x1x8x8x3xbf16>
    %30 = vector.shape_cast %29 : vector<1x1x8x8x3xbf16> to vector<8x8x3xbf16>
    %31 = vector.shape_cast %30 : vector<8x8x3xbf16> to vector<64x3xbf16>
    %c4 = arith.constant 4 : index
    %c0_37 = arith.constant 0 : index
    %c0_38 = arith.constant 0 : index
    %32 = vector.load %arg2[%c4, %c0_37, %c0_38] : memref<9x3x128xbf16, #tpu.memory_space<vmem>>, vector<1x3x128xbf16>
    %33 = vector.shape_cast %32 : vector<1x3x128xbf16> to vector<3x128xbf16>
    %cst_39 = arith.constant dense<0.000000e+00> : vector<64x128xf32>
    %34 = tpu.matmul %31, %33, %cst_39 {dimension_numbers = #tpu.dot_dimension_numbers<[1], [0], [0], [1], [0, 0, 1, 1], [], []>} : vector<64x3xbf16>, vector<3x128xbf16>, vector<64x128xf32> -> vector<64x128xf32>
    %35 = arith.addf %28, %34 : vector<64x128xf32>
    %c0_40 = arith.constant 0 : index
    %c2_41 = arith.constant 2 : index
    %c0_42 = arith.constant 0 : index
    %c1_43 = arith.constant 1 : index
    %c0_44 = arith.constant 0 : index
    %36 = vector.load %arg1[%c0_40, %c2_41, %c0_42, %c1_43, %c0_44] : memref<1x4x9x9x3xbf16, #tpu.memory_space<vmem>>, vector<1x1x8x8x3xbf16>
    %37 = vector.shape_cast %36 : vector<1x1x8x8x3xbf16> to vector<8x8x3xbf16>
    %38 = vector.shape_cast %37 : vector<8x8x3xbf16> to vector<64x3xbf16>
    %c5 = arith.constant 5 : index
    %c0_45 = arith.constant 0 : index
    %c0_46 = arith.constant 0 : index
    %39 = vector.load %arg2[%c5, %c0_45, %c0_46] : memref<9x3x128xbf16, #tpu.memory_space<vmem>>, vector<1x3x128xbf16>
    %40 = vector.shape_cast %39 : vector<1x3x128xbf16> to vector<3x128xbf16>
    %cst_47 = arith.constant dense<0.000000e+00> : vector<64x128xf32>
    %41 = tpu.matmul %38, %40, %cst_47 {dimension_numbers = #tpu.dot_dimension_numbers<[1], [0], [0], [1], [0, 0, 1, 1], [], []>} : vector<64x3xbf16>, vector<3x128xbf16>, vector<64x128xf32> -> vector<64x128xf32>
    %42 = arith.addf %35, %41 : vector<64x128xf32>
    %c0_48 = arith.constant 0 : index
    %c0_49 = arith.constant 0 : index
    %c1_50 = arith.constant 1 : index
    %c0_51 = arith.constant 0 : index
    %c0_52 = arith.constant 0 : index
    %43 = vector.load %arg1[%c0_48, %c0_49, %c1_50, %c0_51, %c0_52] : memref<1x4x9x9x3xbf16, #tpu.memory_space<vmem>>, vector<1x1x8x8x3xbf16>
    %44 = vector.shape_cast %43 : vector<1x1x8x8x3xbf16> to vector<8x8x3xbf16>
    %45 = vector.shape_cast %44 : vector<8x8x3xbf16> to vector<64x3xbf16>
    %c6 = arith.constant 6 : index
    %c0_53 = arith.constant 0 : index
    %c0_54 = arith.constant 0 : index
    %46 = vector.load %arg2[%c6, %c0_53, %c0_54] : memref<9x3x128xbf16, #tpu.memory_space<vmem>>, vector<1x3x128xbf16>
    %47 = vector.shape_cast %46 : vector<1x3x128xbf16> to vector<3x128xbf16>
    %cst_55 = arith.constant dense<0.000000e+00> : vector<64x128xf32>
    %48 = tpu.matmul %45, %47, %cst_55 {dimension_numbers = #tpu.dot_dimension_numbers<[1], [0], [0], [1], [0, 0, 1, 1], [], []>} : vector<64x3xbf16>, vector<3x128xbf16>, vector<64x128xf32> -> vector<64x128xf32>
    %49 = arith.addf %42, %48 : vector<64x128xf32>
    %c0_56 = arith.constant 0 : index
    %c1_57 = arith.constant 1 : index
    %c1_58 = arith.constant 1 : index
    %c0_59 = arith.constant 0 : index
    %c0_60 = arith.constant 0 : index
    %50 = vector.load %arg1[%c0_56, %c1_57, %c1_58, %c0_59, %c0_60] : memref<1x4x9x9x3xbf16, #tpu.memory_space<vmem>>, vector<1x1x8x8x3xbf16>
    %51 = vector.shape_cast %50 : vector<1x1x8x8x3xbf16> to vector<8x8x3xbf16>
    %52 = vector.shape_cast %51 : vector<8x8x3xbf16> to vector<64x3xbf16>
    %c7 = arith.constant 7 : index
    %c0_61 = arith.constant 0 : index
    %c0_62 = arith.constant 0 : index
    %53 = vector.load %arg2[%c7, %c0_61, %c0_62] : memref<9x3x128xbf16, #tpu.memory_space<vmem>>, vector<1x3x128xbf16>
    %54 = vector.shape_cast %53 : vector<1x3x128xbf16> to vector<3x128xbf16>
    %cst_63 = arith.constant dense<0.000000e+00> : vector<64x128xf32>
    %55 = tpu.matmul %52, %54, %cst_63 {dimension_numbers = #tpu.dot_dimension_numbers<[1], [0], [0], [1], [0, 0, 1, 1], [], []>} : vector<64x3xbf16>, vector<3x128xbf16>, vector<64x128xf32> -> vector<64x128xf32>
    %56 = arith.addf %49, %55 : vector<64x128xf32>
    %c0_64 = arith.constant 0 : index
    %c0_65 = arith.constant 0 : index
    %c1_66 = arith.constant 1 : index
    %c1_67 = arith.constant 1 : index
    %c0_68 = arith.constant 0 : index
    %57 = vector.load %arg1[%c0_64, %c0_65, %c1_66, %c1_67, %c0_68] : memref<1x4x9x9x3xbf16, #tpu.memory_space<vmem>>, vector<1x1x8x8x3xbf16>
    %58 = vector.shape_cast %57 : vector<1x1x8x8x3xbf16> to vector<8x8x3xbf16>
    %59 = vector.shape_cast %58 : vector<8x8x3xbf16> to vector<64x3xbf16>
    %c8 = arith.constant 8 : index
    %c0_69 = arith.constant 0 : index
    %c0_70 = arith.constant 0 : index
    %60 = vector.load %arg2[%c8, %c0_69, %c0_70] : memref<9x3x128xbf16, #tpu.memory_space<vmem>>, vector<1x3x128xbf16>
    %61 = vector.shape_cast %60 : vector<1x3x128xbf16> to vector<3x128xbf16>
    %cst_71 = arith.constant dense<0.000000e+00> : vector<64x128xf32>
    %62 = tpu.matmul %59, %61, %cst_71 {dimension_numbers = #tpu.dot_dimension_numbers<[1], [0], [0], [1], [0, 0, 1, 1], [], []>} : vector<64x3xbf16>, vector<3x128xbf16>, vector<64x128xf32> -> vector<64x128xf32>
    %63 = arith.addf %56, %62 : vector<64x128xf32>
    %c0_72 = arith.constant 0 : index
    %c0_73 = arith.constant 0 : index
    %64 = vector.load %arg3[%c0_72, %c0_73] : memref<1x128xf32, #tpu.memory_space<vmem>>, vector<1x128xf32>
    %65 = vector.broadcast %64 : vector<1x128xf32> to vector<64x128xf32>
    %66 = arith.addf %63, %65 : vector<64x128xf32>
    %cst_74 = arith.constant 0.000000e+00 : f32
    %67 = vector.broadcast %cst_74 : f32 to vector<64x128xf32>
    %68 = arith.maximumf %66, %67 : vector<64x128xf32>
    %69 = arith.truncf %68 : vector<64x128xf32> to vector<64x128xbf16>
    %c0_75 = arith.constant 0 : index
    %c0_76 = arith.constant 0 : index
    %c0_77 = arith.constant 0 : index
    %70 = vector.load %arg4[%c0_75, %c0_76, %c0_77] : memref<1x64x128xbf16, #tpu.memory_space<vmem>>, vector<1x64x128xbf16>
    %71 = vector.shape_cast %70 : vector<1x64x128xbf16> to vector<64x128xbf16>
    %72 = vector.shape_cast %69 : vector<64x128xbf16> to vector<1x64x128xbf16>
    tpu.vector_store %arg4[%c0_75, %c0_76, %c0_77], %72 {strides = array<i32>} : memref<1x64x128xbf16, #tpu.memory_space<vmem>>, vector<1x64x128xbf16>,
    return
  }
  func.func @transform_0(%arg0: i32) -> (i32, i32, i32, i32, i32) {
    %c0_i32 = arith.constant 0 : i32
    %c0_i32_0 = arith.constant 0 : i32
    %c0_i32_1 = arith.constant 0 : i32
    %c0_i32_2 = arith.constant 0 : i32
    %c0_i32_3 = arith.constant 0 : i32
    return %arg0, %c0_i32, %c0_i32_0, %c0_i32_1, %c0_i32_2 : i32, i32, i32, i32, i32
  }
  func.func @transform_1(%arg0: i32) -> (i32, i32, i32) {
    %c0_i32 = arith.constant 0 : i32
    %c0_i32_0 = arith.constant 0 : i32
    %c0_i32_1 = arith.constant 0 : i32
    %c0_i32_2 = arith.constant 0 : i32
    return %c0_i32, %c0_i32_0, %c0_i32_1 : i32, i32, i32
  }
  func.func @transform_2(%arg0: i32) -> (i32, i32) {
    %c0_i32 = arith.constant 0 : i32
    %c0_i32_0 = arith.constant 0 : i32
    %c0_i32_1 = arith.constant 0 : i32
    return %c0_i32, %c0_i32_0 : i32, i32
  }
  func.func @transform_3(%arg0: i32) -> (i32, i32, i32) {
    %c0_i32 = arith.constant 0 : i32
    %c0_i32_0 = arith.constant 0 : i32
    %c0_i32_1 = arith.constant 0 : i32
    return %arg0, %c0_i32, %c0_i32_0 : i32, i32, i32
  }
}

module attributes {stable_mosaic.version = 11 : i64} {
  func.func @_conv3x3_relu_kernel(%arg0: i32, %arg1: memref<1x4x5x5x128xbf16, #tpu.memory_space<vmem>>, %arg2: memref<9x128x128xbf16, #tpu.memory_space<vmem>>, %arg3: memref<1x128xf32, #tpu.memory_space<vmem>>, %arg4: memref<1x16x128xbf16, #tpu.memory_space<vmem>>) attributes {dimension_semantics = [#tpu.dimension_semantics<parallel>], iteration_bounds = array<i64: 2>, scalar_prefetch = 0 : i64, scratch_operands = 0 : i64, tpu.core_type = #tpu.core_type<tc>, window_params = [{transform_indices = @transform_0, window_bounds = array<i64: 1, 4, 5, 5, 128>}, {pipeline_mode = #tpu.pipeline_mode<synchronous>, transform_indices = @transform_1, window_bounds = array<i64: 9, 128, 128>}, {pipeline_mode = #tpu.pipeline_mode<synchronous>, transform_indices = @transform_2, window_bounds = array<i64: 1, 128>}, {transform_indices = @transform_3, window_bounds = array<i64: 1, 16, 128>}]} {
    %cst = arith.constant 0.000000e+00 : f32
    %0 = vector.broadcast %cst : f32 to vector<16x128xf32>
    %c0 = arith.constant 0 : index
    %c0_0 = arith.constant 0 : index
    %c0_1 = arith.constant 0 : index
    %c0_2 = arith.constant 0 : index
    %c0_3 = arith.constant 0 : index
    %1 = vector.load %arg1[%c0, %c0_0, %c0_1, %c0_2, %c0_3] : memref<1x4x5x5x128xbf16, #tpu.memory_space<vmem>>, vector<1x1x4x4x128xbf16>
    %2 = vector.shape_cast %1 : vector<1x1x4x4x128xbf16> to vector<4x4x128xbf16>
    %3 = vector.shape_cast %2 : vector<4x4x128xbf16> to vector<16x128xbf16>
    %c0_4 = arith.constant 0 : index
    %c0_5 = arith.constant 0 : index
    %c0_6 = arith.constant 0 : index
    %4 = vector.load %arg2[%c0_4, %c0_5, %c0_6] : memref<9x128x128xbf16, #tpu.memory_space<vmem>>, vector<1x128x128xbf16>
    %5 = vector.shape_cast %4 : vector<1x128x128xbf16> to vector<128x128xbf16>
    %cst_7 = arith.constant dense<0.000000e+00> : vector<16x128xf32>
    %6 = tpu.matmul %3, %5, %cst_7 {dimension_numbers = #tpu.dot_dimension_numbers<[1], [0], [0], [1], [0, 0, 1, 1], [], []>} : vector<16x128xbf16>, vector<128x128xbf16>, vector<16x128xf32> -> vector<16x128xf32>
    %7 = arith.addf %0, %6 : vector<16x128xf32>
    %c0_8 = arith.constant 0 : index
    %c1 = arith.constant 1 : index
    %c0_9 = arith.constant 0 : index
    %c0_10 = arith.constant 0 : index
    %c0_11 = arith.constant 0 : index
    %8 = vector.load %arg1[%c0_8, %c1, %c0_9, %c0_10, %c0_11] : memref<1x4x5x5x128xbf16, #tpu.memory_space<vmem>>, vector<1x1x4x4x128xbf16>
    %9 = vector.shape_cast %8 : vector<1x1x4x4x128xbf16> to vector<4x4x128xbf16>
    %10 = vector.shape_cast %9 : vector<4x4x128xbf16> to vector<16x128xbf16>
    %c1_12 = arith.constant 1 : index
    %c0_13 = arith.constant 0 : index
    %c0_14 = arith.constant 0 : index
    %11 = vector.load %arg2[%c1_12, %c0_13, %c0_14] : memref<9x128x128xbf16, #tpu.memory_space<vmem>>, vector<1x128x128xbf16>
    %12 = vector.shape_cast %11 : vector<1x128x128xbf16> to vector<128x128xbf16>
    %cst_15 = arith.constant dense<0.000000e+00> : vector<16x128xf32>
    %13 = tpu.matmul %10, %12, %cst_15 {dimension_numbers = #tpu.dot_dimension_numbers<[1], [0], [0], [1], [0, 0, 1, 1], [], []>} : vector<16x128xbf16>, vector<128x128xbf16>, vector<16x128xf32> -> vector<16x128xf32>
    %14 = arith.addf %7, %13 : vector<16x128xf32>
    %c0_16 = arith.constant 0 : index
    %c0_17 = arith.constant 0 : index
    %c0_18 = arith.constant 0 : index
    %c1_19 = arith.constant 1 : index
    %c0_20 = arith.constant 0 : index
    %15 = vector.load %arg1[%c0_16, %c0_17, %c0_18, %c1_19, %c0_20] : memref<1x4x5x5x128xbf16, #tpu.memory_space<vmem>>, vector<1x1x4x4x128xbf16>
    %16 = vector.shape_cast %15 : vector<1x1x4x4x128xbf16> to vector<4x4x128xbf16>
    %17 = vector.shape_cast %16 : vector<4x4x128xbf16> to vector<16x128xbf16>
    %c2 = arith.constant 2 : index
    %c0_21 = arith.constant 0 : index
    %c0_22 = arith.constant 0 : index
    %18 = vector.load %arg2[%c2, %c0_21, %c0_22] : memref<9x128x128xbf16, #tpu.memory_space<vmem>>, vector<1x128x128xbf16>
    %19 = vector.shape_cast %18 : vector<1x128x128xbf16> to vector<128x128xbf16>
    %cst_23 = arith.constant dense<0.000000e+00> : vector<16x128xf32>
    %20 = tpu.matmul %17, %19, %cst_23 {dimension_numbers = #tpu.dot_dimension_numbers<[1], [0], [0], [1], [0, 0, 1, 1], [], []>} : vector<16x128xbf16>, vector<128x128xbf16>, vector<16x128xf32> -> vector<16x128xf32>
    %21 = arith.addf %14, %20 : vector<16x128xf32>
    %c0_24 = arith.constant 0 : index
    %c2_25 = arith.constant 2 : index
    %c0_26 = arith.constant 0 : index
    %c0_27 = arith.constant 0 : index
    %c0_28 = arith.constant 0 : index
    %22 = vector.load %arg1[%c0_24, %c2_25, %c0_26, %c0_27, %c0_28] : memref<1x4x5x5x128xbf16, #tpu.memory_space<vmem>>, vector<1x1x4x4x128xbf16>
    %23 = vector.shape_cast %22 : vector<1x1x4x4x128xbf16> to vector<4x4x128xbf16>
    %24 = vector.shape_cast %23 : vector<4x4x128xbf16> to vector<16x128xbf16>
    %c3 = arith.constant 3 : index
    %c0_29 = arith.constant 0 : index
    %c0_30 = arith.constant 0 : index
    %25 = vector.load %arg2[%c3, %c0_29, %c0_30] : memref<9x128x128xbf16, #tpu.memory_space<vmem>>, vector<1x128x128xbf16>
    %26 = vector.shape_cast %25 : vector<1x128x128xbf16> to vector<128x128xbf16>
    %cst_31 = arith.constant dense<0.000000e+00> : vector<16x128xf32>
    %27 = tpu.matmul %24, %26, %cst_31 {dimension_numbers = #tpu.dot_dimension_numbers<[1], [0], [0], [1], [0, 0, 1, 1], [], []>} : vector<16x128xbf16>, vector<128x128xbf16>, vector<16x128xf32> -> vector<16x128xf32>
    %28 = arith.addf %21, %27 : vector<16x128xf32>
    %c0_32 = arith.constant 0 : index
    %c3_33 = arith.constant 3 : index
    %c0_34 = arith.constant 0 : index
    %c0_35 = arith.constant 0 : index
    %c0_36 = arith.constant 0 : index
    %29 = vector.load %arg1[%c0_32, %c3_33, %c0_34, %c0_35, %c0_36] : memref<1x4x5x5x128xbf16, #tpu.memory_space<vmem>>, vector<1x1x4x4x128xbf16>
    %30 = vector.shape_cast %29 : vector<1x1x4x4x128xbf16> to vector<4x4x128xbf16>
    %31 = vector.shape_cast %30 : vector<4x4x128xbf16> to vector<16x128xbf16>
    %c4 = arith.constant 4 : index
    %c0_37 = arith.constant 0 : index
    %c0_38 = arith.constant 0 : index
    %32 = vector.load %arg2[%c4, %c0_37, %c0_38] : memref<9x128x128xbf16, #tpu.memory_space<vmem>>, vector<1x128x128xbf16>
    %33 = vector.shape_cast %32 : vector<1x128x128xbf16> to vector<128x128xbf16>
    %cst_39 = arith.constant dense<0.000000e+00> : vector<16x128xf32>
    %34 = tpu.matmul %31, %33, %cst_39 {dimension_numbers = #tpu.dot_dimension_numbers<[1], [0], [0], [1], [0, 0, 1, 1], [], []>} : vector<16x128xbf16>, vector<128x128xbf16>, vector<16x128xf32> -> vector<16x128xf32>
    %35 = arith.addf %28, %34 : vector<16x128xf32>
    %c0_40 = arith.constant 0 : index
    %c2_41 = arith.constant 2 : index
    %c0_42 = arith.constant 0 : index
    %c1_43 = arith.constant 1 : index
    %c0_44 = arith.constant 0 : index
    %36 = vector.load %arg1[%c0_40, %c2_41, %c0_42, %c1_43, %c0_44] : memref<1x4x5x5x128xbf16, #tpu.memory_space<vmem>>, vector<1x1x4x4x128xbf16>
    %37 = vector.shape_cast %36 : vector<1x1x4x4x128xbf16> to vector<4x4x128xbf16>
    %38 = vector.shape_cast %37 : vector<4x4x128xbf16> to vector<16x128xbf16>
    %c5 = arith.constant 5 : index
    %c0_45 = arith.constant 0 : index
    %c0_46 = arith.constant 0 : index
    %39 = vector.load %arg2[%c5, %c0_45, %c0_46] : memref<9x128x128xbf16, #tpu.memory_space<vmem>>, vector<1x128x128xbf16>
    %40 = vector.shape_cast %39 : vector<1x128x128xbf16> to vector<128x128xbf16>
    %cst_47 = arith.constant dense<0.000000e+00> : vector<16x128xf32>
    %41 = tpu.matmul %38, %40, %cst_47 {dimension_numbers = #tpu.dot_dimension_numbers<[1], [0], [0], [1], [0, 0, 1, 1], [], []>} : vector<16x128xbf16>, vector<128x128xbf16>, vector<16x128xf32> -> vector<16x128xf32>
    %42 = arith.addf %35, %41 : vector<16x128xf32>
    %c0_48 = arith.constant 0 : index
    %c0_49 = arith.constant 0 : index
    %c1_50 = arith.constant 1 : index
    %c0_51 = arith.constant 0 : index
    %c0_52 = arith.constant 0 : index
    %43 = vector.load %arg1[%c0_48, %c0_49, %c1_50, %c0_51, %c0_52] : memref<1x4x5x5x128xbf16, #tpu.memory_space<vmem>>, vector<1x1x4x4x128xbf16>
    %44 = vector.shape_cast %43 : vector<1x1x4x4x128xbf16> to vector<4x4x128xbf16>
    %45 = vector.shape_cast %44 : vector<4x4x128xbf16> to vector<16x128xbf16>
    %c6 = arith.constant 6 : index
    %c0_53 = arith.constant 0 : index
    %c0_54 = arith.constant 0 : index
    %46 = vector.load %arg2[%c6, %c0_53, %c0_54] : memref<9x128x128xbf16, #tpu.memory_space<vmem>>, vector<1x128x128xbf16>
    %47 = vector.shape_cast %46 : vector<1x128x128xbf16> to vector<128x128xbf16>
    %cst_55 = arith.constant dense<0.000000e+00> : vector<16x128xf32>
    %48 = tpu.matmul %45, %47, %cst_55 {dimension_numbers = #tpu.dot_dimension_numbers<[1], [0], [0], [1], [0, 0, 1, 1], [], []>} : vector<16x128xbf16>, vector<128x128xbf16>, vector<16x128xf32> -> vector<16x128xf32>
    %49 = arith.addf %42, %48 : vector<16x128xf32>
    %c0_56 = arith.constant 0 : index
    %c1_57 = arith.constant 1 : index
    %c1_58 = arith.constant 1 : index
    %c0_59 = arith.constant 0 : index
    %c0_60 = arith.constant 0 : index
    %50 = vector.load %arg1[%c0_56, %c1_57, %c1_58, %c0_59, %c0_60] : memref<1x4x5x5x128xbf16, #tpu.memory_space<vmem>>, vector<1x1x4x4x128xbf16>
    %51 = vector.shape_cast %50 : vector<1x1x4x4x128xbf16> to vector<4x4x128xbf16>
    %52 = vector.shape_cast %51 : vector<4x4x128xbf16> to vector<16x128xbf16>
    %c7 = arith.constant 7 : index
    %c0_61 = arith.constant 0 : index
    %c0_62 = arith.constant 0 : index
    %53 = vector.load %arg2[%c7, %c0_61, %c0_62] : memref<9x128x128xbf16, #tpu.memory_space<vmem>>, vector<1x128x128xbf16>
    %54 = vector.shape_cast %53 : vector<1x128x128xbf16> to vector<128x128xbf16>
    %cst_63 = arith.constant dense<0.000000e+00> : vector<16x128xf32>
    %55 = tpu.matmul %52, %54, %cst_63 {dimension_numbers = #tpu.dot_dimension_numbers<[1], [0], [0], [1], [0, 0, 1, 1], [], []>} : vector<16x128xbf16>, vector<128x128xbf16>, vector<16x128xf32> -> vector<16x128xf32>
    %56 = arith.addf %49, %55 : vector<16x128xf32>
    %c0_64 = arith.constant 0 : index
    %c0_65 = arith.constant 0 : index
    %c1_66 = arith.constant 1 : index
    %c1_67 = arith.constant 1 : index
    %c0_68 = arith.constant 0 : index
    %57 = vector.load %arg1[%c0_64, %c0_65, %c1_66, %c1_67, %c0_68] : memref<1x4x5x5x128xbf16, #tpu.memory_space<vmem>>, vector<1x1x4x4x128xbf16>
    %58 = vector.shape_cast %57 : vector<1x1x4x4x128xbf16> to vector<4x4x128xbf16>
    %59 = vector.shape_cast %58 : vector<4x4x128xbf16> to vector<16x128xbf16>
    %c8 = arith.constant 8 : index
    %c0_69 = arith.constant 0 : index
    %c0_70 = arith.constant 0 : index
    %60 = vector.load %arg2[%c8, %c0_69, %c0_70] : memref<9x128x128xbf16, #tpu.memory_space<vmem>>, vector<1x128x128xbf16>
    %61 = vector.shape_cast %60 : vector<1x128x128xbf16> to vector<128x128xbf16>
    %cst_71 = arith.constant dense<0.000000e+00> : vector<16x128xf32>
    %62 = tpu.matmul %59, %61, %cst_71 {dimension_numbers = #tpu.dot_dimension_numbers<[1], [0], [0], [1], [0, 0, 1, 1], [], []>} : vector<16x128xbf16>, vector<128x128xbf16>, vector<16x128xf32> -> vector<16x128xf32>
    %63 = arith.addf %56, %62 : vector<16x128xf32>
    %c0_72 = arith.constant 0 : index
    %c0_73 = arith.constant 0 : index
    %64 = vector.load %arg3[%c0_72, %c0_73] : memref<1x128xf32, #tpu.memory_space<vmem>>, vector<1x128xf32>
    %65 = vector.broadcast %64 : vector<1x128xf32> to vector<16x128xf32>
    %66 = arith.addf %63, %65 : vector<16x128xf32>
    %cst_74 = arith.constant 0.000000e+00 : f32
    %67 = vector.broadcast %cst_74 : f32 to vector<16x128xf32>
    %68 = arith.maximumf %66, %67 : vector<16x128xf32>
    %69 = arith.truncf %68 : vector<16x128xf32> to vector<16x128xbf16>
    %c0_75 = arith.constant 0 : index
    %c0_76 = arith.constant 0 : index
    %c0_77 = arith.constant 0 : index
    %70 = vector.load %arg4[%c0_75, %c0_76, %c0_77] : memref<1x16x128xbf16, #tpu.memory_space<vmem>>, vector<1x16x128xbf16>
    %71 = vector.shape_cast %70 : vector<1x16x128xbf16> to vector<16x128xbf16>
    %72 = vector.shape_cast %69 : vector<16x128xbf16> to vector<1x16x128xbf16>
    tpu.vector_store %arg4[%c0_75, %c0_76, %c0_77], %72 {strides = array<i32>} : memref<1x16x128xbf16, #tpu.memory_space<vmem>>, vector<1x16x128xbf16>,
    return
  }
  func.func @transform_0(%arg0: i32) -> (i32, i32, i32, i32, i32) {
    %c0_i32 = arith.constant 0 : i32
    %c0_i32_0 = arith.constant 0 : i32
    %c0_i32_1 = arith.constant 0 : i32
    %c0_i32_2 = arith.constant 0 : i32
    %c0_i32_3 = arith.constant 0 : i32
    return %arg0, %c0_i32, %c0_i32_0, %c0_i32_1, %c0_i32_2 : i32, i32, i32, i32, i32
  }
  func.func @transform_1(%arg0: i32) -> (i32, i32, i32) {
    %c0_i32 = arith.constant 0 : i32
    %c0_i32_0 = arith.constant 0 : i32
    %c0_i32_1 = arith.constant 0 : i32
    %c0_i32_2 = arith.constant 0 : i32
    return %c0_i32, %c0_i32_0, %c0_i32_1 : i32, i32, i32
  }
  func.func @transform_2(%arg0: i32) -> (i32, i32) {
    %c0_i32 = arith.constant 0 : i32
    %c0_i32_0 = arith.constant 0 : i32
    %c0_i32_1 = arith.constant 0 : i32
    return %c0_i32, %c0_i32_0 : i32, i32
  }
  func.func @transform_3(%arg0: i32) -> (i32, i32, i32) {
    %c0_i32 = arith.constant 0 : i32
    %c0_i32_0 = arith.constant 0 : i32
    %c0_i32_1 = arith.constant 0 : i32
    return %arg0, %c0_i32, %c0_i32_0 : i32, i32, i32
  }
}

</mosaic_0001>

<llo_original>
// kernel: _forward_impl.2
$region0: #{_forward_impl.2}
  #allocation0 [shape = 'u32[]', space=smem, size = 0x4, offset = 0x4, fixed_abs, tag = 'smem constant byte address 0x4 - core index']
  #allocation1 [shape = 'u32[144,128]{1,0:T(1,128)}', space=vmem, size = 0x12000, scoped, tag = 'internal scratch']
  %s0 = inlined_call_operand.vmem [shape: bf16[2,4,9,9,3], index: 0, kind: input, shape index: {}]
  %s1 = inlined_call_operand.vmem [shape: bf16[9,3,128], index: 1, kind: input, shape index: {}]
  %s2 = inlined_call_operand.vmem [shape: f32[1,128], index: 2, kind: input, shape index: {}]
  %s3 = inlined_call_operand.vmem [shape: bf16[2,64,128], index: 3, kind: output, shape index: {}]
  %s4 = sld [smem:[#allocation0]]
  $region45: #{_forward_impl.2} parent=0
    _
  %s6 = ssub.s32 1, %s4
  %s7 = scalar_select 0, %s6, %s4
  loop: start=0, step=1, limit=4
  $region2: #{_forward_impl.2} parent=0 // loop_pre_header
    _
  $region3: #{_forward_impl.2} parent=0 // loop_header
    %s9 = sphi 0, %s13
    %p10 = scmp.ge.s32.totalorder %s9, 4
    %s19 = sphi 0, %s21
    %s22 = sphi 0, %s19
    %s23 = sphi 0, %s22
    %s39 = sphi 0, %s23
    %s43 = sphi 0, %s43
    %s45 = sphi 0, %s43
    %s46 = sphi 0, %s45
    %s60 = sphi 0, %s46
    %s64 = sphi 0, %s64
    %s66 = sphi 0, %s64
    %s67 = sphi 0, %s66
    %s81 = sphi 0, %s67
    %s87 = sphi 0, %s89
    %s90 = sphi 0, %s87
    %s91 = sphi 0, %s90
    %s107 = sphi 0, %s91
  $region4: #{_forward_impl.2} parent=0 // loop_header_branch
    %12 = sbr.rel (%p10) target = $region8
  $region5: #{_forward_impl.2} parent=0 // loop_body
    %s14 = ssub.s32 %s9, 1
    %s15 = ssub.s32 %s9, 2
    %s16 = sadd.s32 %s9, 1
    %s17 = ssub.s32 %s9, %s16
    %p18 = scmp.eq.s32.totalorder %s17, 0
    %s20 = sadd.s32 %s19, 1
    %s21 = scalar_select %p18, %s19, %s20
    %p24 = pneg %p18
    %p25 = scmp.eq.s32.totalorder %s9, 1
    %p26 = por %p24, %p25
    %p27 = scmp.ne.s32.totalorder %s19, %s22
    %p28 = scmp.eq.s32.totalorder %s9, 0
    %p29 = por %p27, %p28
    %p30 = scmp.ne.s32.totalorder %s19, %s22
    %p31 = scmp.eq.s32.totalorder %s14, 1
    %p32 = por %p30, %p31
    %p33 = scmp.ne.s32.totalorder %s22, %s23
    %p34 = scmp.eq.s32.totalorder %s14, 0
    %p35 = por %p33, %p34
    %p36 = scmp.ne.s32.totalorder %s22, %s23
    %p37 = scmp.eq.s32.totalorder %s15, 1
    %p38 = por %p36, %p37
    %p40 = scmp.ne.s32.totalorder %s23, %s39
    %p41 = scmp.eq.s32.totalorder %s15, 0
    %p42 = por %p40, %p41
    %s44 = sadd.s32 %s43, 1
    %p47 = scmp.eq.s32.totalorder %s9, 1
    %p48 = scmp.ne.s32.totalorder %s43, %s45
    %p49 = scmp.eq.s32.totalorder %s9, 0
    %p50 = por %p48, %p49
    %p51 = scmp.ne.s32.totalorder %s43, %s45
    %p52 = scmp.eq.s32.totalorder %s14, 1
    %p53 = por %p51, %p52
    %p54 = scmp.ne.s32.totalorder %s45, %s46
    %p55 = scmp.eq.s32.totalorder %s14, 0
    %p56 = por %p54, %p55
    %p57 = scmp.ne.s32.totalorder %s45, %s46
    %p58 = scmp.eq.s32.totalorder %s15, 1
    %p59 = por %p57, %p58
    %p61 = scmp.ne.s32.totalorder %s46, %s60
    %p62 = scmp.eq.s32.totalorder %s15, 0
    %p63 = por %p61, %p62
    %s65 = sadd.s32 %s64, 1
    %p68 = scmp.eq.s32.totalorder %s9, 1
    %p69 = scmp.ne.s32.totalorder %s64, %s66
    %p70 = scmp.eq.s32.totalorder %s9, 0
    %p71 = por %p69, %p70
    %p72 = scmp.ne.s32.totalorder %s64, %s66
    %p73 = scmp.eq.s32.totalorder %s14, 1
    %p74 = por %p72, %p73
    %p75 = scmp.ne.s32.totalorder %s66, %s67
    %p76 = scmp.eq.s32.totalorder %s14, 0
    %p77 = por %p75, %p76
    %p78 = scmp.ne.s32.totalorder %s66, %s67
    %p79 = scmp.eq.s32.totalorder %s15, 1
    %p80 = por %p78, %p79
    %p82 = scmp.ne.s32.totalorder %s67, %s81
    %p83 = scmp.eq.s32.totalorder %s15, 0
    %p84 = por %p82, %p83
    %s85 = ssub.s32 %s9, %s16
    %p86 = scmp.eq.s32.totalorder %s85, 0
    %s88 = sadd.s32 %s87, 1
    %s89 = scalar_select %p86, %s87, %s88
    %p92 = pneg %p86
    %p93 = scmp.eq.s32.totalorder %s9, 1
    %p94 = por %p92, %p93
    %p95 = scmp.ne.s32.totalorder %s87, %s90
    %p96 = scmp.eq.s32.totalorder %s9, 0
    %p97 = por %p95, %p96
    %p98 = scmp.ne.s32.totalorder %s87, %s90
    %p99 = scmp.eq.s32.totalorder %s14, 1
    %p100 = por %p98, %p99
    %p101 = scmp.ne.s32.totalorder %s90, %s91
    %p102 = scmp.eq.s32.totalorder %s14, 0
    %p103 = por %p101, %p102
    %p104 = scmp.ne.s32.totalorder %s90, %s91
    %p105 = scmp.eq.s32.totalorder %s15, 1
    %p106 = por %p104, %p105
    %p108 = scmp.ne.s32.totalorder %s91, %s107
    %p109 = scmp.eq.s32.totalorder %s15, 0
    %p110 = por %p108, %p109
    %p111 = scmp.le.s32.totalorder 1, %s9
    %p112 = scmp.lt.s32.totalorder %s9, 3
    %p113 = pnand %p111, %p112
    %p114 = pneg %p113
    // Predicated region
    $region9: #{_forward_impl.2} parent=5 // pred_check
      _
    $region10: #{_forward_impl.2} parent=5 // pred_check_branch
      %116 = sbr.rel (%p113) target = $region12
    $region11: #{_forward_impl.2} parent=5 // pred_region
      %s117 = ssub.s32 %s9, 1
      // Predicated region
      $region13: #{_forward_impl.2} parent=11 // pred_check
        %p118 = pneg %p56
      $region14: #{_forward_impl.2} parent=11 // pred_check_branch
        %120 = sbr.rel (%p118) target = $region16
      $region15: #{_forward_impl.2} parent=11 // pred_region
        _
      $region16: #{_forward_impl.2} parent=11 // pred_fallthru
        _
      // Predicated region
      $region17: #{_forward_impl.2} parent=11 // pred_check
        %p121 = pneg %p77
      $region18: #{_forward_impl.2} parent=11 // pred_check_branch
        %123 = sbr.rel (%p121) target = $region20
      $region19: #{_forward_impl.2} parent=11 // pred_region
        _
      $region20: #{_forward_impl.2} parent=11 // pred_fallthru
        _
    $region12: #{_forward_impl.2} parent=5 // pred_fallthru
      _
    %p124 = scmp.lt.s32.totalorder %s9, 2
    // Predicated region
    $region21: #{_forward_impl.2} parent=5 // pred_check
      %p125 = pneg %p124
    $region22: #{_forward_impl.2} parent=5 // pred_check_branch
      %127 = sbr.rel (%p125) target = $region24
    $region23: #{_forward_impl.2} parent=5 // pred_region
      // Predicated region
      $region25: #{_forward_impl.2} parent=23 // pred_check
        %p128 = pneg %p29
      $region26: #{_forward_impl.2} parent=23 // pred_check_branch
        %130 = sbr.rel (%p128) target = $region28
      $region27: #{_forward_impl.2} parent=23 // pred_region
        %p131 = scmp.lt.s32.totalorder %s9, 1
        %s132 = scalar_select %p131, %s9, 1
        %s133 = smul.addr %s132, 72
        %s134 = smul.addr %s133, 4
        %s135 = scalar_lea.vmem %s0, %s134
      $region28: #{_forward_impl.2} parent=23 // pred_fallthru
        _
    $region24: #{_forward_impl.2} parent=5 // pred_fallthru
      _
    %p136 = scmp.le.s32.totalorder 1, %s9
    %p137 = scmp.lt.s32.totalorder %s9, 3
    %p138 = pnand %p136, %p137
    %p139 = pneg %p138
    // Predicated region
    $region29: #{_forward_impl.2} parent=5 // pred_check
      _
    $region30: #{_forward_impl.2} parent=5 // pred_check_branch
      %141 = sbr.rel (%p138) target = $region32
    $region31: #{_forward_impl.2} parent=5 // pred_region
      %s142 = ssub.s32 %s9, 1
      %p143 = scmp.lt.s32.totalorder %s14, 1
      %s144 = scalar_select %p143, %s14, 1
      %s145 = smul.addr %s144, 72
      %s146 = smul.addr %s145, 4
      %s147 = scalar_lea.vmem %s0, %s146
      %p148 = pneg %p35
      %p149 = pneg %p32
      %p150 = pneg %p56
      %p151 = pneg %p53
      %p152 = pneg %p77
      %p153 = pneg %p74
      %p154 = pneg %p103
      %p155 = pneg %p100
      %p156 = scmp.lt.s32.totalorder %s14, 1
      %s157 = scalar_select %p156, %s14, 1
      %s158 = smul.addr %s157, 8
      %s159 = smul.addr %s158, 4
      %s160 = scalar_lea.vmem %s3, %s159
      %p161 = scmp.lt.s32.totalorder %s14, 1
      %s162 = scalar_select %p161, %s14, 1
      %s163 = smul.addr %s162, 72
      %s164 = smul.addr %s163, 4
      %s165 = scalar_lea.vmem %s0, %s164
      %p166 = scmp.lt.s32.totalorder %s14, 1
      %s167 = scalar_select %p166, %s14, 1
      %s168 = smul.addr %s167, 8
      %s169 = smul.addr %s168, 4
      %s170 = scalar_lea.vmem %s3, %s169
      %v172 = vld [vmem:[%s165] sm:$0xf]
      %v173 = vld [vmem:[%s165 + $0x8] sm:$0xf]
      %v174 = vld [vmem:[%s165 + $0x10] sm:$0xf]
      %v175 = vld [vmem:[%s165 + $0x18] sm:$0xf]
      %v176 = vld [vmem:[%s165 + $0x20] sm:$0xf]
      %v177 = vld [vmem:[%s165 + $0x28] sm:$0xf]
      %v178 = vld [vmem:[%s165 + $0x30] sm:$0xf]
      %v179 = vld [vmem:[%s165 + $0x38] sm:$0xf]
      %v180 = vld [vmem:[%s1] sm:$0x3]
      %s181 = scalar_lea.vmem %s165, 72
      %v182 = vld [vmem:[%s181] sm:$0xf]
      %v183 = vld [vmem:[%s181 + $0x8] sm:$0xf]
      %v184 = vld [vmem:[%s181 + $0x10] sm:$0xf]
      %v185 = vld [vmem:[%s181 + $0x18] sm:$0xf]
      %v186 = vld [vmem:[%s181 + $0x20] sm:$0xf]
      %v187 = vld [vmem:[%s181 + $0x28] sm:$0xf]
      %v188 = vld [vmem:[%s181 + $0x30] sm:$0xf]
      %v189 = vld [vmem:[%s181 + $0x38] sm:$0xf]
      %s190 = scalar_lea.vmem %s1, 2
      %v191 = vld [vmem:[%s190] sm:$0x3]
      %v200 = vunpack.c.l.b16 %v182
      %v201 = vunpack.c.l.b16 %v183
      %v202 = vunpack.c.l.b16 %v184
      %v203 = vunpack.c.l.b16 %v185
      %v204 = vunpack.c.l.b16 %v186
      %v205 = vunpack.c.l.b16 %v187
      %v206 = vunpack.c.l.b16 %v188
      %v207 = vunpack.c.l.b16 %v189
      %v208 = vpack.c.b16 %v201, %v200
      %v209 = vpack.c.b16 %v203, %v202
      %v210 = vpack.c.b16 %v205, %v204
      %v211 = vpack.c.b16 %v207, %v206
      %vm212 = vcmask 23552
      %v214 = vsel %vm212, %v208, 0
      %v217 = vsel %vm212, %v209, 0
      %v220 = vsel %vm212, %v210, 0
      %v223 = vsel %vm212, %v211, 0
      %vm225 = vcmask 1040384
      %vm226 = vcmask 1041408
      %v227 = vsel %vm225, 4294967295, 65535
      %v228 = vsel %vm226, %v227, 0
      %v230 = vand.u32 %v191, %v228
      %232 = vmatprep.subr.bf16.mxu0 0
      %233 = vmatpush1.bf16.msra.mxu0 %v230
      %234 = vmatprep.subr.bf16.mxu0 0
      %235 = vmatpush1.bf16.msra.mxu0 0
      %236 = vmatprep.subr.bf16.mxu0 0
      %237 = vmatpush1.bf16.msra.mxu0 0
      %238 = vmatprep.subr.bf16.mxu0 0
      %239 = vmatpush1.bf16.msra.mxu0 0
      %240 = vmatprep.subr.bf16.mxu0 0
      %241 = vmatpush1.bf16.msra.mxu0 0
      %242 = vmatprep.subr.bf16.mxu0 0
      %243 = vmatpush1.bf16.msra.mxu0 0
      %244 = vmatprep.subr.bf16.mxu0 0
      %245 = vmatpush1.bf16.msra.mxu0 0
      %246 = vmatprep.subr.bf16.mxu0 0
      %247 = vmatpush1.bf16.msra.mxu0 0
      %248 = vmatprep.subr.bf16.mxu0 0
      %249 = vmatpush1.bf16.msra.mxu0 0
      %250 = vmatprep.subr.bf16.mxu0 0
      %251 = vmatpush1.bf16.msra.mxu0 0
      %252 = vmatprep.subr.bf16.mxu0 0
      %253 = vmatpush1.bf16.msra.mxu0 0
      %254 = vmatprep.subr.bf16.mxu0 0
      %255 = vmatpush1.bf16.msra.mxu0 0
      %256 = vmatprep.subr.bf16.mxu0 0
      %257 = vmatpush1.bf16.msra.mxu0 0
      %258 = vmatprep.subr.bf16.mxu0 0
      %259 = vmatpush1.bf16.msra.mxu0 0
      %260 = vmatprep.subr.bf16.mxu0 0
      %261 = vmatpush1.bf16.msra.mxu0 0
      %262 = vmatprep.subr.bf16.mxu0 0
      %263 = vmatpush1.bf16.msra.mxu0 0
      %264 = vmatprep.mubr.bf16.mxu0 0
      %265 = vmatmul.mubr.bf16.gmra.mrb[0].mxu0 %v214
      %v266 = vpop.f32.mrb[0].mxu0
      %v267 = vadd.f32 0.0, %v266
      %v268 = vpop.f32.mrb[0].mxu0
      %v269 = vpop.f32.mrb[0].mxu0
      %v270 = vadd.f32 0.0, %v269
      %v271 = vpop.f32.mrb[0].mxu0
      %272 = vmatprep.mubr.bf16.mxu0 0
      %273 = vmatmul.mubr.bf16.gmra.mrb[0].mxu0 %v217
      %v274 = vpop.f32.mrb[0].mxu0
      %v275 = vadd.f32 0.0, %v274
      %v276 = vpop.f32.mrb[0].mxu0
      %v277 = vpop.f32.mrb[0].mxu0
      %v278 = vadd.f32 0.0, %v277
      %v279 = vpop.f32.mrb[0].mxu0
      %280 = vmatprep.mubr.bf16.mxu0 0
      %281 = vmatmul.mubr.bf16.gmra.mrb[0].mxu0 %v220
      %v282 = vpop.f32.mrb[0].mxu0
      %v283 = vadd.f32 0.0, %v282
      %v284 = vpop.f32.mrb[0].mxu0
      %v285 = vpop.f32.mrb[0].mxu0
      %v286 = vadd.f32 0.0, %v285
      %v287 = vpop.f32.mrb[0].mxu0
      %288 = vmatprep.mubr.bf16.mxu0 0
      %289 = vmatmul.mubr.bf16.gmra.mrb[0].mxu0 %v223
      %v290 = vpop.f32.mrb[0].mxu0
      %v291 = vadd.f32 0.0, %v290
      %v292 = vpop.f32.mrb[0].mxu0
      %v293 = vpop.f32.mrb[0].mxu0
      %v294 = vadd.f32 0.0, %v293
      %v295 = vpop.f32.mrb[0].mxu0
      %296 = vdwg.mxu0
      %v305 = vunpack.c.l.b16 %v172
      %v306 = vunpack.c.l.b16 %v173
      %v307 = vunpack.c.l.b16 %v174
      %v308 = vunpack.c.l.b16 %v175
      %v309 = vunpack.c.l.b16 %v176
      %v310 = vunpack.c.l.b16 %v177
      %v311 = vunpack.c.l.b16 %v178
      %v312 = vunpack.c.l.b16 %v179
      %v313 = vpack.c.b16 %v306, %v305
      %v314 = vpack.c.b16 %v308, %v307
      %v315 = vpack.c.b16 %v310, %v309
      %v316 = vpack.c.b16 %v312, %v311
      %v318 = vsel %vm212, %v313, 0
      %v321 = vsel %vm212, %v314, 0
      %v324 = vsel %vm212, %v315, 0
      %v327 = vsel %vm212, %v316, 0
      %v330 = vand.u32 %v180, %v228
      %332 = vmatprep.subr.bf16.mxu0 0
      %333 = vmatpush1.bf16.msra.mxu0 %v330
      %334 = vmatprep.subr.bf16.mxu0 0
      %335 = vmatpush1.bf16.msra.mxu0 0
      %336 = vmatprep.subr.bf16.mxu0 0
      %337 = vmatpush1.bf16.msra.mxu0 0
      %338 = vmatprep.subr.bf16.mxu0 0
      %339 = vmatpush1.bf16.msra.mxu0 0
      %340 = vmatprep.subr.bf16.mxu0 0
      %341 = vmatpush1.bf16.msra.mxu0 0
      %342 = vmatprep.subr.bf16.mxu0 0
      %343 = vmatpush1.bf16.msra.mxu0 0
      %344 = vmatprep.subr.bf16.mxu0 0
      %345 = vmatpush1.bf16.msra.mxu0 0
      %346 = vmatprep.subr.bf16.mxu0 0
      %347 = vmatpush1.bf16.msra.mxu0 0
      %348 = vmatprep.subr.bf16.mxu0 0
      %349 = vmatpush1.bf16.msra.mxu0 0
      %350 = vmatprep.subr.bf16.mxu0 0
      %351 = vmatpush1.bf16.msra.mxu0 0
      %352 = vmatprep.subr.bf16.mxu0 0
      %353 = vmatpush1.bf16.msra.mxu0 0
      %354 = vmatprep.subr.bf16.mxu0 0
      %355 = vmatpush1.bf16.msra.mxu0 0
      %356 = vmatprep.subr.bf16.mxu0 0
      %357 = vmatpush1.bf16.msra.mxu0 0
      %358 = vmatprep.subr.bf16.mxu0 0
      %359 = vmatpush1.bf16.msra.mxu0 0
      %360 = vmatprep.subr.bf16.mxu0 0
      %361 = vmatpush1.bf16.msra.mxu0 0
      %362 = vmatprep.subr.bf16.mxu0 0
      %363 = vmatpush1.bf16.msra.mxu0 0
      %364 = vmatprep.mubr.bf16.mxu0 0
      %365 = vmatmul.mubr.bf16.gmra.mrb[0].mxu0 %v318
      %v366 = vpop.f32.mrb[0].mxu0
      %v367 = vadd.f32 %v267, %v366
      %v368 = vpop.f32.mrb[0].mxu0
      %v369 = vpop.f32.mrb[0].mxu0
      %v370 = vadd.f32 %v270, %v369
      %v371 = vpop.f32.mrb[0].mxu0
      %372 = vmatprep.mubr.bf16.mxu0 0
      %373 = vmatmul.mubr.bf16.gmra.mrb[0].mxu0 %v321
      %v374 = vpop.f32.mrb[0].mxu0
      %v375 = vadd.f32 %v275, %v374
      %v376 = vpop.f32.mrb[0].mxu0
      %v377 = vpop.f32.mrb[0].mxu0
      %v378 = vadd.f32 %v278, %v377
      %v379 = vpop.f32.mrb[0].mxu0
      %380 = vmatprep.mubr.bf16.mxu0 0
      %381 = vmatmul.mubr.bf16.gmra.mrb[0].mxu0 %v324
      %v382 = vpop.f32.mrb[0].mxu0
      %v383 = vadd.f32 %v283, %v382
      %v384 = vpop.f32.mrb[0].mxu0
      %v385 = vpop.f32.mrb[0].mxu0
      %v386 = vadd.f32 %v286, %v385
      %v387 = vpop.f32.mrb[0].mxu0
      %388 = vmatprep.mubr.bf16.mxu0 0
      %389 = vmatmul.mubr.bf16.gmra.mrb[0].mxu0 %v327
      %v390 = vpop.f32.mrb[0].mxu0
      %v391 = vadd.f32 %v291, %v390
      %v392 = vpop.f32.mrb[0].mxu0
      %v393 = vpop.f32.mrb[0].mxu0
      %v394 = vadd.f32 %v294, %v393
      %v395 = vpop.f32.mrb[0].mxu0
      %396 = vdwg.mxu0
      %v397 = vld [vmem:[%s165] sm:$0xf]
      %v398 = vld [vmem:[%s165 + $0x4] sm:$0x1]
      %v399 = vld [vmem:[%s165 + $0x8] sm:$0xf]
      %v400 = vld [vmem:[%s165 + $0xc] sm:$0x1]
      %v401 = vld [vmem:[%s165 + $0x10] sm:$0xf]
      %v402 = vld [vmem:[%s165 + $0x14] sm:$0x1]
      %v403 = vld [vmem:[%s165 + $0x18] sm:$0xf]
      %v404 = vld [vmem:[%s165 + $0x1c] sm:$0x1]
      %v405 = vld [vmem:[%s165 + $0x20] sm:$0xf]
      %v406 = vld [vmem:[%s165 + $0x24] sm:$0x1]
      %v407 = vld [vmem:[%s165 + $0x28] sm:$0xf]
      %v408 = vld [vmem:[%s165 + $0x2c] sm:$0x1]
      %v409 = vld [vmem:[%s165 + $0x30] sm:$0xf]
      %v410 = vld [vmem:[%s165 + $0x34] sm:$0x1]
      %v411 = vld [vmem:[%s165 + $0x38] sm:$0xf]
      %v412 = vld [vmem:[%s165 + $0x3c] sm:$0x1]
      %vm413 = vsmask.f32 3328
      %vm414 = vsmask.f32 7440
      %vm415 = vmor %vm413, %vm414
      %v417 = vshrl.u32 %v397, 16
      %v419 = vrot.slane %v417, 4
      %v420 = vshll.u32 %v397, 16
      %v422 = vrot.slane %v420, 5
      %v423 = vor.u32 %v419, %v422
      %v424 = vrot.slane %v423, 4
      %v426 = vshll.u32 %v398, 16
      %v428 = vrot.slane %v426, 5
      %v429 = vsel %vm415, %v424, %v428
      %v431 = vshrl.u32 %v399, 16
      %v433 = vrot.slane %v431, 4
      %v434 = vshll.u32 %v399, 16
      %v436 = vrot.slane %v434, 5
      %v437 = vor.u32 %v433, %v436
      %v438 = vrot.slane %v437, 4
      %v440 = vshll.u32 %v400, 16
      %v442 = vrot.slane %v440, 5
      %v443 = vsel %vm415, %v438, %v442
      %v445 = vshrl.u32 %v401, 16
      %v447 = vrot.slane %v445, 4
      %v448 = vshll.u32 %v401, 16
      %v450 = vrot.slane %v448, 5
      %v451 = vor.u32 %v447, %v450
      %v452 = vrot.slane %v451, 4
      %v454 = vshll.u32 %v402, 16
      %v456 = vrot.slane %v454, 5
      %v457 = vsel %vm415, %v452, %v456
      %v459 = vshrl.u32 %v403, 16
      %v461 = vrot.slane %v459, 4
      %v462 = vshll.u32 %v403, 16
      %v464 = vrot.slane %v462, 5
      %v465 = vor.u32 %v461, %v464
      %v466 = vrot.slane %v465, 4
      %v468 = vshll.u32 %v404, 16
      %v470 = vrot.slane %v468, 5
      %v471 = vsel %vm415, %v466, %v470
      %v473 = vshrl.u32 %v405, 16
      %v475 = vrot.slane %v473, 4
      %v476 = vshll.u32 %v405, 16
      %v478 = vrot.slane %v476, 5
      %v479 = vor.u32 %v475, %v478
      %v480 = vrot.slane %v479, 4
      %v482 = vshll.u32 %v406, 16
      %v484 = vrot.slane %v482, 5
      %v485 = vsel %vm415, %v480, %v484
      %v487 = vshrl.u32 %v407, 16
      %v489 = vrot.slane %v487, 4
      %v490 = vshll.u32 %v407, 16
      %v492 = vrot.slane %v490, 5
      %v493 = vor.u32 %v489, %v492
      %v494 = vrot.slane %v493, 4
      %v496 = vshll.u32 %v408, 16
      %v498 = vrot.slane %v496, 5
      %v499 = vsel %vm415, %v494, %v498
      %v501 = vshrl.u32 %v409, 16
      %v503 = vrot.slane %v501, 4
      %v504 = vshll.u32 %v409, 16
      %v506 = vrot.slane %v504, 5
      %v507 = vor.u32 %v503, %v506
      %v508 = vrot.slane %v507, 4
      %v510 = vshll.u32 %v410, 16
      %v512 = vrot.slane %v510, 5
      %v513 = vsel %vm415, %v508, %v512
      %v515 = vshrl.u32 %v411, 16
      %v517 = vrot.slane %v515, 4
      %v518 = vshll.u32 %v411, 16
      %v520 = vrot.slane %v518, 5
      %v521 = vor.u32 %v517, %v520
      %v522 = vrot.slane %v521, 4
      %v524 = vshll.u32 %v412, 16
      %v526 = vrot.slane %v524, 5
      %v527 = vsel %vm415, %v522, %v526
      %s528 = scalar_lea.vmem %s1, 4
      %v529 = vld [vmem:[%s528] sm:$0x3]
      %v530 = vunpack.c.l.b16 %v429
      %v531 = vunpack.c.l.b16 %v443
      %v532 = vunpack.c.l.b16 %v457
      %v533 = vunpack.c.l.b16 %v471
      %v534 = vunpack.c.l.b16 %v485
      %v535 = vunpack.c.l.b16 %v499
      %v536 = vunpack.c.l.b16 %v513
      %v537 = vunpack.c.l.b16 %v527
      %v538 = vpack.c.b16 %v531, %v530
      %v539 = vpack.c.b16 %v533, %v532
      %v540 = vpack.c.b16 %v535, %v534
      %v541 = vpack.c.b16 %v537, %v536
      %v543 = vsel %vm212, %v538, 0
      %v546 = vsel %vm212, %v539, 0
      %v549 = vsel %vm212, %v540, 0
      %v552 = vsel %vm212, %v541, 0
      %v555 = vand.u32 %v529, %v228
      %557 = vmatprep.subr.bf16.mxu0 0
      %558 = vmatpush1.bf16.msra.mxu0 %v555
      %559 = vmatprep.subr.bf16.mxu0 0
      %560 = vmatpush1.bf16.msra.mxu0 0
      %561 = vmatprep.subr.bf16.mxu0 0
      %562 = vmatpush1.bf16.msra.mxu0 0
      %563 = vmatprep.subr.bf16.mxu0 0
      %564 = vmatpush1.bf16.msra.mxu0 0
      %565 = vmatprep.subr.bf16.mxu0 0
      %566 = vmatpush1.bf16.msra.mxu0 0
      %567 = vmatprep.subr.bf16.mxu0 0
      %568 = vmatpush1.bf16.msra.mxu0 0
      %569 = vmatprep.subr.bf16.mxu0 0
      %570 = vmatpush1.bf16.msra.mxu0 0
      %571 = vmatprep.subr.bf16.mxu0 0
      %572 = vmatpush1.bf16.msra.mxu0 0
      %573 = vmatprep.subr.bf16.mxu0 0
      %574 = vmatpush1.bf16.msra.mxu0 0
      %575 = vmatprep.subr.bf16.mxu0 0
      %576 = vmatpush1.bf16.msra.mxu0 0
      %577 = vmatprep.subr.bf16.mxu0 0
      %578 = vmatpush1.bf16.msra.mxu0 0
      %579 = vmatprep.subr.bf16.mxu0 0
      %580 = vmatpush1.bf16.msra.mxu0 0
      %581 = vmatprep.subr.bf16.mxu0 0
      %582 = vmatpush1.bf16.msra.mxu0 0
      %583 = vmatprep.subr.bf16.mxu0 0
      %584 = vmatpush1.bf16.msra.mxu0 0
      %585 = vmatprep.subr.bf16.mxu0 0
      %586 = vmatpush1.bf16.msra.mxu0 0
      %587 = vmatprep.subr.bf16.mxu0 0
      %588 = vmatpush1.bf16.msra.mxu0 0
      %589 = vmatprep.mubr.bf16.mxu0 0
      %590 = vmatmul.mubr.bf16.gmra.mrb[0].mxu0 %v543
      %v591 = vpop.f32.mrb[0].mxu0
      %v592 = vadd.f32 0.0, %v591
      %v593 = vpop.f32.mrb[0].mxu0
      %v594 = vpop.f32.mrb[0].mxu0
      %v595 = vadd.f32 0.0, %v594
      %v596 = vpop.f32.mrb[0].mxu0
      %597 = vmatprep.mubr.bf16.mxu0 0
      %598 = vmatmul.mubr.bf16.gmra.mrb[0].mxu0 %v546
      %v599 = vpop.f32.mrb[0].mxu0
      %v600 = vadd.f32 0.0, %v599
      %v601 = vpop.f32.mrb[0].mxu0
      %v602 = vpop.f32.mrb[0].mxu0
      %v603 = vadd.f32 0.0, %v602
      %v604 = vpop.f32.mrb[0].mxu0
      %605 = vmatprep.mubr.bf16.mxu0 0
      %606 = vmatmul.mubr.bf16.gmra.mrb[0].mxu0 %v549
      %v607 = vpop.f32.mrb[0].mxu0
      %v608 = vadd.f32 0.0, %v607
      %v609 = vpop.f32.mrb[0].mxu0
      %v610 = vpop.f32.mrb[0].mxu0
      %v611 = vadd.f32 0.0, %v610
      %v612 = vpop.f32.mrb[0].mxu0
      %613 = vmatprep.mubr.bf16.mxu0 0
      %614 = vmatmul.mubr.bf16.gmra.mrb[0].mxu0 %v552
      %v615 = vpop.f32.mrb[0].mxu0
      %v616 = vadd.f32 0.0, %v615
      %v617 = vpop.f32.mrb[0].mxu0
      %v618 = vpop.f32.mrb[0].mxu0
      %v619 = vadd.f32 0.0, %v618
      %v620 = vpop.f32.mrb[0].mxu0
      %621 = vdwg.mxu0
      %v622 = vadd.f32 %v367, %v592
      %v623 = vadd.f32 %v370, %v595
      %v624 = vadd.f32 %v375, %v600
      %v625 = vadd.f32 %v378, %v603
      %v626 = vadd.f32 %v383, %v608
      %v627 = vadd.f32 %v386, %v611
      %v628 = vadd.f32 %v391, %v616
      %v629 = vadd.f32 %v394, %v619
      %s630 = scalar_lea.vmem %s165, 144
      %v631 = vld [vmem:[%s630] sm:$0xf]
      %v632 = vld [vmem:[%s630 + $0x8] sm:$0xf]
      %v633 = vld [vmem:[%s630 + $0x10] sm:$0xf]
      %v634 = vld [vmem:[%s630 + $0x18] sm:$0xf]
      %v635 = vld [vmem:[%s630 + $0x20] sm:$0xf]
      %v636 = vld [vmem:[%s630 + $0x28] sm:$0xf]
      %v637 = vld [vmem:[%s630 + $0x30] sm:$0xf]
      %v638 = vld [vmem:[%s630 + $0x38] sm:$0xf]
      %s639 = scalar_lea.vmem %s1, 6
      %v640 = vld [vmem:[%s639] sm:$0x3]
      %v649 = vunpack.c.l.b16 %v631
      %v650 = vunpack.c.l.b16 %v632
      %v651 = vunpack.c.l.b16 %v633
      %v652 = vunpack.c.l.b16 %v634
      %v653 = vunpack.c.l.b16 %v635
      %v654 = vunpack.c.l.b16 %v636
      %v655 = vunpack.c.l.b16 %v637
      %v656 = vunpack.c.l.b16 %v638
      %v657 = vpack.c.b16 %v650, %v649
      %v658 = vpack.c.b16 %v652, %v651
      %v659 = vpack.c.b16 %v654, %v653
      %v660 = vpack.c.b16 %v656, %v655
      %v662 = vsel %vm212, %v657, 0
      %v665 = vsel %vm212, %v658, 0
      %v668 = vsel %vm212, %v659, 0
      %v671 = vsel %vm212, %v660, 0
      %v674 = vand.u32 %v640, %v228
      %676 = vmatprep.subr.bf16.mxu0 0
      %677 = vmatpush1.bf16.msra.mxu0 %v674
      %678 = vmatprep.subr.bf16.mxu0 0
      %679 = vmatpush1.bf16.msra.mxu0 0
      %680 = vmatprep.subr.bf16.mxu0 0
      %681 = vmatpush1.bf16.msra.mxu0 0
      %682 = vmatprep.subr.bf16.mxu0 0
      %683 = vmatpush1.bf16.msra.mxu0 0
      %684 = vmatprep.subr.bf16.mxu0 0
      %685 = vmatpush1.bf16.msra.mxu0 0
      %686 = vmatprep.subr.bf16.mxu0 0
      %687 = vmatpush1.bf16.msra.mxu0 0
      %688 = vmatprep.subr.bf16.mxu0 0
      %689 = vmatpush1.bf16.msra.mxu0 0
      %690 = vmatprep.subr.bf16.mxu0 0
      %691 = vmatpush1.bf16.msra.mxu0 0
      %692 = vmatprep.subr.bf16.mxu0 0
      %693 = vmatpush1.bf16.msra.mxu0 0
      %694 = vmatprep.subr.bf16.mxu0 0
      %695 = vmatpush1.bf16.msra.mxu0 0
      %696 = vmatprep.subr.bf16.mxu0 0
      %697 = vmatpush1.bf16.msra.mxu0 0
      %698 = vmatprep.subr.bf16.mxu0 0
      %699 = vmatpush1.bf16.msra.mxu0 0
      %700 = vmatprep.subr.bf16.mxu0 0
      %701 = vmatpush1.bf16.msra.mxu0 0
      %702 = vmatprep.subr.bf16.mxu0 0
      %703 = vmatpush1.bf16.msra.mxu0 0
      %704 = vmatprep.subr.bf16.mxu0 0
      %705 = vmatpush1.bf16.msra.mxu0 0
      %706 = vmatprep.subr.bf16.mxu0 0
      %707 = vmatpush1.bf16.msra.mxu0 0
      %708 = vmatprep.mubr.bf16.mxu0 0
      %709 = vmatmul.mubr.bf16.gmra.mrb[0].mxu0 %v662
      %v710 = vpop.f32.mrb[0].mxu0
      %v711 = vadd.f32 0.0, %v710
      %v712 = vpop.f32.mrb[0].mxu0
      %v713 = vpop.f32.mrb[0].mxu0
      %v714 = vadd.f32 0.0, %v713
      %v715 = vpop.f32.mrb[0].mxu0
      %716 = vmatprep.mubr.bf16.mxu0 0
      %717 = vmatmul.mubr.bf16.gmra.mrb[0].mxu0 %v665
      %v718 = vpop.f32.mrb[0].mxu0
      %v719 = vadd.f32 0.0, %v718
      %v720 = vpop.f32.mrb[0].mxu0
      %v721 = vpop.f32.mrb[0].mxu0
      %v722 = vadd.f32 0.0, %v721
      %v723 = vpop.f32.mrb[0].mxu0
      %724 = vmatprep.mubr.bf16.mxu0 0
      %725 = vmatmul.mubr.bf16.gmra.mrb[0].mxu0 %v668
      %v726 = vpop.f32.mrb[0].mxu0
      %v727 = vadd.f32 0.0, %v726
      %v728 = vpop.f32.mrb[0].mxu0
      %v729 = vpop.f32.mrb[0].mxu0
      %v730 = vadd.f32 0.0, %v729
      %v731 = vpop.f32.mrb[0].mxu0
      %732 = vmatprep.mubr.bf16.mxu0 0
      %733 = vmatmul.mubr.bf16.gmra.mrb[0].mxu0 %v671
      %v734 = vpop.f32.mrb[0].mxu0
      %v735 = vadd.f32 0.0, %v734
      %v736 = vpop.f32.mrb[0].mxu0
      %v737 = vpop.f32.mrb[0].mxu0
      %v738 = vadd.f32 0.0, %v737
      %v739 = vpop.f32.mrb[0].mxu0
      %740 = vdwg.mxu0
      %v741 = vadd.f32 %v622, %v711
      %v742 = vadd.f32 %v623, %v714
      %v743 = vadd.f32 %v624, %v719
      %v744 = vadd.f32 %v625, %v722
      %v745 = vadd.f32 %v626, %v727
      %v746 = vadd.f32 %v627, %v730
      %v747 = vadd.f32 %v628, %v735
      %v748 = vadd.f32 %v629, %v738
      %s749 = scalar_lea.vmem %s165, 216
      %v750 = vld [vmem:[%s749] sm:$0xf]
      %v751 = vld [vmem:[%s749 + $0x8] sm:$0xf]
      %v752 = vld [vmem:[%s749 + $0x10] sm:$0xf]
      %v753 = vld [vmem:[%s749 + $0x18] sm:$0xf]
      %v754 = vld [vmem:[%s749 + $0x20] sm:$0xf]
      %v755 = vld [vmem:[%s749 + $0x28] sm:$0xf]
      %v756 = vld [vmem:[%s749 + $0x30] sm:$0xf]
      %v757 = vld [vmem:[%s749 + $0x38] sm:$0xf]
      %s758 = scalar_lea.vmem %s1, 8
      %v759 = vld [vmem:[%s758] sm:$0x3]
      %v768 = vunpack.c.l.b16 %v750
      %v769 = vunpack.c.l.b16 %v751
      %v770 = vunpack.c.l.b16 %v752
      %v771 = vunpack.c.l.b16 %v753
      %v772 = vunpack.c.l.b16 %v754
      %v773 = vunpack.c.l.b16 %v755
      %v774 = vunpack.c.l.b16 %v756
      %v775 = vunpack.c.l.b16 %v757
      %v776 = vpack.c.b16 %v769, %v768
      %v777 = vpack.c.b16 %v771, %v770
      %v778 = vpack.c.b16 %v773, %v772
      %v779 = vpack.c.b16 %v775, %v774
      %v781 = vsel %vm212, %v776, 0
      %v784 = vsel %vm212, %v777, 0
      %v787 = vsel %vm212, %v778, 0
      %v790 = vsel %vm212, %v779, 0
      %v793 = vand.u32 %v759, %v228
      %795 = vmatprep.subr.bf16.mxu0 0
      %796 = vmatpush1.bf16.msra.mxu0 %v793
      %797 = vmatprep.subr.bf16.mxu0 0
      %798 = vmatpush1.bf16.msra.mxu0 0
      %799 = vmatprep.subr.bf16.mxu0 0
      %800 = vmatpush1.bf16.msra.mxu0 0
      %801 = vmatprep.subr.bf16.mxu0 0
      %802 = vmatpush1.bf16.msra.mxu0 0
      %803 = vmatprep.subr.bf16.mxu0 0
      %804 = vmatpush1.bf16.msra.mxu0 0
      %805 = vmatprep.subr.bf16.mxu0 0
      %806 = vmatpush1.bf16.msra.mxu0 0
      %807 = vmatprep.subr.bf16.mxu0 0
      %808 = vmatpush1.bf16.msra.mxu0 0
      %809 = vmatprep.subr.bf16.mxu0 0
      %810 = vmatpush1.bf16.msra.mxu0 0
      %811 = vmatprep.subr.bf16.mxu0 0
      %812 = vmatpush1.bf16.msra.mxu0 0
      %813 = vmatprep.subr.bf16.mxu0 0
      %814 = vmatpush1.bf16.msra.mxu0 0
      %815 = vmatprep.subr.bf16.mxu0 0
      %816 = vmatpush1.bf16.msra.mxu0 0
      %817 = vmatprep.subr.bf16.mxu0 0
      %818 = vmatpush1.bf16.msra.mxu0 0
      %819 = vmatprep.subr.bf16.mxu0 0
      %820 = vmatpush1.bf16.msra.mxu0 0
      %821 = vmatprep.subr.bf16.mxu0 0
      %822 = vmatpush1.bf16.msra.mxu0 0
      %823 = vmatprep.subr.bf16.mxu0 0
      %824 = vmatpush1.bf16.msra.mxu0 0
      %825 = vmatprep.subr.bf16.mxu0 0
      %826 = vmatpush1.bf16.msra.mxu0 0
      %827 = vmatprep.mubr.bf16.mxu0 0
      %828 = vmatmul.mubr.bf16.gmra.mrb[0].mxu0 %v781
      %v829 = vpop.f32.mrb[0].mxu0
      %v830 = vadd.f32 0.0, %v829
      %v831 = vpop.f32.mrb[0].mxu0
      %v832 = vpop.f32.mrb[0].mxu0
      %v833 = vadd.f32 0.0, %v832
      %v834 = vpop.f32.mrb[0].mxu0
      %835 = vmatprep.mubr.bf16.mxu0 0
      %836 = vmatmul.mubr.bf16.gmra.mrb[0].mxu0 %v784
      %v837 = vpop.f32.mrb[0].mxu0
      %v838 = vadd.f32 0.0, %v837
      %v839 = vpop.f32.mrb[0].mxu0
      %v840 = vpop.f32.mrb[0].mxu0
      %v841 = vadd.f32 0.0, %v840
      %v842 = vpop.f32.mrb[0].mxu0
      %843 = vmatprep.mubr.bf16.mxu0 0
      %844 = vmatmul.mubr.bf16.gmra.mrb[0].mxu0 %v787
      %v845 = vpop.f32.mrb[0].mxu0
      %v846 = vadd.f32 0.0, %v845
      %v847 = vpop.f32.mrb[0].mxu0
      %v848 = vpop.f32.mrb[0].mxu0
      %v849 = vadd.f32 0.0, %v848
      %v850 = vpop.f32.mrb[0].mxu0
      %851 = vmatprep.mubr.bf16.mxu0 0
      %852 = vmatmul.mubr.bf16.gmra.mrb[0].mxu0 %v790
      %v853 = vpop.f32.mrb[0].mxu0
      %v854 = vadd.f32 0.0, %v853
      %v855 = vpop.f32.mrb[0].mxu0
      %v856 = vpop.f32.mrb[0].mxu0
      %v857 = vadd.f32 0.0, %v856
      %v858 = vpop.f32.mrb[0].mxu0
      %859 = vdwg.mxu0
      %v860 = vadd.f32 %v741, %v830
      %v861 = vadd.f32 %v742, %v833
      %v862 = vadd.f32 %v743, %v838
      %v863 = vadd.f32 %v744, %v841
      %v864 = vadd.f32 %v745, %v846
      %v865 = vadd.f32 %v746, %v849
      %v866 = vadd.f32 %v747, %v854
      %v867 = vadd.f32 %v748, %v857
      %v868 = vld [vmem:[%s630] sm:$0xf]
      %v869 = vld [vmem:[%s630 + $0x4] sm:$0x1]
      %v870 = vld [vmem:[%s630 + $0x8] sm:$0xf]
      %v871 = vld [vmem:[%s630 + $0xc] sm:$0x1]
      %v872 = vld [vmem:[%s630 + $0x10] sm:$0xf]
      %v873 = vld [vmem:[%s630 + $0x14] sm:$0x1]
      %v874 = vld [vmem:[%s630 + $0x18] sm:$0xf]
      %v875 = vld [vmem:[%s630 + $0x1c] sm:$0x1]
      %v876 = vld [vmem:[%s630 + $0x20] sm:$0xf]
      %v877 = vld [vmem:[%s630 + $0x24] sm:$0x1]
      %v878 = vld [vmem:[%s630 + $0x28] sm:$0xf]
      %v879 = vld [vmem:[%s630 + $0x2c] sm:$0x1]
      %v880 = vld [vmem:[%s630 + $0x30] sm:$0xf]
      %v881 = vld [vmem:[%s630 + $0x34] sm:$0x1]
      %v882 = vld [vmem:[%s630 + $0x38] sm:$0xf]
      %v883 = vld [vmem:[%s630 + $0x3c] sm:$0x1]
      %v885 = vshrl.u32 %v868, 16
      %v887 = vrot.slane %v885, 4
      %v888 = vshll.u32 %v868, 16
      %v890 = vrot.slane %v888, 5
      %v891 = vor.u32 %v887, %v890
      %v892 = vrot.slane %v891, 4
      %v894 = vshll.u32 %v869, 16
      %v896 = vrot.slane %v894, 5
      %v897 = vsel %vm415, %v892, %v896
      %v899 = vshrl.u32 %v870, 16
      %v901 = vrot.slane %v899, 4
      %v902 = vshll.u32 %v870, 16
      %v904 = vrot.slane %v902, 5
      %v905 = vor.u32 %v901, %v904
      %v906 = vrot.slane %v905, 4
      %v908 = vshll.u32 %v871, 16
      %v910 = vrot.slane %v908, 5
      %v911 = vsel %vm415, %v906, %v910
      %v913 = vshrl.u32 %v872, 16
      %v915 = vrot.slane %v913, 4
      %v916 = vshll.u32 %v872, 16
      %v918 = vrot.slane %v916, 5
      %v919 = vor.u32 %v915, %v918
      %v920 = vrot.slane %v919, 4
      %v922 = vshll.u32 %v873, 16
      %v924 = vrot.slane %v922, 5
      %v925 = vsel %vm415, %v920, %v924
      %v927 = vshrl.u32 %v874, 16
      %v929 = vrot.slane %v927, 4
      %v930 = vshll.u32 %v874, 16
      %v932 = vrot.slane %v930, 5
      %v933 = vor.u32 %v929, %v932
      %v934 = vrot.slane %v933, 4
      %v936 = vshll.u32 %v875, 16
      %v938 = vrot.slane %v936, 5
      %v939 = vsel %vm415, %v934, %v938
      %v941 = vshrl.u32 %v876, 16
      %v943 = vrot.slane %v941, 4
      %v944 = vshll.u32 %v876, 16
      %v946 = vrot.slane %v944, 5
      %v947 = vor.u32 %v943, %v946
      %v948 = vrot.slane %v947, 4
      %v950 = vshll.u32 %v877, 16
      %v952 = vrot.slane %v950, 5
      %v953 = vsel %vm415, %v948, %v952
      %v955 = vshrl.u32 %v878, 16
      %v957 = vrot.slane %v955, 4
      %v958 = vshll.u32 %v878, 16
      %v960 = vrot.slane %v958, 5
      %v961 = vor.u32 %v957, %v960
      %v962 = vrot.slane %v961, 4
      %v964 = vshll.u32 %v879, 16
      %v966 = vrot.slane %v964, 5
      %v967 = vsel %vm415, %v962, %v966
      %v969 = vshrl.u32 %v880, 16
      %v971 = vrot.slane %v969, 4
      %v972 = vshll.u32 %v880, 16
      %v974 = vrot.slane %v972, 5
      %v975 = vor.u32 %v971, %v974
      %v976 = vrot.slane %v975, 4
      %v978 = vshll.u32 %v881, 16
      %v980 = vrot.slane %v978, 5
      %v981 = vsel %vm415, %v976, %v980
      %v983 = vshrl.u32 %v882, 16
      %v985 = vrot.slane %v983, 4
      %v986 = vshll.u32 %v882, 16
      %v988 = vrot.slane %v986, 5
      %v989 = vor.u32 %v985, %v988
      %v990 = vrot.slane %v989, 4
      %v992 = vshll.u32 %v883, 16
      %v994 = vrot.slane %v992, 5
      %v995 = vsel %vm415, %v990, %v994
      %s996 = scalar_lea.vmem %s1, 10
      %v997 = vld [vmem:[%s996] sm:$0x3]
      %v998 = vunpack.c.l.b16 %v897
      %v999 = vunpack.c.l.b16 %v911
      %v1000 = vunpack.c.l.b16 %v925
      %v1001 = vunpack.c.l.b16 %v939
      %v1002 = vunpack.c.l.b16 %v953
      %v1003 = vunpack.c.l.b16 %v967
      %v1004 = vunpack.c.l.b16 %v981
      %v1005 = vunpack.c.l.b16 %v995
      %v1006 = vpack.c.b16 %v999, %v998
      %v1007 = vpack.c.b16 %v1001, %v1000
      %v1008 = vpack.c.b16 %v1003, %v1002
      %v1009 = vpack.c.b16 %v1005, %v1004
      %v1011 = vsel %vm212, %v1006, 0
      %v1014 = vsel %vm212, %v1007, 0
      %v1017 = vsel %vm212, %v1008, 0
      %v1020 = vsel %vm212, %v1009, 0
      %v1023 = vand.u32 %v997, %v228
      %1025 = vmatprep.subr.bf16.mxu0 0
      %1026 = vmatpush1.bf16.msra.mxu0 %v1023
      %1027 = vmatprep.subr.bf16.mxu0 0
      %1028 = vmatpush1.bf16.msra.mxu0 0
      %1029 = vmatprep.subr.bf16.mxu0 0
      %1030 = vmatpush1.bf16.msra.mxu0 0
      %1031 = vmatprep.subr.bf16.mxu0 0
      %1032 = vmatpush1.bf16.msra.mxu0 0
      %1033 = vmatprep.subr.bf16.mxu0 0
      %1034 = vmatpush1.bf16.msra.mxu0 0
      %1035 = vmatprep.subr.bf16.mxu0 0
      %1036 = vmatpush1.bf16.msra.mxu0 0
      %1037 = vmatprep.subr.bf16.mxu0 0
      %1038 = vmatpush1.bf16.msra.mxu0 0
      %1039 = vmatprep.subr.bf16.mxu0 0
      %1040 = vmatpush1.bf16.msra.mxu0 0
      %1041 = vmatprep.subr.bf16.mxu0 0
      %1042 = vmatpush1.bf16.msra.mxu0 0
      %1043 = vmatprep.subr.bf16.mxu0 0
      %1044 = vmatpush1.bf16.msra.mxu0 0
      %1045 = vmatprep.subr.bf16.mxu0 0
      %1046 = vmatpush1.bf16.msra.mxu0 0
      %1047 = vmatprep.subr.bf16.mxu0 0
      %1048 = vmatpush1.bf16.msra.mxu0 0
      %1049 = vmatprep.subr.bf16.mxu0 0
      %1050 = vmatpush1.bf16.msra.mxu0 0
      %1051 = vmatprep.subr.bf16.mxu0 0
      %1052 = vmatpush1.bf16.msra.mxu0 0
      %1053 = vmatprep.subr.bf16.mxu0 0
      %1054 = vmatpush1.bf16.msra.mxu0 0
      %1055 = vmatprep.subr.bf16.mxu0 0
      %1056 = vmatpush1.bf16.msra.mxu0 0
      %1057 = vmatprep.mubr.bf16.mxu0 0
      %1058 = vmatmul.mubr.bf16.gmra.mrb[0].mxu0 %v1011
      %v1059 = vpop.f32.mrb[0].mxu0
      %v1060 = vadd.f32 0.0, %v1059
      %v1061 = vpop.f32.mrb[0].mxu0
      %v1062 = vpop.f32.mrb[0].mxu0
      %v1063 = vadd.f32 0.0, %v1062
      %v1064 = vpop.f32.mrb[0].mxu0
      %1065 = vmatprep.mubr.bf16.mxu0 0
      %1066 = vmatmul.mubr.bf16.gmra.mrb[0].mxu0 %v1014
      %v1067 = vpop.f32.mrb[0].mxu0
      %v1068 = vadd.f32 0.0, %v1067
      %v1069 = vpop.f32.mrb[0].mxu0
      %v1070 = vpop.f32.mrb[0].mxu0
      %v1071 = vadd.f32 0.0, %v1070
      %v1072 = vpop.f32.mrb[0].mxu0
      %1073 = vmatprep.mubr.bf16.mxu0 0
      %1074 = vmatmul.mubr.bf16.gmra.mrb[0].mxu0 %v1017
      %v1075 = vpop.f32.mrb[0].mxu0
      %v1076 = vadd.f32 0.0, %v1075
      %v1077 = vpop.f32.mrb[0].mxu0
      %v1078 = vpop.f32.mrb[0].mxu0
      %v1079 = vadd.f32 0.0, %v1078
      %v1080 = vpop.f32.mrb[0].mxu0
      %1081 = vmatprep.mubr.bf16.mxu0 0
      %1082 = vmatmul.mubr.bf16.gmra.mrb[0].mxu0 %v1020
      %v1083 = vpop.f32.mrb[0].mxu0
      %v1084 = vadd.f32 0.0, %v1083
      %v1085 = vpop.f32.mrb[0].mxu0
      %v1086 = vpop.f32.mrb[0].mxu0
      %v1087 = vadd.f32 0.0, %v1086
      %v1088 = vpop.f32.mrb[0].mxu0
      %1089 = vdwg.mxu0
      %v1090 = vadd.f32 %v860, %v1060
      %v1091 = vadd.f32 %v861, %v1063
      %v1092 = vadd.f32 %v862, %v1068
      %v1093 = vadd.f32 %v863, %v1071
      %v1094 = vadd.f32 %v864, %v1076
      %v1095 = vadd.f32 %v865, %v1079
      %v1096 = vadd.f32 %v866, %v1084
      %v1097 = vadd.f32 %v867, %v1087
      %s1098 = scalar_lea.vmem %s165, 8
      %v1099 = vld [vmem:[%s1098] sm:$0xf]
      %v1100 = vld [vmem:[%s1098 + $0x8] sm:$0xf]
      %v1101 = vld [vmem:[%s1098 + $0x10] sm:$0xf]
      %v1102 = vld [vmem:[%s1098 + $0x18] sm:$0xf]
      %v1103 = vld [vmem:[%s1098 + $0x20] sm:$0xf]
      %v1104 = vld [vmem:[%s1098 + $0x28] sm:$0xf]
      %v1105 = vld [vmem:[%s1098 + $0x30] sm:$0xf]
      %v1106 = vld [vmem:[%s1098 + $0x38] sm:$0xf]
      %s1107 = scalar_lea.vmem %s1, 12
      %v1108 = vld [vmem:[%s1107] sm:$0x3]
      %v1117 = vunpack.c.l.b16 %v1099
      %v1118 = vunpack.c.l.b16 %v1100
      %v1119 = vunpack.c.l.b16 %v1101
      %v1120 = vunpack.c.l.b16 %v1102
      %v1121 = vunpack.c.l.b16 %v1103
      %v1122 = vunpack.c.l.b16 %v1104
      %v1123 = vunpack.c.l.b16 %v1105
      %v1124 = vunpack.c.l.b16 %v1106
      %v1125 = vpack.c.b16 %v1118, %v1117
      %v1126 = vpack.c.b16 %v1120, %v1119
      %v1127 = vpack.c.b16 %v1122, %v1121
      %v1128 = vpack.c.b16 %v1124, %v1123
      %v1130 = vsel %vm212, %v1125, 0
      %v1133 = vsel %vm212, %v1126, 0
      %v1136 = vsel %vm212, %v1127, 0
      %v1139 = vsel %vm212, %v1128, 0
      %v1142 = vand.u32 %v1108, %v228
      %1144 = vmatprep.subr.bf16.mxu0 0
      %1145 = vmatpush1.bf16.msra.mxu0 %v1142
      %1146 = vmatprep.subr.bf16.mxu0 0
      %1147 = vmatpush1.bf16.msra.mxu0 0
      %1148 = vmatprep.subr.bf16.mxu0 0
      %1149 = vmatpush1.bf16.msra.mxu0 0
      %1150 = vmatprep.subr.bf16.mxu0 0
      %1151 = vmatpush1.bf16.msra.mxu0 0
      %1152 = vmatprep.subr.bf16.mxu0 0
      %1153 = vmatpush1.bf16.msra.mxu0 0
      %1154 = vmatprep.subr.bf16.mxu0 0
      %1155 = vmatpush1.bf16.msra.mxu0 0
      %1156 = vmatprep.subr.bf16.mxu0 0
      %1157 = vmatpush1.bf16.msra.mxu0 0
      %1158 = vmatprep.subr.bf16.mxu0 0
      %1159 = vmatpush1.bf16.msra.mxu0 0
      %1160 = vmatprep.subr.bf16.mxu0 0
      %1161 = vmatpush1.bf16.msra.mxu0 0
      %1162 = vmatprep.subr.bf16.mxu0 0
      %1163 = vmatpush1.bf16.msra.mxu0 0
      %1164 = vmatprep.subr.bf16.mxu0 0
      %1165 = vmatpush1.bf16.msra.mxu0 0
      %1166 = vmatprep.subr.bf16.mxu0 0
      %1167 = vmatpush1.bf16.msra.mxu0 0
      %1168 = vmatprep.subr.bf16.mxu0 0
      %1169 = vmatpush1.bf16.msra.mxu0 0
      %1170 = vmatprep.subr.bf16.mxu0 0
      %1171 = vmatpush1.bf16.msra.mxu0 0
      %1172 = vmatprep.subr.bf16.mxu0 0
      %1173 = vmatpush1.bf16.msra.mxu0 0
      %1174 = vmatprep.subr.bf16.mxu0 0
      %1175 = vmatpush1.bf16.msra.mxu0 0
      %1176 = vmatprep.mubr.bf16.mxu0 0
      %1177 = vmatmul.mubr.bf16.gmra.mrb[0].mxu0 %v1130
      %v1178 = vpop.f32.mrb[0].mxu0
      %v1179 = vadd.f32 0.0, %v1178
      %v1180 = vpop.f32.mrb[0].mxu0
      %v1181 = vpop.f32.mrb[0].mxu0
      %v1182 = vadd.f32 0.0, %v1181
      %v1183 = vpop.f32.mrb[0].mxu0
      %1184 = vmatprep.mubr.bf16.mxu0 0
      %1185 = vmatmul.mubr.bf16.gmra.mrb[0].mxu0 %v1133
      %v1186 = vpop.f32.mrb[0].mxu0
      %v1187 = vadd.f32 0.0, %v1186
      %v1188 = vpop.f32.mrb[0].mxu0
      %v1189 = vpop.f32.mrb[0].mxu0
      %v1190 = vadd.f32 0.0, %v1189
      %v1191 = vpop.f32.mrb[0].mxu0
      %1192 = vmatprep.mubr.bf16.mxu0 0
      %1193 = vmatmul.mubr.bf16.gmra.mrb[0].mxu0 %v1136
      %v1194 = vpop.f32.mrb[0].mxu0
      %v1195 = vadd.f32 0.0, %v1194
      %v1196 = vpop.f32.mrb[0].mxu0
      %v1197 = vpop.f32.mrb[0].mxu0
      %v1198 = vadd.f32 0.0, %v1197
      %v1199 = vpop.f32.mrb[0].mxu0
      %1200 = vmatprep.mubr.bf16.mxu0 0
      %1201 = vmatmul.mubr.bf16.gmra.mrb[0].mxu0 %v1139
      %v1202 = vpop.f32.mrb[0].mxu0
      %v1203 = vadd.f32 0.0, %v1202
      %v1204 = vpop.f32.mrb[0].mxu0
      %v1205 = vpop.f32.mrb[0].mxu0
      %v1206 = vadd.f32 0.0, %v1205
      %v1207 = vpop.f32.mrb[0].mxu0
      %1208 = vdwg.mxu0
      %v1209 = vadd.f32 %v1090, %v1179
      %v1210 = vadd.f32 %v1091, %v1182
      %v1211 = vadd.f32 %v1092, %v1187
      %v1212 = vadd.f32 %v1093, %v1190
      %v1213 = vadd.f32 %v1094, %v1195
      %v1214 = vadd.f32 %v1095, %v1198
      %v1215 = vadd.f32 %v1096, %v1203
      %v1216 = vadd.f32 %v1097, %v1206
      %s1217 = scalar_lea.vmem %s165, 80
      %v1218 = vld [vmem:[%s1217] sm:$0xf]
      %v1219 = vld [vmem:[%s1217 + $0x8] sm:$0xf]
      %v1220 = vld [vmem:[%s1217 + $0x10] sm:$0xf]
      %v1221 = vld [vmem:[%s1217 + $0x18] sm:$0xf]
      %v1222 = vld [vmem:[%s1217 + $0x20] sm:$0xf]
      %v1223 = vld [vmem:[%s1217 + $0x28] sm:$0xf]
      %v1224 = vld [vmem:[%s1217 + $0x30] sm:$0xf]
      %v1225 = vld [vmem:[%s1217 + $0x38] sm:$0xf]
      %s1226 = scalar_lea.vmem %s1, 14
      %v1227 = vld [vmem:[%s1226] sm:$0x3]
      %v1236 = vunpack.c.l.b16 %v1218
      %v1237 = vunpack.c.l.b16 %v1219
      %v1238 = vunpack.c.l.b16 %v1220
      %v1239 = vunpack.c.l.b16 %v1221
      %v1240 = vunpack.c.l.b16 %v1222
      %v1241 = vunpack.c.l.b16 %v1223
      %v1242 = vunpack.c.l.b16 %v1224
      %v1243 = vunpack.c.l.b16 %v1225
      %v1244 = vpack.c.b16 %v1237, %v1236
      %v1245 = vpack.c.b16 %v1239, %v1238
      %v1246 = vpack.c.b16 %v1241, %v1240
      %v1247 = vpack.c.b16 %v1243, %v1242
      %v1249 = vsel %vm212, %v1244, 0
      %v1252 = vsel %vm212, %v1245, 0
      %v1255 = vsel %vm212, %v1246, 0
      %v1258 = vsel %vm212, %v1247, 0
      %v1261 = vand.u32 %v1227, %v228
      %1263 = vmatprep.subr.bf16.mxu0 0
      %1264 = vmatpush1.bf16.msra.mxu0 %v1261
      %1265 = vmatprep.subr.bf16.mxu0 0
      %1266 = vmatpush1.bf16.msra.mxu0 0
      %1267 = vmatprep.subr.bf16.mxu0 0
      %1268 = vmatpush1.bf16.msra.mxu0 0
      %1269 = vmatprep.subr.bf16.mxu0 0
      %1270 = vmatpush1.bf16.msra.mxu0 0
      %1271 = vmatprep.subr.bf16.mxu0 0
      %1272 = vmatpush1.bf16.msra.mxu0 0
      %1273 = vmatprep.subr.bf16.mxu0 0
      %1274 = vmatpush1.bf16.msra.mxu0 0
      %1275 = vmatprep.subr.bf16.mxu0 0
      %1276 = vmatpush1.bf16.msra.mxu0 0
      %1277 = vmatprep.subr.bf16.mxu0 0
      %1278 = vmatpush1.bf16.msra.mxu0 0
      %1279 = vmatprep.subr.bf16.mxu0 0
      %1280 = vmatpush1.bf16.msra.mxu0 0
      %1281 = vmatprep.subr.bf16.mxu0 0
      %1282 = vmatpush1.bf16.msra.mxu0 0
      %1283 = vmatprep.subr.bf16.mxu0 0
      %1284 = vmatpush1.bf16.msra.mxu0 0
      %1285 = vmatprep.subr.bf16.mxu0 0
      %1286 = vmatpush1.bf16.msra.mxu0 0
      %1287 = vmatprep.subr.bf16.mxu0 0
      %1288 = vmatpush1.bf16.msra.mxu0 0
      %1289 = vmatprep.subr.bf16.mxu0 0
      %1290 = vmatpush1.bf16.msra.mxu0 0
      %1291 = vmatprep.subr.bf16.mxu0 0
      %1292 = vmatpush1.bf16.msra.mxu0 0
      %1293 = vmatprep.subr.bf16.mxu0 0
      %1294 = vmatpush1.bf16.msra.mxu0 0
      %1295 = vmatprep.mubr.bf16.mxu0 0
      %1296 = vmatmul.mubr.bf16.gmra.mrb[0].mxu0 %v1249
      %v1297 = vpop.f32.mrb[0].mxu0
      %v1298 = vadd.f32 0.0, %v1297
      %v1299 = vpop.f32.mrb[0].mxu0
      %v1300 = vpop.f32.mrb[0].mxu0
      %v1301 = vadd.f32 0.0, %v1300
      %v1302 = vpop.f32.mrb[0].mxu0
      %1303 = vmatprep.mubr.bf16.mxu0 0
      %1304 = vmatmul.mubr.bf16.gmra.mrb[0].mxu0 %v1252
      %v1305 = vpop.f32.mrb[0].mxu0
      %v1306 = vadd.f32 0.0, %v1305
      %v1307 = vpop.f32.mrb[0].mxu0
      %v1308 = vpop.f32.mrb[0].mxu0
      %v1309 = vadd.f32 0.0, %v1308
      %v1310 = vpop.f32.mrb[0].mxu0
      %1311 = vmatprep.mubr.bf16.mxu0 0
      %1312 = vmatmul.mubr.bf16.gmra.mrb[0].mxu0 %v1255
      %v1313 = vpop.f32.mrb[0].mxu0
      %v1314 = vadd.f32 0.0, %v1313
      %v1315 = vpop.f32.mrb[0].mxu0
      %v1316 = vpop.f32.mrb[0].mxu0
      %v1317 = vadd.f32 0.0, %v1316
      %v1318 = vpop.f32.mrb[0].mxu0
      %1319 = vmatprep.mubr.bf16.mxu0 0
      %1320 = vmatmul.mubr.bf16.gmra.mrb[0].mxu0 %v1258
      %v1321 = vpop.f32.mrb[0].mxu0
      %v1322 = vadd.f32 0.0, %v1321
      %v1323 = vpop.f32.mrb[0].mxu0
      %v1324 = vpop.f32.mrb[0].mxu0
      %v1325 = vadd.f32 0.0, %v1324
      %v1326 = vpop.f32.mrb[0].mxu0
      %1327 = vdwg.mxu0
      %v1328 = vadd.f32 %v1209, %v1298
      %v1329 = vadd.f32 %v1210, %v1301
      %v1330 = vadd.f32 %v1211, %v1306
      %v1331 = vadd.f32 %v1212, %v1309
      %v1332 = vadd.f32 %v1213, %v1314
      %v1333 = vadd.f32 %v1214, %v1317
      %v1334 = vadd.f32 %v1215, %v1322
      %v1335 = vadd.f32 %v1216, %v1325
      %v1336 = vld [vmem:[%s1098] sm:$0xf]
      %v1337 = vld [vmem:[%s1098 + $0x4] sm:$0x1]
      %v1338 = vld [vmem:[%s1098 + $0x8] sm:$0xf]
      %v1339 = vld [vmem:[%s1098 + $0xc] sm:$0x1]
      %v1340 = vld [vmem:[%s1098 + $0x10] sm:$0xf]
      %v1341 = vld [vmem:[%s1098 + $0x14] sm:$0x1]
      %v1342 = vld [vmem:[%s1098 + $0x18] sm:$0xf]
      %v1343 = vld [vmem:[%s1098 + $0x1c] sm:$0x1]
      %v1344 = vld [vmem:[%s1098 + $0x20] sm:$0xf]
      %v1345 = vld [vmem:[%s1098 + $0x24] sm:$0x1]
      %v1346 = vld [vmem:[%s1098 + $0x28] sm:$0xf]
      %v1347 = vld [vmem:[%s1098 + $0x2c] sm:$0x1]
      %v1348 = vld [vmem:[%s1098 + $0x30] sm:$0xf]
      %v1349 = vld [vmem:[%s1098 + $0x34] sm:$0x1]
      %v1350 = vld [vmem:[%s1098 + $0x38] sm:$0xf]
      %v1351 = vld [vmem:[%s1098 + $0x3c] sm:$0x1]
      %v1353 = vshrl.u32 %v1336, 16
      %v1355 = vrot.slane %v1353, 4
      %v1356 = vshll.u32 %v1336, 16
      %v1358 = vrot.slane %v1356, 5
      %v1359 = vor.u32 %v1355, %v1358
      %v1360 = vrot.slane %v1359, 4
      %v1362 = vshll.u32 %v1337, 16
      %v1364 = vrot.slane %v1362, 5
      %v1365 = vsel %vm415, %v1360, %v1364
      %v1367 = vshrl.u32 %v1338, 16
      %v1369 = vrot.slane %v1367, 4
      %v1370 = vshll.u32 %v1338, 16
      %v1372 = vrot.slane %v1370, 5
      %v1373 = vor.u32 %v1369, %v1372
      %v1374 = vrot.slane %v1373, 4
      %v1376 = vshll.u32 %v1339, 16
      %v1378 = vrot.slane %v1376, 5
      %v1379 = vsel %vm415, %v1374, %v1378
      %v1381 = vshrl.u32 %v1340, 16
      %v1383 = vrot.slane %v1381, 4
      %v1384 = vshll.u32 %v1340, 16
      %v1386 = vrot.slane %v1384, 5
      %v1387 = vor.u32 %v1383, %v1386
      %v1388 = vrot.slane %v1387, 4
      %v1390 = vshll.u32 %v1341, 16
      %v1392 = vrot.slane %v1390, 5
      %v1393 = vsel %vm415, %v1388, %v1392
      %v1395 = vshrl.u32 %v1342, 16
      %v1397 = vrot.slane %v1395, 4
      %v1398 = vshll.u32 %v1342, 16
      %v1400 = vrot.slane %v1398, 5
      %v1401 = vor.u32 %v1397, %v1400
      %v1402 = vrot.slane %v1401, 4
      %v1404 = vshll.u32 %v1343, 16
      %v1406 = vrot.slane %v1404, 5
      %v1407 = vsel %vm415, %v1402, %v1406
      %v1409 = vshrl.u32 %v1344, 16
      %v1411 = vrot.slane %v1409, 4
      %v1412 = vshll.u32 %v1344, 16
      %v1414 = vrot.slane %v1412, 5
      %v1415 = vor.u32 %v1411, %v1414
      %v1416 = vrot.slane %v1415, 4
      %v1418 = vshll.u32 %v1345, 16
      %v1420 = vrot.slane %v1418, 5
      %v1421 = vsel %vm415, %v1416, %v1420
      %v1423 = vshrl.u32 %v1346, 16
      %v1425 = vrot.slane %v1423, 4
      %v1426 = vshll.u32 %v1346, 16
      %v1428 = vrot.slane %v1426, 5
      %v1429 = vor.u32 %v1425, %v1428
      %v1430 = vrot.slane %v1429, 4
      %v1432 = vshll.u32 %v1347, 16
      %v1434 = vrot.slane %v1432, 5
      %v1435 = vsel %vm415, %v1430, %v1434
      %v1437 = vshrl.u32 %v1348, 16
      %v1439 = vrot.slane %v1437, 4
      %v1440 = vshll.u32 %v1348, 16
      %v1442 = vrot.slane %v1440, 5
      %v1443 = vor.u32 %v1439, %v1442
      %v1444 = vrot.slane %v1443, 4
      %v1446 = vshll.u32 %v1349, 16
      %v1448 = vrot.slane %v1446, 5
      %v1449 = vsel %vm415, %v1444, %v1448
      %v1451 = vshrl.u32 %v1350, 16
      %v1453 = vrot.slane %v1451, 4
      %v1454 = vshll.u32 %v1350, 16
      %v1456 = vrot.slane %v1454, 5
      %v1457 = vor.u32 %v1453, %v1456
      %v1458 = vrot.slane %v1457, 4
      %v1460 = vshll.u32 %v1351, 16
      %v1462 = vrot.slane %v1460, 5
      %v1463 = vsel %vm415, %v1458, %v1462
      %s1464 = scalar_lea.vmem %s1, 16
      %v1465 = vld [vmem:[%s1464] sm:$0x3]
      %v1466 = vunpack.c.l.b16 %v1365
      %v1467 = vunpack.c.l.b16 %v1379
      %v1468 = vunpack.c.l.b16 %v1393
      %v1469 = vunpack.c.l.b16 %v1407
      %v1470 = vunpack.c.l.b16 %v1421
      %v1471 = vunpack.c.l.b16 %v1435
      %v1472 = vunpack.c.l.b16 %v1449
      %v1473 = vunpack.c.l.b16 %v1463
      %v1474 = vpack.c.b16 %v1467, %v1466
      %v1475 = vpack.c.b16 %v1469, %v1468
      %v1476 = vpack.c.b16 %v1471, %v1470
      %v1477 = vpack.c.b16 %v1473, %v1472
      %v1479 = vsel %vm212, %v1474, 0
      %v1482 = vsel %vm212, %v1475, 0
      %v1485 = vsel %vm212, %v1476, 0
      %v1488 = vsel %vm212, %v1477, 0
      %v1491 = vand.u32 %v1465, %v228
      %1493 = vmatprep.subr.bf16.mxu0 0
      %1494 = vmatpush1.bf16.msra.mxu0 %v1491
      %1495 = vmatprep.subr.bf16.mxu0 0
      %1496 = vmatpush1.bf16.msra.mxu0 0
      %1497 = vmatprep.subr.bf16.mxu0 0
      %1498 = vmatpush1.bf16.msra.mxu0 0
      %1499 = vmatprep.subr.bf16.mxu0 0
      %1500 = vmatpush1.bf16.msra.mxu0 0
      %1501 = vmatprep.subr.bf16.mxu0 0
      %1502 = vmatpush1.bf16.msra.mxu0 0
      %1503 = vmatprep.subr.bf16.mxu0 0
      %1504 = vmatpush1.bf16.msra.mxu0 0
      %1505 = vmatprep.subr.bf16.mxu0 0
      %1506 = vmatpush1.bf16.msra.mxu0 0
      %1507 = vmatprep.subr.bf16.mxu0 0
      %1508 = vmatpush1.bf16.msra.mxu0 0
      %1509 = vmatprep.subr.bf16.mxu0 0
      %1510 = vmatpush1.bf16.msra.mxu0 0
      %1511 = vmatprep.subr.bf16.mxu0 0
      %1512 = vmatpush1.bf16.msra.mxu0 0
      %1513 = vmatprep.subr.bf16.mxu0 0
      %1514 = vmatpush1.bf16.msra.mxu0 0
      %1515 = vmatprep.subr.bf16.mxu0 0
      %1516 = vmatpush1.bf16.msra.mxu0 0
      %1517 = vmatprep.subr.bf16.mxu0 0
      %1518 = vmatpush1.bf16.msra.mxu0 0
      %1519 = vmatprep.subr.bf16.mxu0 0
      %1520 = vmatpush1.bf16.msra.mxu0 0
      %1521 = vmatprep.subr.bf16.mxu0 0
      %1522 = vmatpush1.bf16.msra.mxu0 0
      %1523 = vmatprep.subr.bf16.mxu0 0
      %1524 = vmatpush1.bf16.msra.mxu0 0
      %1525 = vmatprep.mubr.bf16.mxu0 0
      %1526 = vmatmul.mubr.bf16.gmra.mrb[0].mxu0 %v1479
      %v1527 = vpop.f32.mrb[0].mxu0
      %v1528 = vadd.f32 0.0, %v1527
      %v1529 = vpop.f32.mrb[0].mxu0
      %v1530 = vpop.f32.mrb[0].mxu0
      %v1531 = vadd.f32 0.0, %v1530
      %v1532 = vpop.f32.mrb[0].mxu0
      %1533 = vmatprep.mubr.bf16.mxu0 0
      %1534 = vmatmul.mubr.bf16.gmra.mrb[0].mxu0 %v1482
      %v1535 = vpop.f32.mrb[0].mxu0
      %v1536 = vadd.f32 0.0, %v1535
      %v1537 = vpop.f32.mrb[0].mxu0
      %v1538 = vpop.f32.mrb[0].mxu0
      %v1539 = vadd.f32 0.0, %v1538
      %v1540 = vpop.f32.mrb[0].mxu0
      %1541 = vmatprep.mubr.bf16.mxu0 0
      %1542 = vmatmul.mubr.bf16.gmra.mrb[0].mxu0 %v1485
      %v1543 = vpop.f32.mrb[0].mxu0
      %v1544 = vadd.f32 0.0, %v1543
      %v1545 = vpop.f32.mrb[0].mxu0
      %v1546 = vpop.f32.mrb[0].mxu0
      %v1547 = vadd.f32 0.0, %v1546
      %v1548 = vpop.f32.mrb[0].mxu0
      %1549 = vmatprep.mubr.bf16.mxu0 0
      %1550 = vmatmul.mubr.bf16.gmra.mrb[0].mxu0 %v1488
      %v1551 = vpop.f32.mrb[0].mxu0
      %v1552 = vadd.f32 0.0, %v1551
      %v1553 = vpop.f32.mrb[0].mxu0
      %v1554 = vpop.f32.mrb[0].mxu0
      %v1555 = vadd.f32 0.0, %v1554
      %v1556 = vpop.f32.mrb[0].mxu0
      %1557 = vdwg.mxu0
      %v1558 = vadd.f32 %v1328, %v1528
      %v1559 = vadd.f32 %v1329, %v1531
      %v1560 = vadd.f32 %v1330, %v1536
      %v1561 = vadd.f32 %v1331, %v1539
      %v1562 = vadd.f32 %v1332, %v1544
      %v1563 = vadd.f32 %v1333, %v1547
      %v1564 = vadd.f32 %v1334, %v1552
      %v1565 = vadd.f32 %v1335, %v1555
      %v1566 = vld [vmem:[%s2] sm:$0x1]
      %v1568 = vlaneseq
      %v1569 = vshrl.u32 %v1568, 7
      %v1570 = vsub.s32 0, %v1569
      %v1571 = vrot.slane %v1566, %v1570
      %v1573 = vadd.f32 %v1558, %v1571
      %v1574 = vadd.f32 %v1559, %v1571
      %v1575 = vadd.f32 %v1560, %v1571
      %v1576 = vadd.f32 %v1561, %v1571
      %v1577 = vadd.f32 %v1562, %v1571
      %v1578 = vadd.f32 %v1563, %v1571
      %v1579 = vadd.f32 %v1564, %v1571
      %v1580 = vadd.f32 %v1565, %v1571
      %v1581 = vmax.f32 %v1573, 0.0
      %v1582 = vmax.f32 %v1574, 0.0
      %v1583 = vmax.f32 %v1575, 0.0
      %v1584 = vmax.f32 %v1576, 0.0
      %v1585 = vmax.f32 %v1577, 0.0
      %v1586 = vmax.f32 %v1578, 0.0
      %v1587 = vmax.f32 %v1579, 0.0
      %v1588 = vmax.f32 %v1580, 0.0
      %v1589 = vpack.c.bf16 %v1582, %v1581
      %v1590 = vpack.c.bf16 %v1584, %v1583
      %v1591 = vpack.c.bf16 %v1586, %v1585
      %v1592 = vpack.c.bf16 %v1588, %v1587
      %v1597 = vunpack.c.l.b16 %v1589
      %v1598 = vunpack.c.h.b16 %v1589
      %v1599 = vunpack.c.l.b16 %v1590
      %v1600 = vunpack.c.h.b16 %v1590
      %v1601 = vunpack.c.l.b16 %v1591
      %v1602 = vunpack.c.h.b16 %v1591
      %v1603 = vunpack.c.l.b16 %v1592
      %v1604 = vunpack.c.h.b16 %v1592
      %v1605 = vpack.c.b16 %v1597, %v1597
      %v1606 = vpack.c.b16 %v1598, %v1598
      %v1607 = vpack.c.b16 %v1599, %v1599
      %v1608 = vpack.c.b16 %v1600, %v1600
      %v1609 = vpack.c.b16 %v1601, %v1601
      %v1610 = vpack.c.b16 %v1602, %v1602
      %v1611 = vpack.c.b16 %v1603, %v1603
      %v1612 = vpack.c.b16 %v1604, %v1604
      %1621 = vst [vmem:[%s170] sm:$0xf] %v1605
      %1622 = vst [vmem:[%s170 + $0x4] sm:$0xf] %v1606
      %1623 = vst [vmem:[%s170 + $0x8] sm:$0xf] %v1607
      %1624 = vst [vmem:[%s170 + $0xc] sm:$0xf] %v1608
      %1625 = vst [vmem:[%s170 + $0x10] sm:$0xf] %v1609
      %1626 = vst [vmem:[%s170 + $0x14] sm:$0xf] %v1610
      %1627 = vst [vmem:[%s170 + $0x18] sm:$0xf] %v1611
      %1628 = vst [vmem:[%s170 + $0x1c] sm:$0xf] %v1612
      %p1629 = scmp.lt.s32.totalorder %s14, 1
      %s1630 = scalar_select %p1629, %s14, 1
      %s1631 = smul.addr %s1630, 8
      %s1632 = smul.addr %s1631, 4
      %s1633 = scalar_lea.vmem %s3, %s1632
      // Predicated region
      $region33: #{_forward_impl.2} parent=31 // pred_check
        %p1634 = pneg %p100
      $region34: #{_forward_impl.2} parent=31 // pred_check_branch
        %1636 = sbr.rel (%p1634) target = $region36
      $region35: #{_forward_impl.2} parent=31 // pred_region
        _
      $region36: #{_forward_impl.2} parent=31 // pred_fallthru
        _
    $region32: #{_forward_impl.2} parent=5 // pred_fallthru
      _
    %p1637 = scmp.le.s32.totalorder 2, %s9
    // Predicated region
    $region37: #{_forward_impl.2} parent=5 // pred_check
      %p1638 = pneg %p1637
    $region38: #{_forward_impl.2} parent=5 // pred_check_branch
      %1640 = sbr.rel (%p1638) target = $region40
    $region39: #{_forward_impl.2} parent=5 // pred_region
      %s1641 = ssub.s32 %s9, 2
      // Predicated region
      $region41: #{_forward_impl.2} parent=39 // pred_check
        %p1642 = pneg %p106
      $region42: #{_forward_impl.2} parent=39 // pred_check_branch
        %1644 = sbr.rel (%p1642) target = $region44
      $region43: #{_forward_impl.2} parent=39 // pred_region
        %p1645 = scmp.lt.s32.totalorder %s15, 1
        %s1646 = scalar_select %p1645, %s15, 1
        %s1647 = smul.addr %s1646, 8
        %s1648 = smul.addr %s1647, 4
        %s1649 = scalar_lea.vmem %s3, %s1648
      $region44: #{_forward_impl.2} parent=39 // pred_fallthru
        _
    $region40: #{_forward_impl.2} parent=5 // pred_fallthru
      _
  $region6: #{_forward_impl.2} parent=0 // loop_footer
    %s13 = sadd.s32 1, %s9
  $region7: #{_forward_impl.2} parent=0 // loop_footer_branch
    %8 = sbr.rel target = $region3
  $region8: #{_forward_impl.2} parent=0 // loop_exit
    _

// kernel: _forward_impl.3
$region0: #{_forward_impl.3}
  #allocation0 [shape = 'u32[]', space=smem, size = 0x4, offset = 0x4, fixed_abs, tag = 'smem constant byte address 0x4 - core index']
  #allocation1 [shape = 'u32[144,128]{1,0:T(1,128)}', space=vmem, size = 0x12000, scoped, tag = 'internal scratch']
  %s0 = inlined_call_operand.vmem [shape: bf16[2,4,5,5,128], index: 0, kind: input, shape index: {}]
  %s1 = inlined_call_operand.vmem [shape: bf16[9,128,128], index: 1, kind: input, shape index: {}]
  %s2 = inlined_call_operand.vmem [shape: f32[1,128], index: 2, kind: input, shape index: {}]
  %s3 = inlined_call_operand.vmem [shape: bf16[2,16,128], index: 3, kind: output, shape index: {}]
  %s4 = sld [smem:[#allocation0]]
  $region45: #{_forward_impl.3} parent=0
    _
  %s6 = ssub.s32 1, %s4
  %s7 = scalar_select 0, %s6, %s4
  loop: start=0, step=1, limit=4
  $region2: #{_forward_impl.3} parent=0 // loop_pre_header
    _
  $region3: #{_forward_impl.3} parent=0 // loop_header
    %s9 = sphi 0, %s13
    %p10 = scmp.ge.s32.totalorder %s9, 4
    %s19 = sphi 0, %s21
    %s22 = sphi 0, %s19
    %s23 = sphi 0, %s22
    %s39 = sphi 0, %s23
    %s43 = sphi 0, %s43
    %s45 = sphi 0, %s43
    %s46 = sphi 0, %s45
    %s60 = sphi 0, %s46
    %s64 = sphi 0, %s64
    %s66 = sphi 0, %s64
    %s67 = sphi 0, %s66
    %s81 = sphi 0, %s67
    %s87 = sphi 0, %s89
    %s90 = sphi 0, %s87
    %s91 = sphi 0, %s90
    %s107 = sphi 0, %s91
  $region4: #{_forward_impl.3} parent=0 // loop_header_branch
    %12 = sbr.rel (%p10) target = $region8
  $region5: #{_forward_impl.3} parent=0 // loop_body
    %s14 = ssub.s32 %s9, 1
    %s15 = ssub.s32 %s9, 2
    %s16 = sadd.s32 %s9, 1
    %s17 = ssub.s32 %s9, %s16
    %p18 = scmp.eq.s32.totalorder %s17, 0
    %s20 = sadd.s32 %s19, 1
    %s21 = scalar_select %p18, %s19, %s20
    %p24 = pneg %p18
    %p25 = scmp.eq.s32.totalorder %s9, 1
    %p26 = por %p24, %p25
    %p27 = scmp.ne.s32.totalorder %s19, %s22
    %p28 = scmp.eq.s32.totalorder %s9, 0
    %p29 = por %p27, %p28
    %p30 = scmp.ne.s32.totalorder %s19, %s22
    %p31 = scmp.eq.s32.totalorder %s14, 1
    %p32 = por %p30, %p31
    %p33 = scmp.ne.s32.totalorder %s22, %s23
    %p34 = scmp.eq.s32.totalorder %s14, 0
    %p35 = por %p33, %p34
    %p36 = scmp.ne.s32.totalorder %s22, %s23
    %p37 = scmp.eq.s32.totalorder %s15, 1
    %p38 = por %p36, %p37
    %p40 = scmp.ne.s32.totalorder %s23, %s39
    %p41 = scmp.eq.s32.totalorder %s15, 0
    %p42 = por %p40, %p41
    %s44 = sadd.s32 %s43, 1
    %p47 = scmp.eq.s32.totalorder %s9, 1
    %p48 = scmp.ne.s32.totalorder %s43, %s45
    %p49 = scmp.eq.s32.totalorder %s9, 0
    %p50 = por %p48, %p49
    %p51 = scmp.ne.s32.totalorder %s43, %s45
    %p52 = scmp.eq.s32.totalorder %s14, 1
    %p53 = por %p51, %p52
    %p54 = scmp.ne.s32.totalorder %s45, %s46
    %p55 = scmp.eq.s32.totalorder %s14, 0
    %p56 = por %p54, %p55
    %p57 = scmp.ne.s32.totalorder %s45, %s46
    %p58 = scmp.eq.s32.totalorder %s15, 1
    %p59 = por %p57, %p58
    %p61 = scmp.ne.s32.totalorder %s46, %s60
    %p62 = scmp.eq.s32.totalorder %s15, 0
    %p63 = por %p61, %p62
    %s65 = sadd.s32 %s64, 1
    %p68 = scmp.eq.s32.totalorder %s9, 1
    %p69 = scmp.ne.s32.totalorder %s64, %s66
    %p70 = scmp.eq.s32.totalorder %s9, 0
    %p71 = por %p69, %p70
    %p72 = scmp.ne.s32.totalorder %s64, %s66
    %p73 = scmp.eq.s32.totalorder %s14, 1
    %p74 = por %p72, %p73
    %p75 = scmp.ne.s32.totalorder %s66, %s67
    %p76 = scmp.eq.s32.totalorder %s14, 0
    %p77 = por %p75, %p76
    %p78 = scmp.ne.s32.totalorder %s66, %s67
    %p79 = scmp.eq.s32.totalorder %s15, 1
    %p80 = por %p78, %p79
    %p82 = scmp.ne.s32.totalorder %s67, %s81
    %p83 = scmp.eq.s32.totalorder %s15, 0
    %p84 = por %p82, %p83
    %s85 = ssub.s32 %s9, %s16
    %p86 = scmp.eq.s32.totalorder %s85, 0
    %s88 = sadd.s32 %s87, 1
    %s89 = scalar_select %p86, %s87, %s88
    %p92 = pneg %p86
    %p93 = scmp.eq.s32.totalorder %s9, 1
    %p94 = por %p92, %p93
    %p95 = scmp.ne.s32.totalorder %s87, %s90
    %p96 = scmp.eq.s32.totalorder %s9, 0
    %p97 = por %p95, %p96
    %p98 = scmp.ne.s32.totalorder %s87, %s90
    %p99 = scmp.eq.s32.totalorder %s14, 1
    %p100 = por %p98, %p99
    %p101 = scmp.ne.s32.totalorder %s90, %s91
    %p102 = scmp.eq.s32.totalorder %s14, 0
    %p103 = por %p101, %p102
    %p104 = scmp.ne.s32.totalorder %s90, %s91
    %p105 = scmp.eq.s32.totalorder %s15, 1
    %p106 = por %p104, %p105
    %p108 = scmp.ne.s32.totalorder %s91, %s107
    %p109 = scmp.eq.s32.totalorder %s15, 0
    %p110 = por %p108, %p109
    %p111 = scmp.le.s32.totalorder 1, %s9
    %p112 = scmp.lt.s32.totalorder %s9, 3
    %p113 = pnand %p111, %p112
    %p114 = pneg %p113
    // Predicated region
    $region9: #{_forward_impl.3} parent=5 // pred_check
      _
    $region10: #{_forward_impl.3} parent=5 // pred_check_branch
      %116 = sbr.rel (%p113) target = $region12
    $region11: #{_forward_impl.3} parent=5 // pred_region
      %s117 = ssub.s32 %s9, 1
      // Predicated region
      $region13: #{_forward_impl.3} parent=11 // pred_check
        %p118 = pneg %p56
      $region14: #{_forward_impl.3} parent=11 // pred_check_branch
        %120 = sbr.rel (%p118) target = $region16
      $region15: #{_forward_impl.3} parent=11 // pred_region
        _
      $region16: #{_forward_impl.3} parent=11 // pred_fallthru
        _
      // Predicated region
      $region17: #{_forward_impl.3} parent=11 // pred_check
        %p121 = pneg %p77
      $region18: #{_forward_impl.3} parent=11 // pred_check_branch
        %123 = sbr.rel (%p121) target = $region20
      $region19: #{_forward_impl.3} parent=11 // pred_region
        _
      $region20: #{_forward_impl.3} parent=11 // pred_fallthru
        _
    $region12: #{_forward_impl.3} parent=5 // pred_fallthru
      _
    %p124 = scmp.lt.s32.totalorder %s9, 2
    // Predicated region
    $region21: #{_forward_impl.3} parent=5 // pred_check
      %p125 = pneg %p124
    $region22: #{_forward_impl.3} parent=5 // pred_check_branch
      %127 = sbr.rel (%p125) target = $region24
    $region23: #{_forward_impl.3} parent=5 // pred_region
      // Predicated region
      $region25: #{_forward_impl.3} parent=23 // pred_check
        %p128 = pneg %p29
      $region26: #{_forward_impl.3} parent=23 // pred_check_branch
        %130 = sbr.rel (%p128) target = $region28
      $region27: #{_forward_impl.3} parent=23 // pred_region
        %p131 = scmp.lt.s32.totalorder %s9, 1
        %s132 = scalar_select %p131, %s9, 1
        %s133 = smul.addr %s132, 20
        %s134 = smul.addr %s133, 4
        %s135 = scalar_lea.vmem %s0, %s134
      $region28: #{_forward_impl.3} parent=23 // pred_fallthru
        _
    $region24: #{_forward_impl.3} parent=5 // pred_fallthru
      _
    %p136 = scmp.le.s32.totalorder 1, %s9
    %p137 = scmp.lt.s32.totalorder %s9, 3
    %p138 = pnand %p136, %p137
    %p139 = pneg %p138
    // Predicated region
    $region29: #{_forward_impl.3} parent=5 // pred_check
      _
    $region30: #{_forward_impl.3} parent=5 // pred_check_branch
      %141 = sbr.rel (%p138) target = $region32
    $region31: #{_forward_impl.3} parent=5 // pred_region
      %s142 = ssub.s32 %s9, 1
      %p143 = scmp.lt.s32.totalorder %s14, 1
      %s144 = scalar_select %p143, %s14, 1
      %s145 = smul.addr %s144, 20
      %s146 = smul.addr %s145, 4
      %s147 = scalar_lea.vmem %s0, %s146
      %p148 = pneg %p35
      %p149 = pneg %p32
      %p150 = pneg %p56
      %p151 = pneg %p53
      %p152 = pneg %p77
      %p153 = pneg %p74
      %p154 = pneg %p103
      %p155 = pneg %p100
      %p156 = scmp.lt.s32.totalorder %s14, 1
      %s157 = scalar_select %p156, %s14, 1
      %s158 = smul.addr %s157, 2
      %s159 = smul.addr %s158, 4
      %s160 = scalar_lea.vmem %s3, %s159
      %p161 = scmp.lt.s32.totalorder %s14, 1
      %s162 = scalar_select %p161, %s14, 1
      %s163 = smul.addr %s162, 20
      %s164 = smul.addr %s163, 4
      %s165 = scalar_lea.vmem %s0, %s164
      %p166 = scmp.lt.s32.totalorder %s14, 1
      %s167 = scalar_select %p166, %s14, 1
      %s168 = smul.addr %s167, 2
      %s169 = smul.addr %s168, 4
      %s170 = scalar_lea.vmem %s3, %s169
      %v172 = vld [vmem:[%s165] sm:$0x3]
      %v173 = vld [vmem:[%s165 + $0x4] sm:$0x3]
      %v174 = vld [vmem:[%s165 + $0x8] sm:$0x3]
      %v175 = vld [vmem:[%s165 + $0xc] sm:$0x3]
      %v176 = vld [vmem:[%s1] sm:$0xf]
      %v177 = vld [vmem:[%s1 + $0x4] sm:$0xf]
      %v178 = vld [vmem:[%s1 + $0x8] sm:$0xf]
      %v179 = vld [vmem:[%s1 + $0xc] sm:$0xf]
      %v180 = vld [vmem:[%s1 + $0x10] sm:$0xf]
      %v181 = vld [vmem:[%s1 + $0x14] sm:$0xf]
      %v182 = vld [vmem:[%s1 + $0x18] sm:$0xf]
      %v183 = vld [vmem:[%s1 + $0x1c] sm:$0xf]
      %v184 = vld [vmem:[%s1 + $0x20] sm:$0xf]
      %v185 = vld [vmem:[%s1 + $0x24] sm:$0xf]
      %v186 = vld [vmem:[%s1 + $0x28] sm:$0xf]
      %v187 = vld [vmem:[%s1 + $0x2c] sm:$0xf]
      %v188 = vld [vmem:[%s1 + $0x30] sm:$0xf]
      %v189 = vld [vmem:[%s1 + $0x34] sm:$0xf]
      %v190 = vld [vmem:[%s1 + $0x38] sm:$0xf]
      %v191 = vld [vmem:[%s1 + $0x3c] sm:$0xf]
      %s192 = scalar_lea.vmem %s165, 20
      %v193 = vld [vmem:[%s192] sm:$0x3]
      %v194 = vld [vmem:[%s192 + $0x4] sm:$0x3]
      %v195 = vld [vmem:[%s192 + $0x8] sm:$0x3]
      %v196 = vld [vmem:[%s192 + $0xc] sm:$0x3]
      %s197 = scalar_lea.vmem %s1, 64
      %v198 = vld [vmem:[%s197] sm:$0xf]
      %v199 = vld [vmem:[%s197 + $0x4] sm:$0xf]
      %v200 = vld [vmem:[%s197 + $0x8] sm:$0xf]
      %v201 = vld [vmem:[%s197 + $0xc] sm:$0xf]
      %v202 = vld [vmem:[%s197 + $0x10] sm:$0xf]
      %v203 = vld [vmem:[%s197 + $0x14] sm:$0xf]
      %v204 = vld [vmem:[%s197 + $0x18] sm:$0xf]
      %v205 = vld [vmem:[%s197 + $0x1c] sm:$0xf]
      %v206 = vld [vmem:[%s197 + $0x20] sm:$0xf]
      %v207 = vld [vmem:[%s197 + $0x24] sm:$0xf]
      %v208 = vld [vmem:[%s197 + $0x28] sm:$0xf]
      %v209 = vld [vmem:[%s197 + $0x2c] sm:$0xf]
      %v210 = vld [vmem:[%s197 + $0x30] sm:$0xf]
      %v211 = vld [vmem:[%s197 + $0x34] sm:$0xf]
      %v212 = vld [vmem:[%s197 + $0x38] sm:$0xf]
      %v213 = vld [vmem:[%s197 + $0x3c] sm:$0xf]
      %v218 = vcombine.low %v193, %v194
      %v219 = vcombine.low %v195, %v196
      %v221 = vunpack.c.l.s4 1983009808
      %v222 = vunpack.c.0.s8 %v221
      %v223 = vlaneseq
      %v224 = vshrl.u32 %v223, 7
      %v225 = vsub.s32 %v222, %v224
      %v226 = vrot.slane %v218, %v225
      %v228 = vunpack.c.l.s4 1983009808
      %v229 = vunpack.c.0.s8 %v228
      %v230 = vlaneseq
      %v231 = vshrl.u32 %v230, 7
      %v232 = vsub.s32 %v229, %v231
      %v233 = vrot.slane %v219, %v232
      %v234 = vcombine.low %v226, %v233
      %v252 = vunpack.c.l.b16 %v198
      %v253 = vunpack.c.l.b16 %v199
      %v254 = vunpack.c.l.b16 %v200
      %v255 = vunpack.c.l.b16 %v201
      %v256 = vunpack.c.l.b16 %v202
      %v257 = vunpack.c.l.b16 %v203
      %v258 = vunpack.c.l.b16 %v204
      %v259 = vunpack.c.l.b16 %v205
      %v260 = vunpack.c.l.b16 %v206
      %v261 = vunpack.c.l.b16 %v207
      %v262 = vunpack.c.l.b16 %v208
      %v263 = vunpack.c.l.b16 %v209
      %v264 = vunpack.c.l.b16 %v210
      %v265 = vunpack.c.l.b16 %v211
      %v266 = vunpack.c.l.b16 %v212
      %v267 = vunpack.c.l.b16 %v213
      %v268 = vpack.c.b16 %v253, %v252
      %v269 = vpack.c.b16 %v255, %v254
      %v270 = vpack.c.b16 %v257, %v256
      %v271 = vpack.c.b16 %v259, %v258
      %v272 = vpack.c.b16 %v261, %v260
      %v273 = vpack.c.b16 %v263, %v262
      %v274 = vpack.c.b16 %v265, %v264
      %v275 = vpack.c.b16 %v267, %v266
      %284 = vmatprep.subr.bf16.mxu0 0
      %285 = vmatpush1.bf16.msra.mxu0 %v268
      %286 = vmatprep.subr.bf16.mxu0 0
      %287 = vmatpush1.bf16.msra.mxu0 %v269
      %288 = vmatprep.subr.bf16.mxu0 0
      %289 = vmatpush1.bf16.msra.mxu0 %v270
      %290 = vmatprep.subr.bf16.mxu0 0
      %291 = vmatpush1.bf16.msra.mxu0 %v271
      %292 = vmatprep.subr.bf16.mxu0 0
      %293 = vmatpush1.bf16.msra.mxu0 %v272
      %294 = vmatprep.subr.bf16.mxu0 0
      %295 = vmatpush1.bf16.msra.mxu0 %v273
      %296 = vmatprep.subr.bf16.mxu0 0
      %297 = vmatpush1.bf16.msra.mxu0 %v274
      %298 = vmatprep.subr.bf16.mxu0 0
      %299 = vmatpush1.bf16.msra.mxu0 %v275
      %300 = vmatprep.subr.bf16.mxu0 0
      %301 = vmatpush1.bf16.msra.mxu0 0
      %302 = vmatprep.subr.bf16.mxu0 0
      %303 = vmatpush1.bf16.msra.mxu0 0
      %304 = vmatprep.subr.bf16.mxu0 0
      %305 = vmatpush1.bf16.msra.mxu0 0
      %306 = vmatprep.subr.bf16.mxu0 0
      %307 = vmatpush1.bf16.msra.mxu0 0
      %308 = vmatprep.subr.bf16.mxu0 0
      %309 = vmatpush1.bf16.msra.mxu0 0
      %310 = vmatprep.subr.bf16.mxu0 0
      %311 = vmatpush1.bf16.msra.mxu0 0
      %312 = vmatprep.subr.bf16.mxu0 0
      %313 = vmatpush1.bf16.msra.mxu0 0
      %314 = vmatprep.subr.bf16.mxu0 0
      %315 = vmatpush1.bf16.msra.mxu0 0
      %316 = vmatprep.mubr.bf16.mxu0 0
      %317 = vmatmul.mubr.bf16.gmra.mrb[0].mxu0 %v234
      %v318 = vpop.f32.mrb[0].mxu0
      %v319 = vadd.f32 0.0, %v318
      %v320 = vpop.f32.mrb[0].mxu0
      %v321 = vpop.f32.mrb[0].mxu0
      %v322 = vadd.f32 0.0, %v321
      %v323 = vpop.f32.mrb[0].mxu0
      %324 = vdwg.mxu0
      %v329 = vcombine.low %v172, %v173
      %v330 = vcombine.low %v174, %v175
      %v332 = vunpack.c.l.s4 1983009808
      %v333 = vunpack.c.0.s8 %v332
      %v334 = vlaneseq
      %v335 = vshrl.u32 %v334, 7
      %v336 = vsub.s32 %v333, %v335
      %v337 = vrot.slane %v329, %v336
      %v339 = vunpack.c.l.s4 1983009808
      %v340 = vunpack.c.0.s8 %v339
      %v341 = vlaneseq
      %v342 = vshrl.u32 %v341, 7
      %v343 = vsub.s32 %v340, %v342
      %v344 = vrot.slane %v330, %v343
      %v345 = vcombine.low %v337, %v344
      %v363 = vunpack.c.l.b16 %v176
      %v364 = vunpack.c.l.b16 %v177
      %v365 = vunpack.c.l.b16 %v178
      %v366 = vunpack.c.l.b16 %v179
      %v367 = vunpack.c.l.b16 %v180
      %v368 = vunpack.c.l.b16 %v181
      %v369 = vunpack.c.l.b16 %v182
      %v370 = vunpack.c.l.b16 %v183
      %v371 = vunpack.c.l.b16 %v184
      %v372 = vunpack.c.l.b16 %v185
      %v373 = vunpack.c.l.b16 %v186
      %v374 = vunpack.c.l.b16 %v187
      %v375 = vunpack.c.l.b16 %v188
      %v376 = vunpack.c.l.b16 %v189
      %v377 = vunpack.c.l.b16 %v190
      %v378 = vunpack.c.l.b16 %v191
      %v379 = vpack.c.b16 %v364, %v363
      %v380 = vpack.c.b16 %v366, %v365
      %v381 = vpack.c.b16 %v368, %v367
      %v382 = vpack.c.b16 %v370, %v369
      %v383 = vpack.c.b16 %v372, %v371
      %v384 = vpack.c.b16 %v374, %v373
      %v385 = vpack.c.b16 %v376, %v375
      %v386 = vpack.c.b16 %v378, %v377
      %395 = vmatprep.subr.bf16.mxu0 0
      %396 = vmatpush1.bf16.msra.mxu0 %v379
      %397 = vmatprep.subr.bf16.mxu0 0
      %398 = vmatpush1.bf16.msra.mxu0 %v380
      %399 = vmatprep.subr.bf16.mxu0 0
      %400 = vmatpush1.bf16.msra.mxu0 %v381
      %401 = vmatprep.subr.bf16.mxu0 0
      %402 = vmatpush1.bf16.msra.mxu0 %v382
      %403 = vmatprep.subr.bf16.mxu0 0
      %404 = vmatpush1.bf16.msra.mxu0 %v383
      %405 = vmatprep.subr.bf16.mxu0 0
      %406 = vmatpush1.bf16.msra.mxu0 %v384
      %407 = vmatprep.subr.bf16.mxu0 0
      %408 = vmatpush1.bf16.msra.mxu0 %v385
      %409 = vmatprep.subr.bf16.mxu0 0
      %410 = vmatpush1.bf16.msra.mxu0 %v386
      %411 = vmatprep.subr.bf16.mxu0 0
      %412 = vmatpush1.bf16.msra.mxu0 0
      %413 = vmatprep.subr.bf16.mxu0 0
      %414 = vmatpush1.bf16.msra.mxu0 0
      %415 = vmatprep.subr.bf16.mxu0 0
      %416 = vmatpush1.bf16.msra.mxu0 0
      %417 = vmatprep.subr.bf16.mxu0 0
      %418 = vmatpush1.bf16.msra.mxu0 0
      %419 = vmatprep.subr.bf16.mxu0 0
      %420 = vmatpush1.bf16.msra.mxu0 0
      %421 = vmatprep.subr.bf16.mxu0 0
      %422 = vmatpush1.bf16.msra.mxu0 0
      %423 = vmatprep.subr.bf16.mxu0 0
      %424 = vmatpush1.bf16.msra.mxu0 0
      %425 = vmatprep.subr.bf16.mxu0 0
      %426 = vmatpush1.bf16.msra.mxu0 0
      %427 = vmatprep.mubr.bf16.mxu0 0
      %428 = vmatmul.mubr.bf16.gmra.mrb[0].mxu0 %v345
      %v429 = vpop.f32.mrb[0].mxu0
      %v430 = vadd.f32 %v319, %v429
      %v431 = vpop.f32.mrb[0].mxu0
      %v432 = vpop.f32.mrb[0].mxu0
      %v433 = vadd.f32 %v322, %v432
      %v434 = vpop.f32.mrb[0].mxu0
      %435 = vdwg.mxu0
      %v436 = vld [vmem:[%s165] sm:$0x7]
      %v437 = vld [vmem:[%s165 + $0x4] sm:$0x7]
      %v438 = vld [vmem:[%s165 + $0x8] sm:$0x7]
      %v439 = vld [vmem:[%s165 + $0xc] sm:$0x7]
      %v445 = vunpack.c.l.s4 1983009808
      %v446 = vunpack.c.0.s8 %v445
      %v447 = vlaneseq
      %v448 = vshrl.u32 %v447, 7
      %v449 = vsub.s32 %v446, %v448
      %v450 = vrot.slane %v436, %v449
      %v451 = vcombine.high %v450, %v450
      %v453 = vunpack.c.l.s4 1983009808
      %v454 = vunpack.c.0.s8 %v453
      %v455 = vlaneseq
      %v456 = vshrl.u32 %v455, 7
      %v457 = vsub.s32 %v454, %v456
      %v458 = vrot.slane %v437, %v457
      %v459 = vcombine.high %v458, %v458
      %v461 = vunpack.c.l.s4 1983009808
      %v462 = vunpack.c.0.s8 %v461
      %v463 = vlaneseq
      %v464 = vshrl.u32 %v463, 7
      %v465 = vsub.s32 %v462, %v464
      %v466 = vrot.slane %v438, %v465
      %v467 = vcombine.high %v466, %v466
      %v469 = vunpack.c.l.s4 1983009808
      %v470 = vunpack.c.0.s8 %v469
      %v471 = vlaneseq
      %v472 = vshrl.u32 %v471, 7
      %v473 = vsub.s32 %v470, %v472
      %v474 = vrot.slane %v439, %v473
      %v475 = vcombine.high %v474, %v474
      %vm476 = vsmask.f32 1280
      %vm477 = vsmask.f32 3336
      %vm478 = vmor %vm476, %vm477
      %vm479 = vsmask.f32 5392
      %vm480 = vmor %vm478, %vm479
      %vm481 = vsmask.f32 7448
      %vm482 = vmor %vm480, %vm481
      %v484 = vshrl.u32 %v450, 16
      %v486 = vrot.slane %v484, 6
      %v487 = vshll.u32 %v450, 16
      %v489 = vrot.slane %v487, 7
      %v490 = vor.u32 %v486, %v489
      %v491 = vrot.slane %v490, 2
      %v493 = vshll.u32 %v451, 16
      %v495 = vrot.slane %v493, 7
      %v496 = vsel %vm482, %v491, %v495
      %v498 = vshrl.u32 %v458, 16
      %v500 = vrot.slane %v498, 6
      %v501 = vshll.u32 %v458, 16
      %v503 = vrot.slane %v501, 7
      %v504 = vor.u32 %v500, %v503
      %v505 = vrot.slane %v504, 2
      %v507 = vshll.u32 %v459, 16
      %v509 = vrot.slane %v507, 7
      %v510 = vsel %vm482, %v505, %v509
      %v512 = vshrl.u32 %v466, 16
      %v514 = vrot.slane %v512, 6
      %v515 = vshll.u32 %v466, 16
      %v517 = vrot.slane %v515, 7
      %v518 = vor.u32 %v514, %v517
      %v519 = vrot.slane %v518, 2
      %v521 = vshll.u32 %v467, 16
      %v523 = vrot.slane %v521, 7
      %v524 = vsel %vm482, %v519, %v523
      %v526 = vshrl.u32 %v474, 16
      %v528 = vrot.slane %v526, 6
      %v529 = vshll.u32 %v474, 16
      %v531 = vrot.slane %v529, 7
      %v532 = vor.u32 %v528, %v531
      %v533 = vrot.slane %v532, 2
      %v535 = vshll.u32 %v475, 16
      %v537 = vrot.slane %v535, 7
      %v538 = vsel %vm482, %v533, %v537
      %s539 = scalar_lea.vmem %s1, 128
      %v540 = vld [vmem:[%s539] sm:$0xf]
      %v541 = vld [vmem:[%s539 + $0x4] sm:$0xf]
      %v542 = vld [vmem:[%s539 + $0x8] sm:$0xf]
      %v543 = vld [vmem:[%s539 + $0xc] sm:$0xf]
      %v544 = vld [vmem:[%s539 + $0x10] sm:$0xf]
      %v545 = vld [vmem:[%s539 + $0x14] sm:$0xf]
      %v546 = vld [vmem:[%s539 + $0x18] sm:$0xf]
      %v547 = vld [vmem:[%s539 + $0x1c] sm:$0xf]
      %v548 = vld [vmem:[%s539 + $0x20] sm:$0xf]
      %v549 = vld [vmem:[%s539 + $0x24] sm:$0xf]
      %v550 = vld [vmem:[%s539 + $0x28] sm:$0xf]
      %v551 = vld [vmem:[%s539 + $0x2c] sm:$0xf]
      %v552 = vld [vmem:[%s539 + $0x30] sm:$0xf]
      %v553 = vld [vmem:[%s539 + $0x34] sm:$0xf]
      %v554 = vld [vmem:[%s539 + $0x38] sm:$0xf]
      %v555 = vld [vmem:[%s539 + $0x3c] sm:$0xf]
      %v556 = vcombine.low %v496, %v510
      %v557 = vcombine.low %v524, %v538
      %v559 = vunpack.c.l.s4 1983009808
      %v560 = vunpack.c.0.s8 %v559
      %v561 = vlaneseq
      %v562 = vshrl.u32 %v561, 7
      %v563 = vsub.s32 %v560, %v562
      %v564 = vrot.slane %v556, %v563
      %v566 = vunpack.c.l.s4 1983009808
      %v567 = vunpack.c.0.s8 %v566
      %v568 = vlaneseq
      %v569 = vshrl.u32 %v568, 7
      %v570 = vsub.s32 %v567, %v569
      %v571 = vrot.slane %v557, %v570
      %v572 = vcombine.low %v564, %v571
      %v590 = vunpack.c.l.b16 %v540
      %v591 = vunpack.c.l.b16 %v541
      %v592 = vunpack.c.l.b16 %v542
      %v593 = vunpack.c.l.b16 %v543
      %v594 = vunpack.c.l.b16 %v544
      %v595 = vunpack.c.l.b16 %v545
      %v596 = vunpack.c.l.b16 %v546
      %v597 = vunpack.c.l.b16 %v547
      %v598 = vunpack.c.l.b16 %v548
      %v599 = vunpack.c.l.b16 %v549
      %v600 = vunpack.c.l.b16 %v550
      %v601 = vunpack.c.l.b16 %v551
      %v602 = vunpack.c.l.b16 %v552
      %v603 = vunpack.c.l.b16 %v553
      %v604 = vunpack.c.l.b16 %v554
      %v605 = vunpack.c.l.b16 %v555
      %v606 = vpack.c.b16 %v591, %v590
      %v607 = vpack.c.b16 %v593, %v592
      %v608 = vpack.c.b16 %v595, %v594
      %v609 = vpack.c.b16 %v597, %v596
      %v610 = vpack.c.b16 %v599, %v598
      %v611 = vpack.c.b16 %v601, %v600
      %v612 = vpack.c.b16 %v603, %v602
      %v613 = vpack.c.b16 %v605, %v604
      %622 = vmatprep.subr.bf16.mxu0 0
      %623 = vmatpush1.bf16.msra.mxu0 %v606
      %624 = vmatprep.subr.bf16.mxu0 0
      %625 = vmatpush1.bf16.msra.mxu0 %v607
      %626 = vmatprep.subr.bf16.mxu0 0
      %627 = vmatpush1.bf16.msra.mxu0 %v608
      %628 = vmatprep.subr.bf16.mxu0 0
      %629 = vmatpush1.bf16.msra.mxu0 %v609
      %630 = vmatprep.subr.bf16.mxu0 0
      %631 = vmatpush1.bf16.msra.mxu0 %v610
      %632 = vmatprep.subr.bf16.mxu0 0
      %633 = vmatpush1.bf16.msra.mxu0 %v611
      %634 = vmatprep.subr.bf16.mxu0 0
      %635 = vmatpush1.bf16.msra.mxu0 %v612
      %636 = vmatprep.subr.bf16.mxu0 0
      %637 = vmatpush1.bf16.msra.mxu0 %v613
      %638 = vmatprep.subr.bf16.mxu0 0
      %639 = vmatpush1.bf16.msra.mxu0 0
      %640 = vmatprep.subr.bf16.mxu0 0
      %641 = vmatpush1.bf16.msra.mxu0 0
      %642 = vmatprep.subr.bf16.mxu0 0
      %643 = vmatpush1.bf16.msra.mxu0 0
      %644 = vmatprep.subr.bf16.mxu0 0
      %645 = vmatpush1.bf16.msra.mxu0 0
      %646 = vmatprep.subr.bf16.mxu0 0
      %647 = vmatpush1.bf16.msra.mxu0 0
      %648 = vmatprep.subr.bf16.mxu0 0
      %649 = vmatpush1.bf16.msra.mxu0 0
      %650 = vmatprep.subr.bf16.mxu0 0
      %651 = vmatpush1.bf16.msra.mxu0 0
      %652 = vmatprep.subr.bf16.mxu0 0
      %653 = vmatpush1.bf16.msra.mxu0 0
      %654 = vmatprep.mubr.bf16.mxu0 0
      %655 = vmatmul.mubr.bf16.gmra.mrb[0].mxu0 %v572
      %v656 = vpop.f32.mrb[0].mxu0
      %v657 = vadd.f32 0.0, %v656
      %v658 = vpop.f32.mrb[0].mxu0
      %v659 = vpop.f32.mrb[0].mxu0
      %v660 = vadd.f32 0.0, %v659
      %v661 = vpop.f32.mrb[0].mxu0
      %662 = vdwg.mxu0
      %v663 = vadd.f32 %v430, %v657
      %v664 = vadd.f32 %v433, %v660
      %s665 = scalar_lea.vmem %s165, 40
      %v666 = vld [vmem:[%s665] sm:$0x3]
      %v667 = vld [vmem:[%s665 + $0x4] sm:$0x3]
      %v668 = vld [vmem:[%s665 + $0x8] sm:$0x3]
      %v669 = vld [vmem:[%s665 + $0xc] sm:$0x3]
      %s670 = scalar_lea.vmem %s1, 192
      %v671 = vld [vmem:[%s670] sm:$0xf]
      %v672 = vld [vmem:[%s670 + $0x4] sm:$0xf]
      %v673 = vld [vmem:[%s670 + $0x8] sm:$0xf]
      %v674 = vld [vmem:[%s670 + $0xc] sm:$0xf]
      %v675 = vld [vmem:[%s670 + $0x10] sm:$0xf]
      %v676 = vld [vmem:[%s670 + $0x14] sm:$0xf]
      %v677 = vld [vmem:[%s670 + $0x18] sm:$0xf]
      %v678 = vld [vmem:[%s670 + $0x1c] sm:$0xf]
      %v679 = vld [vmem:[%s670 + $0x20] sm:$0xf]
      %v680 = vld [vmem:[%s670 + $0x24] sm:$0xf]
      %v681 = vld [vmem:[%s670 + $0x28] sm:$0xf]
      %v682 = vld [vmem:[%s670 + $0x2c] sm:$0xf]
      %v683 = vld [vmem:[%s670 + $0x30] sm:$0xf]
      %v684 = vld [vmem:[%s670 + $0x34] sm:$0xf]
      %v685 = vld [vmem:[%s670 + $0x38] sm:$0xf]
      %v686 = vld [vmem:[%s670 + $0x3c] sm:$0xf]
      %v691 = vcombine.low %v666, %v667
      %v692 = vcombine.low %v668, %v669
      %v694 = vunpack.c.l.s4 1983009808
      %v695 = vunpack.c.0.s8 %v694
      %v696 = vlaneseq
      %v697 = vshrl.u32 %v696, 7
      %v698 = vsub.s32 %v695, %v697
      %v699 = vrot.slane %v691, %v698
      %v701 = vunpack.c.l.s4 1983009808
      %v702 = vunpack.c.0.s8 %v701
      %v703 = vlaneseq
      %v704 = vshrl.u32 %v703, 7
      %v705 = vsub.s32 %v702, %v704
      %v706 = vrot.slane %v692, %v705
      %v707 = vcombine.low %v699, %v706
      %v725 = vunpack.c.l.b16 %v671
      %v726 = vunpack.c.l.b16 %v672
      %v727 = vunpack.c.l.b16 %v673
      %v728 = vunpack.c.l.b16 %v674
      %v729 = vunpack.c.l.b16 %v675
      %v730 = vunpack.c.l.b16 %v676
      %v731 = vunpack.c.l.b16 %v677
      %v732 = vunpack.c.l.b16 %v678
      %v733 = vunpack.c.l.b16 %v679
      %v734 = vunpack.c.l.b16 %v680
      %v735 = vunpack.c.l.b16 %v681
      %v736 = vunpack.c.l.b16 %v682
      %v737 = vunpack.c.l.b16 %v683
      %v738 = vunpack.c.l.b16 %v684
      %v739 = vunpack.c.l.b16 %v685
      %v740 = vunpack.c.l.b16 %v686
      %v741 = vpack.c.b16 %v726, %v725
      %v742 = vpack.c.b16 %v728, %v727
      %v743 = vpack.c.b16 %v730, %v729
      %v744 = vpack.c.b16 %v732, %v731
      %v745 = vpack.c.b16 %v734, %v733
      %v746 = vpack.c.b16 %v736, %v735
      %v747 = vpack.c.b16 %v738, %v737
      %v748 = vpack.c.b16 %v740, %v739
      %757 = vmatprep.subr.bf16.mxu0 0
      %758 = vmatpush1.bf16.msra.mxu0 %v741
      %759 = vmatprep.subr.bf16.mxu0 0
      %760 = vmatpush1.bf16.msra.mxu0 %v742
      %761 = vmatprep.subr.bf16.mxu0 0
      %762 = vmatpush1.bf16.msra.mxu0 %v743
      %763 = vmatprep.subr.bf16.mxu0 0
      %764 = vmatpush1.bf16.msra.mxu0 %v744
      %765 = vmatprep.subr.bf16.mxu0 0
      %766 = vmatpush1.bf16.msra.mxu0 %v745
      %767 = vmatprep.subr.bf16.mxu0 0
      %768 = vmatpush1.bf16.msra.mxu0 %v746
      %769 = vmatprep.subr.bf16.mxu0 0
      %770 = vmatpush1.bf16.msra.mxu0 %v747
      %771 = vmatprep.subr.bf16.mxu0 0
      %772 = vmatpush1.bf16.msra.mxu0 %v748
      %773 = vmatprep.subr.bf16.mxu0 0
      %774 = vmatpush1.bf16.msra.mxu0 0
      %775 = vmatprep.subr.bf16.mxu0 0
      %776 = vmatpush1.bf16.msra.mxu0 0
      %777 = vmatprep.subr.bf16.mxu0 0
      %778 = vmatpush1.bf16.msra.mxu0 0
      %779 = vmatprep.subr.bf16.mxu0 0
      %780 = vmatpush1.bf16.msra.mxu0 0
      %781 = vmatprep.subr.bf16.mxu0 0
      %782 = vmatpush1.bf16.msra.mxu0 0
      %783 = vmatprep.subr.bf16.mxu0 0
      %784 = vmatpush1.bf16.msra.mxu0 0
      %785 = vmatprep.subr.bf16.mxu0 0
      %786 = vmatpush1.bf16.msra.mxu0 0
      %787 = vmatprep.subr.bf16.mxu0 0
      %788 = vmatpush1.bf16.msra.mxu0 0
      %789 = vmatprep.mubr.bf16.mxu0 0
      %790 = vmatmul.mubr.bf16.gmra.mrb[0].mxu0 %v707
      %v791 = vpop.f32.mrb[0].mxu0
      %v792 = vadd.f32 0.0, %v791
      %v793 = vpop.f32.mrb[0].mxu0
      %v794 = vpop.f32.mrb[0].mxu0
      %v795 = vadd.f32 0.0, %v794
      %v796 = vpop.f32.mrb[0].mxu0
      %797 = vdwg.mxu0
      %v798 = vadd.f32 %v663, %v792
      %v799 = vadd.f32 %v664, %v795
      %s800 = scalar_lea.vmem %s165, 60
      %v801 = vld [vmem:[%s800] sm:$0x3]
      %v802 = vld [vmem:[%s800 + $0x4] sm:$0x3]
      %v803 = vld [vmem:[%s800 + $0x8] sm:$0x3]
      %v804 = vld [vmem:[%s800 + $0xc] sm:$0x3]
      %s805 = scalar_lea.vmem %s1, 256
      %v806 = vld [vmem:[%s805] sm:$0xf]
      %v807 = vld [vmem:[%s805 + $0x4] sm:$0xf]
      %v808 = vld [vmem:[%s805 + $0x8] sm:$0xf]
      %v809 = vld [vmem:[%s805 + $0xc] sm:$0xf]
      %v810 = vld [vmem:[%s805 + $0x10] sm:$0xf]
      %v811 = vld [vmem:[%s805 + $0x14] sm:$0xf]
      %v812 = vld [vmem:[%s805 + $0x18] sm:$0xf]
      %v813 = vld [vmem:[%s805 + $0x1c] sm:$0xf]
      %v814 = vld [vmem:[%s805 + $0x20] sm:$0xf]
      %v815 = vld [vmem:[%s805 + $0x24] sm:$0xf]
      %v816 = vld [vmem:[%s805 + $0x28] sm:$0xf]
      %v817 = vld [vmem:[%s805 + $0x2c] sm:$0xf]
      %v818 = vld [vmem:[%s805 + $0x30] sm:$0xf]
      %v819 = vld [vmem:[%s805 + $0x34] sm:$0xf]
      %v820 = vld [vmem:[%s805 + $0x38] sm:$0xf]
      %v821 = vld [vmem:[%s805 + $0x3c] sm:$0xf]
      %v826 = vcombine.low %v801, %v802
      %v827 = vcombine.low %v803, %v804
      %v829 = vunpack.c.l.s4 1983009808
      %v830 = vunpack.c.0.s8 %v829
      %v831 = vlaneseq
      %v832 = vshrl.u32 %v831, 7
      %v833 = vsub.s32 %v830, %v832
      %v834 = vrot.slane %v826, %v833
      %v836 = vunpack.c.l.s4 1983009808
      %v837 = vunpack.c.0.s8 %v836
      %v838 = vlaneseq
      %v839 = vshrl.u32 %v838, 7
      %v840 = vsub.s32 %v837, %v839
      %v841 = vrot.slane %v827, %v840
      %v842 = vcombine.low %v834, %v841
      %v860 = vunpack.c.l.b16 %v806
      %v861 = vunpack.c.l.b16 %v807
      %v862 = vunpack.c.l.b16 %v808
      %v863 = vunpack.c.l.b16 %v809
      %v864 = vunpack.c.l.b16 %v810
      %v865 = vunpack.c.l.b16 %v811
      %v866 = vunpack.c.l.b16 %v812
      %v867 = vunpack.c.l.b16 %v813
      %v868 = vunpack.c.l.b16 %v814
      %v869 = vunpack.c.l.b16 %v815
      %v870 = vunpack.c.l.b16 %v816
      %v871 = vunpack.c.l.b16 %v817
      %v872 = vunpack.c.l.b16 %v818
      %v873 = vunpack.c.l.b16 %v819
      %v874 = vunpack.c.l.b16 %v820
      %v875 = vunpack.c.l.b16 %v821
      %v876 = vpack.c.b16 %v861, %v860
      %v877 = vpack.c.b16 %v863, %v862
      %v878 = vpack.c.b16 %v865, %v864
      %v879 = vpack.c.b16 %v867, %v866
      %v880 = vpack.c.b16 %v869, %v868
      %v881 = vpack.c.b16 %v871, %v870
      %v882 = vpack.c.b16 %v873, %v872
      %v883 = vpack.c.b16 %v875, %v874
      %892 = vmatprep.subr.bf16.mxu0 0
      %893 = vmatpush1.bf16.msra.mxu0 %v876
      %894 = vmatprep.subr.bf16.mxu0 0
      %895 = vmatpush1.bf16.msra.mxu0 %v877
      %896 = vmatprep.subr.bf16.mxu0 0
      %897 = vmatpush1.bf16.msra.mxu0 %v878
      %898 = vmatprep.subr.bf16.mxu0 0
      %899 = vmatpush1.bf16.msra.mxu0 %v879
      %900 = vmatprep.subr.bf16.mxu0 0
      %901 = vmatpush1.bf16.msra.mxu0 %v880
      %902 = vmatprep.subr.bf16.mxu0 0
      %903 = vmatpush1.bf16.msra.mxu0 %v881
      %904 = vmatprep.subr.bf16.mxu0 0
      %905 = vmatpush1.bf16.msra.mxu0 %v882
      %906 = vmatprep.subr.bf16.mxu0 0
      %907 = vmatpush1.bf16.msra.mxu0 %v883
      %908 = vmatprep.subr.bf16.mxu0 0
      %909 = vmatpush1.bf16.msra.mxu0 0
      %910 = vmatprep.subr.bf16.mxu0 0
      %911 = vmatpush1.bf16.msra.mxu0 0
      %912 = vmatprep.subr.bf16.mxu0 0
      %913 = vmatpush1.bf16.msra.mxu0 0
      %914 = vmatprep.subr.bf16.mxu0 0
      %915 = vmatpush1.bf16.msra.mxu0 0
      %916 = vmatprep.subr.bf16.mxu0 0
      %917 = vmatpush1.bf16.msra.mxu0 0
      %918 = vmatprep.subr.bf16.mxu0 0
      %919 = vmatpush1.bf16.msra.mxu0 0
      %920 = vmatprep.subr.bf16.mxu0 0
      %921 = vmatpush1.bf16.msra.mxu0 0
      %922 = vmatprep.subr.bf16.mxu0 0
      %923 = vmatpush1.bf16.msra.mxu0 0
      %924 = vmatprep.mubr.bf16.mxu0 0
      %925 = vmatmul.mubr.bf16.gmra.mrb[0].mxu0 %v842
      %v926 = vpop.f32.mrb[0].mxu0
      %v927 = vadd.f32 0.0, %v926
      %v928 = vpop.f32.mrb[0].mxu0
      %v929 = vpop.f32.mrb[0].mxu0
      %v930 = vadd.f32 0.0, %v929
      %v931 = vpop.f32.mrb[0].mxu0
      %932 = vdwg.mxu0
      %v933 = vadd.f32 %v798, %v927
      %v934 = vadd.f32 %v799, %v930
      %v935 = vld [vmem:[%s665] sm:$0x7]
      %v936 = vld [vmem:[%s665 + $0x4] sm:$0x7]
      %v937 = vld [vmem:[%s665 + $0x8] sm:$0x7]
      %v938 = vld [vmem:[%s665 + $0xc] sm:$0x7]
      %v944 = vunpack.c.l.s4 1983009808
      %v945 = vunpack.c.0.s8 %v944
      %v946 = vlaneseq
      %v947 = vshrl.u32 %v946, 7
      %v948 = vsub.s32 %v945, %v947
      %v949 = vrot.slane %v935, %v948
      %v950 = vcombine.high %v949, %v949
      %v952 = vunpack.c.l.s4 1983009808
      %v953 = vunpack.c.0.s8 %v952
      %v954 = vlaneseq
      %v955 = vshrl.u32 %v954, 7
      %v956 = vsub.s32 %v953, %v955
      %v957 = vrot.slane %v936, %v956
      %v958 = vcombine.high %v957, %v957
      %v960 = vunpack.c.l.s4 1983009808
      %v961 = vunpack.c.0.s8 %v960
      %v962 = vlaneseq
      %v963 = vshrl.u32 %v962, 7
      %v964 = vsub.s32 %v961, %v963
      %v965 = vrot.slane %v937, %v964
      %v966 = vcombine.high %v965, %v965
      %v968 = vunpack.c.l.s4 1983009808
      %v969 = vunpack.c.0.s8 %v968
      %v970 = vlaneseq
      %v971 = vshrl.u32 %v970, 7
      %v972 = vsub.s32 %v969, %v971
      %v973 = vrot.slane %v938, %v972
      %v974 = vcombine.high %v973, %v973
      %v976 = vshrl.u32 %v949, 16
      %v978 = vrot.slane %v976, 6
      %v979 = vshll.u32 %v949, 16
      %v981 = vrot.slane %v979, 7
      %v982 = vor.u32 %v978, %v981
      %v983 = vrot.slane %v982, 2
      %v985 = vshll.u32 %v950, 16
      %v987 = vrot.slane %v985, 7
      %v988 = vsel %vm482, %v983, %v987
      %v990 = vshrl.u32 %v957, 16
      %v992 = vrot.slane %v990, 6
      %v993 = vshll.u32 %v957, 16
      %v995 = vrot.slane %v993, 7
      %v996 = vor.u32 %v992, %v995
      %v997 = vrot.slane %v996, 2
      %v999 = vshll.u32 %v958, 16
      %v1001 = vrot.slane %v999, 7
      %v1002 = vsel %vm482, %v997, %v1001
      %v1004 = vshrl.u32 %v965, 16
      %v1006 = vrot.slane %v1004, 6
      %v1007 = vshll.u32 %v965, 16
      %v1009 = vrot.slane %v1007, 7
      %v1010 = vor.u32 %v1006, %v1009
      %v1011 = vrot.slane %v1010, 2
      %v1013 = vshll.u32 %v966, 16
      %v1015 = vrot.slane %v1013, 7
      %v1016 = vsel %vm482, %v1011, %v1015
      %v1018 = vshrl.u32 %v973, 16
      %v1020 = vrot.slane %v1018, 6
      %v1021 = vshll.u32 %v973, 16
      %v1023 = vrot.slane %v1021, 7
      %v1024 = vor.u32 %v1020, %v1023
      %v1025 = vrot.slane %v1024, 2
      %v1027 = vshll.u32 %v974, 16
      %v1029 = vrot.slane %v1027, 7
      %v1030 = vsel %vm482, %v1025, %v1029
      %s1031 = scalar_lea.vmem %s1, 320
      %v1032 = vld [vmem:[%s1031] sm:$0xf]
      %v1033 = vld [vmem:[%s1031 + $0x4] sm:$0xf]
      %v1034 = vld [vmem:[%s1031 + $0x8] sm:$0xf]
      %v1035 = vld [vmem:[%s1031 + $0xc] sm:$0xf]
      %v1036 = vld [vmem:[%s1031 + $0x10] sm:$0xf]
      %v1037 = vld [vmem:[%s1031 + $0x14] sm:$0xf]
      %v1038 = vld [vmem:[%s1031 + $0x18] sm:$0xf]
      %v1039 = vld [vmem:[%s1031 + $0x1c] sm:$0xf]
      %v1040 = vld [vmem:[%s1031 + $0x20] sm:$0xf]
      %v1041 = vld [vmem:[%s1031 + $0x24] sm:$0xf]
      %v1042 = vld [vmem:[%s1031 + $0x28] sm:$0xf]
      %v1043 = vld [vmem:[%s1031 + $0x2c] sm:$0xf]
      %v1044 = vld [vmem:[%s1031 + $0x30] sm:$0xf]
      %v1045 = vld [vmem:[%s1031 + $0x34] sm:$0xf]
      %v1046 = vld [vmem:[%s1031 + $0x38] sm:$0xf]
      %v1047 = vld [vmem:[%s1031 + $0x3c] sm:$0xf]
      %v1048 = vcombine.low %v988, %v1002
      %v1049 = vcombine.low %v1016, %v1030
      %v1051 = vunpack.c.l.s4 1983009808
      %v1052 = vunpack.c.0.s8 %v1051
      %v1053 = vlaneseq
      %v1054 = vshrl.u32 %v1053, 7
      %v1055 = vsub.s32 %v1052, %v1054
      %v1056 = vrot.slane %v1048, %v1055
      %v1058 = vunpack.c.l.s4 1983009808
      %v1059 = vunpack.c.0.s8 %v1058
      %v1060 = vlaneseq
      %v1061 = vshrl.u32 %v1060, 7
      %v1062 = vsub.s32 %v1059, %v1061
      %v1063 = vrot.slane %v1049, %v1062
      %v1064 = vcombine.low %v1056, %v1063
      %v1082 = vunpack.c.l.b16 %v1032
      %v1083 = vunpack.c.l.b16 %v1033
      %v1084 = vunpack.c.l.b16 %v1034
      %v1085 = vunpack.c.l.b16 %v1035
      %v1086 = vunpack.c.l.b16 %v1036
      %v1087 = vunpack.c.l.b16 %v1037
      %v1088 = vunpack.c.l.b16 %v1038
      %v1089 = vunpack.c.l.b16 %v1039
      %v1090 = vunpack.c.l.b16 %v1040
      %v1091 = vunpack.c.l.b16 %v1041
      %v1092 = vunpack.c.l.b16 %v1042
      %v1093 = vunpack.c.l.b16 %v1043
      %v1094 = vunpack.c.l.b16 %v1044
      %v1095 = vunpack.c.l.b16 %v1045
      %v1096 = vunpack.c.l.b16 %v1046
      %v1097 = vunpack.c.l.b16 %v1047
      %v1098 = vpack.c.b16 %v1083, %v1082
      %v1099 = vpack.c.b16 %v1085, %v1084
      %v1100 = vpack.c.b16 %v1087, %v1086
      %v1101 = vpack.c.b16 %v1089, %v1088
      %v1102 = vpack.c.b16 %v1091, %v1090
      %v1103 = vpack.c.b16 %v1093, %v1092
      %v1104 = vpack.c.b16 %v1095, %v1094
      %v1105 = vpack.c.b16 %v1097, %v1096
      %1114 = vmatprep.subr.bf16.mxu0 0
      %1115 = vmatpush1.bf16.msra.mxu0 %v1098
      %1116 = vmatprep.subr.bf16.mxu0 0
      %1117 = vmatpush1.bf16.msra.mxu0 %v1099
      %1118 = vmatprep.subr.bf16.mxu0 0
      %1119 = vmatpush1.bf16.msra.mxu0 %v1100
      %1120 = vmatprep.subr.bf16.mxu0 0
      %1121 = vmatpush1.bf16.msra.mxu0 %v1101
      %1122 = vmatprep.subr.bf16.mxu0 0
      %1123 = vmatpush1.bf16.msra.mxu0 %v1102
      %1124 = vmatprep.subr.bf16.mxu0 0
      %1125 = vmatpush1.bf16.msra.mxu0 %v1103
      %1126 = vmatprep.subr.bf16.mxu0 0
      %1127 = vmatpush1.bf16.msra.mxu0 %v1104
      %1128 = vmatprep.subr.bf16.mxu0 0
      %1129 = vmatpush1.bf16.msra.mxu0 %v1105
      %1130 = vmatprep.subr.bf16.mxu0 0
      %1131 = vmatpush1.bf16.msra.mxu0 0
      %1132 = vmatprep.subr.bf16.mxu0 0
      %1133 = vmatpush1.bf16.msra.mxu0 0
      %1134 = vmatprep.subr.bf16.mxu0 0
      %1135 = vmatpush1.bf16.msra.mxu0 0
      %1136 = vmatprep.subr.bf16.mxu0 0
      %1137 = vmatpush1.bf16.msra.mxu0 0
      %1138 = vmatprep.subr.bf16.mxu0 0
      %1139 = vmatpush1.bf16.msra.mxu0 0
      %1140 = vmatprep.subr.bf16.mxu0 0
      %1141 = vmatpush1.bf16.msra.mxu0 0
      %1142 = vmatprep.subr.bf16.mxu0 0
      %1143 = vmatpush1.bf16.msra.mxu0 0
      %1144 = vmatprep.subr.bf16.mxu0 0
      %1145 = vmatpush1.bf16.msra.mxu0 0
      %1146 = vmatprep.mubr.bf16.mxu0 0
      %1147 = vmatmul.mubr.bf16.gmra.mrb[0].mxu0 %v1064
      %v1148 = vpop.f32.mrb[0].mxu0
      %v1149 = vadd.f32 0.0, %v1148
      %v1150 = vpop.f32.mrb[0].mxu0
      %v1151 = vpop.f32.mrb[0].mxu0
      %v1152 = vadd.f32 0.0, %v1151
      %v1153 = vpop.f32.mrb[0].mxu0
      %1154 = vdwg.mxu0
      %v1155 = vadd.f32 %v933, %v1149
      %v1156 = vadd.f32 %v934, %v1152
      %s1157 = scalar_lea.vmem %s165, 4
      %v1158 = vld [vmem:[%s1157] sm:$0x3]
      %v1159 = vld [vmem:[%s1157 + $0x4] sm:$0x3]
      %v1160 = vld [vmem:[%s1157 + $0x8] sm:$0x3]
      %v1161 = vld [vmem:[%s1157 + $0xc] sm:$0x3]
      %s1162 = scalar_lea.vmem %s1, 384
      %v1163 = vld [vmem:[%s1162] sm:$0xf]
      %v1164 = vld [vmem:[%s1162 + $0x4] sm:$0xf]
      %v1165 = vld [vmem:[%s1162 + $0x8] sm:$0xf]
      %v1166 = vld [vmem:[%s1162 + $0xc] sm:$0xf]
      %v1167 = vld [vmem:[%s1162 + $0x10] sm:$0xf]
      %v1168 = vld [vmem:[%s1162 + $0x14] sm:$0xf]
      %v1169 = vld [vmem:[%s1162 + $0x18] sm:$0xf]
      %v1170 = vld [vmem:[%s1162 + $0x1c] sm:$0xf]
      %v1171 = vld [vmem:[%s1162 + $0x20] sm:$0xf]
      %v1172 = vld [vmem:[%s1162 + $0x24] sm:$0xf]
      %v1173 = vld [vmem:[%s1162 + $0x28] sm:$0xf]
      %v1174 = vld [vmem:[%s1162 + $0x2c] sm:$0xf]
      %v1175 = vld [vmem:[%s1162 + $0x30] sm:$0xf]
      %v1176 = vld [vmem:[%s1162 + $0x34] sm:$0xf]
      %v1177 = vld [vmem:[%s1162 + $0x38] sm:$0xf]
      %v1178 = vld [vmem:[%s1162 + $0x3c] sm:$0xf]
      %v1183 = vcombine.low %v1158, %v1159
      %v1184 = vcombine.low %v1160, %v1161
      %v1186 = vunpack.c.l.s4 1983009808
      %v1187 = vunpack.c.0.s8 %v1186
      %v1188 = vlaneseq
      %v1189 = vshrl.u32 %v1188, 7
      %v1190 = vsub.s32 %v1187, %v1189
      %v1191 = vrot.slane %v1183, %v1190
      %v1193 = vunpack.c.l.s4 1983009808
      %v1194 = vunpack.c.0.s8 %v1193
      %v1195 = vlaneseq
      %v1196 = vshrl.u32 %v1195, 7
      %v1197 = vsub.s32 %v1194, %v1196
      %v1198 = vrot.slane %v1184, %v1197
      %v1199 = vcombine.low %v1191, %v1198
      %v1217 = vunpack.c.l.b16 %v1163
      %v1218 = vunpack.c.l.b16 %v1164
      %v1219 = vunpack.c.l.b16 %v1165
      %v1220 = vunpack.c.l.b16 %v1166
      %v1221 = vunpack.c.l.b16 %v1167
      %v1222 = vunpack.c.l.b16 %v1168
      %v1223 = vunpack.c.l.b16 %v1169
      %v1224 = vunpack.c.l.b16 %v1170
      %v1225 = vunpack.c.l.b16 %v1171
      %v1226 = vunpack.c.l.b16 %v1172
      %v1227 = vunpack.c.l.b16 %v1173
      %v1228 = vunpack.c.l.b16 %v1174
      %v1229 = vunpack.c.l.b16 %v1175
      %v1230 = vunpack.c.l.b16 %v1176
      %v1231 = vunpack.c.l.b16 %v1177
      %v1232 = vunpack.c.l.b16 %v1178
      %v1233 = vpack.c.b16 %v1218, %v1217
      %v1234 = vpack.c.b16 %v1220, %v1219
      %v1235 = vpack.c.b16 %v1222, %v1221
      %v1236 = vpack.c.b16 %v1224, %v1223
      %v1237 = vpack.c.b16 %v1226, %v1225
      %v1238 = vpack.c.b16 %v1228, %v1227
      %v1239 = vpack.c.b16 %v1230, %v1229
      %v1240 = vpack.c.b16 %v1232, %v1231
      %1249 = vmatprep.subr.bf16.mxu0 0
      %1250 = vmatpush1.bf16.msra.mxu0 %v1233
      %1251 = vmatprep.subr.bf16.mxu0 0
      %1252 = vmatpush1.bf16.msra.mxu0 %v1234
      %1253 = vmatprep.subr.bf16.mxu0 0
      %1254 = vmatpush1.bf16.msra.mxu0 %v1235
      %1255 = vmatprep.subr.bf16.mxu0 0
      %1256 = vmatpush1.bf16.msra.mxu0 %v1236
      %1257 = vmatprep.subr.bf16.mxu0 0
      %1258 = vmatpush1.bf16.msra.mxu0 %v1237
      %1259 = vmatprep.subr.bf16.mxu0 0
      %1260 = vmatpush1.bf16.msra.mxu0 %v1238
      %1261 = vmatprep.subr.bf16.mxu0 0
      %1262 = vmatpush1.bf16.msra.mxu0 %v1239
      %1263 = vmatprep.subr.bf16.mxu0 0
      %1264 = vmatpush1.bf16.msra.mxu0 %v1240
      %1265 = vmatprep.subr.bf16.mxu0 0
      %1266 = vmatpush1.bf16.msra.mxu0 0
      %1267 = vmatprep.subr.bf16.mxu0 0
      %1268 = vmatpush1.bf16.msra.mxu0 0
      %1269 = vmatprep.subr.bf16.mxu0 0
      %1270 = vmatpush1.bf16.msra.mxu0 0
      %1271 = vmatprep.subr.bf16.mxu0 0
      %1272 = vmatpush1.bf16.msra.mxu0 0
      %1273 = vmatprep.subr.bf16.mxu0 0
      %1274 = vmatpush1.bf16.msra.mxu0 0
      %1275 = vmatprep.subr.bf16.mxu0 0
      %1276 = vmatpush1.bf16.msra.mxu0 0
      %1277 = vmatprep.subr.bf16.mxu0 0
      %1278 = vmatpush1.bf16.msra.mxu0 0
      %1279 = vmatprep.subr.bf16.mxu0 0
      %1280 = vmatpush1.bf16.msra.mxu0 0
      %1281 = vmatprep.mubr.bf16.mxu0 0
      %1282 = vmatmul.mubr.bf16.gmra.mrb[0].mxu0 %v1199
      %v1283 = vpop.f32.mrb[0].mxu0
      %v1284 = vadd.f32 0.0, %v1283
      %v1285 = vpop.f32.mrb[0].mxu0
      %v1286 = vpop.f32.mrb[0].mxu0
      %v1287 = vadd.f32 0.0, %v1286
      %v1288 = vpop.f32.mrb[0].mxu0
      %1289 = vdwg.mxu0
      %v1290 = vadd.f32 %v1155, %v1284
      %v1291 = vadd.f32 %v1156, %v1287
      %s1292 = scalar_lea.vmem %s165, 24
      %v1293 = vld [vmem:[%s1292] sm:$0x3]
      %v1294 = vld [vmem:[%s1292 + $0x4] sm:$0x3]
      %v1295 = vld [vmem:[%s1292 + $0x8] sm:$0x3]
      %v1296 = vld [vmem:[%s1292 + $0xc] sm:$0x3]
      %s1297 = scalar_lea.vmem %s1, 448
      %v1298 = vld [vmem:[%s1297] sm:$0xf]
      %v1299 = vld [vmem:[%s1297 + $0x4] sm:$0xf]
      %v1300 = vld [vmem:[%s1297 + $0x8] sm:$0xf]
      %v1301 = vld [vmem:[%s1297 + $0xc] sm:$0xf]
      %v1302 = vld [vmem:[%s1297 + $0x10] sm:$0xf]
      %v1303 = vld [vmem:[%s1297 + $0x14] sm:$0xf]
      %v1304 = vld [vmem:[%s1297 + $0x18] sm:$0xf]
      %v1305 = vld [vmem:[%s1297 + $0x1c] sm:$0xf]
      %v1306 = vld [vmem:[%s1297 + $0x20] sm:$0xf]
      %v1307 = vld [vmem:[%s1297 + $0x24] sm:$0xf]
      %v1308 = vld [vmem:[%s1297 + $0x28] sm:$0xf]
      %v1309 = vld [vmem:[%s1297 + $0x2c] sm:$0xf]
      %v1310 = vld [vmem:[%s1297 + $0x30] sm:$0xf]
      %v1311 = vld [vmem:[%s1297 + $0x34] sm:$0xf]
      %v1312 = vld [vmem:[%s1297 + $0x38] sm:$0xf]
      %v1313 = vld [vmem:[%s1297 + $0x3c] sm:$0xf]
      %v1318 = vcombine.low %v1293, %v1294
      %v1319 = vcombine.low %v1295, %v1296
      %v1321 = vunpack.c.l.s4 1983009808
      %v1322 = vunpack.c.0.s8 %v1321
      %v1323 = vlaneseq
      %v1324 = vshrl.u32 %v1323, 7
      %v1325 = vsub.s32 %v1322, %v1324
      %v1326 = vrot.slane %v1318, %v1325
      %v1328 = vunpack.c.l.s4 1983009808
      %v1329 = vunpack.c.0.s8 %v1328
      %v1330 = vlaneseq
      %v1331 = vshrl.u32 %v1330, 7
      %v1332 = vsub.s32 %v1329, %v1331
      %v1333 = vrot.slane %v1319, %v1332
      %v1334 = vcombine.low %v1326, %v1333
      %v1352 = vunpack.c.l.b16 %v1298
      %v1353 = vunpack.c.l.b16 %v1299
      %v1354 = vunpack.c.l.b16 %v1300
      %v1355 = vunpack.c.l.b16 %v1301
      %v1356 = vunpack.c.l.b16 %v1302
      %v1357 = vunpack.c.l.b16 %v1303
      %v1358 = vunpack.c.l.b16 %v1304
      %v1359 = vunpack.c.l.b16 %v1305
      %v1360 = vunpack.c.l.b16 %v1306
      %v1361 = vunpack.c.l.b16 %v1307
      %v1362 = vunpack.c.l.b16 %v1308
      %v1363 = vunpack.c.l.b16 %v1309
      %v1364 = vunpack.c.l.b16 %v1310
      %v1365 = vunpack.c.l.b16 %v1311
      %v1366 = vunpack.c.l.b16 %v1312
      %v1367 = vunpack.c.l.b16 %v1313
      %v1368 = vpack.c.b16 %v1353, %v1352
      %v1369 = vpack.c.b16 %v1355, %v1354
      %v1370 = vpack.c.b16 %v1357, %v1356
      %v1371 = vpack.c.b16 %v1359, %v1358
      %v1372 = vpack.c.b16 %v1361, %v1360
      %v1373 = vpack.c.b16 %v1363, %v1362
      %v1374 = vpack.c.b16 %v1365, %v1364
      %v1375 = vpack.c.b16 %v1367, %v1366
      %1384 = vmatprep.subr.bf16.mxu0 0
      %1385 = vmatpush1.bf16.msra.mxu0 %v1368
      %1386 = vmatprep.subr.bf16.mxu0 0
      %1387 = vmatpush1.bf16.msra.mxu0 %v1369
      %1388 = vmatprep.subr.bf16.mxu0 0
      %1389 = vmatpush1.bf16.msra.mxu0 %v1370
      %1390 = vmatprep.subr.bf16.mxu0 0
      %1391 = vmatpush1.bf16.msra.mxu0 %v1371
      %1392 = vmatprep.subr.bf16.mxu0 0
      %1393 = vmatpush1.bf16.msra.mxu0 %v1372
      %1394 = vmatprep.subr.bf16.mxu0 0
      %1395 = vmatpush1.bf16.msra.mxu0 %v1373
      %1396 = vmatprep.subr.bf16.mxu0 0
      %1397 = vmatpush1.bf16.msra.mxu0 %v1374
      %1398 = vmatprep.subr.bf16.mxu0 0
      %1399 = vmatpush1.bf16.msra.mxu0 %v1375
      %1400 = vmatprep.subr.bf16.mxu0 0
      %1401 = vmatpush1.bf16.msra.mxu0 0
      %1402 = vmatprep.subr.bf16.mxu0 0
      %1403 = vmatpush1.bf16.msra.mxu0 0
      %1404 = vmatprep.subr.bf16.mxu0 0
      %1405 = vmatpush1.bf16.msra.mxu0 0
      %1406 = vmatprep.subr.bf16.mxu0 0
      %1407 = vmatpush1.bf16.msra.mxu0 0
      %1408 = vmatprep.subr.bf16.mxu0 0
      %1409 = vmatpush1.bf16.msra.mxu0 0
      %1410 = vmatprep.subr.bf16.mxu0 0
      %1411 = vmatpush1.bf16.msra.mxu0 0
      %1412 = vmatprep.subr.bf16.mxu0 0
      %1413 = vmatpush1.bf16.msra.mxu0 0
      %1414 = vmatprep.subr.bf16.mxu0 0
      %1415 = vmatpush1.bf16.msra.mxu0 0
      %1416 = vmatprep.mubr.bf16.mxu0 0
      %1417 = vmatmul.mubr.bf16.gmra.mrb[0].mxu0 %v1334
      %v1418 = vpop.f32.mrb[0].mxu0
      %v1419 = vadd.f32 0.0, %v1418
      %v1420 = vpop.f32.mrb[0].mxu0
      %v1421 = vpop.f32.mrb[0].mxu0
      %v1422 = vadd.f32 0.0, %v1421
      %v1423 = vpop.f32.mrb[0].mxu0
      %1424 = vdwg.mxu0
      %v1425 = vadd.f32 %v1290, %v1419
      %v1426 = vadd.f32 %v1291, %v1422
      %v1427 = vld [vmem:[%s1157] sm:$0x7]
      %v1428 = vld [vmem:[%s1157 + $0x4] sm:$0x7]
      %v1429 = vld [vmem:[%s1157 + $0x8] sm:$0x7]
      %v1430 = vld [vmem:[%s1157 + $0xc] sm:$0x7]
      %v1436 = vunpack.c.l.s4 1983009808
      %v1437 = vunpack.c.0.s8 %v1436
      %v1438 = vlaneseq
      %v1439 = vshrl.u32 %v1438, 7
      %v1440 = vsub.s32 %v1437, %v1439
      %v1441 = vrot.slane %v1427, %v1440
      %v1442 = vcombine.high %v1441, %v1441
      %v1444 = vunpack.c.l.s4 1983009808
      %v1445 = vunpack.c.0.s8 %v1444
      %v1446 = vlaneseq
      %v1447 = vshrl.u32 %v1446, 7
      %v1448 = vsub.s32 %v1445, %v1447
      %v1449 = vrot.slane %v1428, %v1448
      %v1450 = vcombine.high %v1449, %v1449
      %v1452 = vunpack.c.l.s4 1983009808
      %v1453 = vunpack.c.0.s8 %v1452
      %v1454 = vlaneseq
      %v1455 = vshrl.u32 %v1454, 7
      %v1456 = vsub.s32 %v1453, %v1455
      %v1457 = vrot.slane %v1429, %v1456
      %v1458 = vcombine.high %v1457, %v1457
      %v1460 = vunpack.c.l.s4 1983009808
      %v1461 = vunpack.c.0.s8 %v1460
      %v1462 = vlaneseq
      %v1463 = vshrl.u32 %v1462, 7
      %v1464 = vsub.s32 %v1461, %v1463
      %v1465 = vrot.slane %v1430, %v1464
      %v1466 = vcombine.high %v1465, %v1465
      %v1468 = vshrl.u32 %v1441, 16
      %v1470 = vrot.slane %v1468, 6
      %v1471 = vshll.u32 %v1441, 16
      %v1473 = vrot.slane %v1471, 7
      %v1474 = vor.u32 %v1470, %v1473
      %v1475 = vrot.slane %v1474, 2
      %v1477 = vshll.u32 %v1442, 16
      %v1479 = vrot.slane %v1477, 7
      %v1480 = vsel %vm482, %v1475, %v1479
      %v1482 = vshrl.u32 %v1449, 16
      %v1484 = vrot.slane %v1482, 6
      %v1485 = vshll.u32 %v1449, 16
      %v1487 = vrot.slane %v1485, 7
      %v1488 = vor.u32 %v1484, %v1487
      %v1489 = vrot.slane %v1488, 2
      %v1491 = vshll.u32 %v1450, 16
      %v1493 = vrot.slane %v1491, 7
      %v1494 = vsel %vm482, %v1489, %v1493
      %v1496 = vshrl.u32 %v1457, 16
      %v1498 = vrot.slane %v1496, 6
      %v1499 = vshll.u32 %v1457, 16
      %v1501 = vrot.slane %v1499, 7
      %v1502 = vor.u32 %v1498, %v1501
      %v1503 = vrot.slane %v1502, 2
      %v1505 = vshll.u32 %v1458, 16
      %v1507 = vrot.slane %v1505, 7
      %v1508 = vsel %vm482, %v1503, %v1507
      %v1510 = vshrl.u32 %v1465, 16
      %v1512 = vrot.slane %v1510, 6
      %v1513 = vshll.u32 %v1465, 16
      %v1515 = vrot.slane %v1513, 7
      %v1516 = vor.u32 %v1512, %v1515
      %v1517 = vrot.slane %v1516, 2
      %v1519 = vshll.u32 %v1466, 16
      %v1521 = vrot.slane %v1519, 7
      %v1522 = vsel %vm482, %v1517, %v1521
      %s1523 = scalar_lea.vmem %s1, 512
      %v1524 = vld [vmem:[%s1523] sm:$0xf]
      %v1525 = vld [vmem:[%s1523 + $0x4] sm:$0xf]
      %v1526 = vld [vmem:[%s1523 + $0x8] sm:$0xf]
      %v1527 = vld [vmem:[%s1523 + $0xc] sm:$0xf]
      %v1528 = vld [vmem:[%s1523 + $0x10] sm:$0xf]
      %v1529 = vld [vmem:[%s1523 + $0x14] sm:$0xf]
      %v1530 = vld [vmem:[%s1523 + $0x18] sm:$0xf]
      %v1531 = vld [vmem:[%s1523 + $0x1c] sm:$0xf]
      %v1532 = vld [vmem:[%s1523 + $0x20] sm:$0xf]
      %v1533 = vld [vmem:[%s1523 + $0x24] sm:$0xf]
      %v1534 = vld [vmem:[%s1523 + $0x28] sm:$0xf]
      %v1535 = vld [vmem:[%s1523 + $0x2c] sm:$0xf]
      %v1536 = vld [vmem:[%s1523 + $0x30] sm:$0xf]
      %v1537 = vld [vmem:[%s1523 + $0x34] sm:$0xf]
      %v1538 = vld [vmem:[%s1523 + $0x38] sm:$0xf]
      %v1539 = vld [vmem:[%s1523 + $0x3c] sm:$0xf]
      %v1540 = vcombine.low %v1480, %v1494
      %v1541 = vcombine.low %v1508, %v1522
      %v1543 = vunpack.c.l.s4 1983009808
      %v1544 = vunpack.c.0.s8 %v1543
      %v1545 = vlaneseq
      %v1546 = vshrl.u32 %v1545, 7
      %v1547 = vsub.s32 %v1544, %v1546
      %v1548 = vrot.slane %v1540, %v1547
      %v1550 = vunpack.c.l.s4 1983009808
      %v1551 = vunpack.c.0.s8 %v1550
      %v1552 = vlaneseq
      %v1553 = vshrl.u32 %v1552, 7
      %v1554 = vsub.s32 %v1551, %v1553
      %v1555 = vrot.slane %v1541, %v1554
      %v1556 = vcombine.low %v1548, %v1555
      %v1574 = vunpack.c.l.b16 %v1524
      %v1575 = vunpack.c.l.b16 %v1525
      %v1576 = vunpack.c.l.b16 %v1526
      %v1577 = vunpack.c.l.b16 %v1527
      %v1578 = vunpack.c.l.b16 %v1528
      %v1579 = vunpack.c.l.b16 %v1529
      %v1580 = vunpack.c.l.b16 %v1530
      %v1581 = vunpack.c.l.b16 %v1531
      %v1582 = vunpack.c.l.b16 %v1532
      %v1583 = vunpack.c.l.b16 %v1533
      %v1584 = vunpack.c.l.b16 %v1534
      %v1585 = vunpack.c.l.b16 %v1535
      %v1586 = vunpack.c.l.b16 %v1536
      %v1587 = vunpack.c.l.b16 %v1537
      %v1588 = vunpack.c.l.b16 %v1538
      %v1589 = vunpack.c.l.b16 %v1539
      %v1590 = vpack.c.b16 %v1575, %v1574
      %v1591 = vpack.c.b16 %v1577, %v1576
      %v1592 = vpack.c.b16 %v1579, %v1578
      %v1593 = vpack.c.b16 %v1581, %v1580
      %v1594 = vpack.c.b16 %v1583, %v1582
      %v1595 = vpack.c.b16 %v1585, %v1584
      %v1596 = vpack.c.b16 %v1587, %v1586
      %v1597 = vpack.c.b16 %v1589, %v1588
      %1606 = vmatprep.subr.bf16.mxu0 0
      %1607 = vmatpush1.bf16.msra.mxu0 %v1590
      %1608 = vmatprep.subr.bf16.mxu0 0
      %1609 = vmatpush1.bf16.msra.mxu0 %v1591
      %1610 = vmatprep.subr.bf16.mxu0 0
      %1611 = vmatpush1.bf16.msra.mxu0 %v1592
      %1612 = vmatprep.subr.bf16.mxu0 0
      %1613 = vmatpush1.bf16.msra.mxu0 %v1593
      %1614 = vmatprep.subr.bf16.mxu0 0
      %1615 = vmatpush1.bf16.msra.mxu0 %v1594
      %1616 = vmatprep.subr.bf16.mxu0 0
      %1617 = vmatpush1.bf16.msra.mxu0 %v1595
      %1618 = vmatprep.subr.bf16.mxu0 0
      %1619 = vmatpush1.bf16.msra.mxu0 %v1596
      %1620 = vmatprep.subr.bf16.mxu0 0
      %1621 = vmatpush1.bf16.msra.mxu0 %v1597
      %1622 = vmatprep.subr.bf16.mxu0 0
      %1623 = vmatpush1.bf16.msra.mxu0 0
      %1624 = vmatprep.subr.bf16.mxu0 0
      %1625 = vmatpush1.bf16.msra.mxu0 0
      %1626 = vmatprep.subr.bf16.mxu0 0
      %1627 = vmatpush1.bf16.msra.mxu0 0
      %1628 = vmatprep.subr.bf16.mxu0 0
      %1629 = vmatpush1.bf16.msra.mxu0 0
      %1630 = vmatprep.subr.bf16.mxu0 0
      %1631 = vmatpush1.bf16.msra.mxu0 0
      %1632 = vmatprep.subr.bf16.mxu0 0
      %1633 = vmatpush1.bf16.msra.mxu0 0
      %1634 = vmatprep.subr.bf16.mxu0 0
      %1635 = vmatpush1.bf16.msra.mxu0 0
      %1636 = vmatprep.subr.bf16.mxu0 0
      %1637 = vmatpush1.bf16.msra.mxu0 0
      %1638 = vmatprep.mubr.bf16.mxu0 0
      %1639 = vmatmul.mubr.bf16.gmra.mrb[0].mxu0 %v1556
      %v1640 = vpop.f32.mrb[0].mxu0
      %v1641 = vadd.f32 0.0, %v1640
      %v1642 = vpop.f32.mrb[0].mxu0
      %v1643 = vpop.f32.mrb[0].mxu0
      %v1644 = vadd.f32 0.0, %v1643
      %v1645 = vpop.f32.mrb[0].mxu0
      %1646 = vdwg.mxu0
      %v1647 = vadd.f32 %v1425, %v1641
      %v1648 = vadd.f32 %v1426, %v1644
      %v1649 = vld [vmem:[%s2] sm:$0x1]
      %v1651 = vlaneseq
      %v1652 = vshrl.u32 %v1651, 7
      %v1653 = vsub.s32 0, %v1652
      %v1654 = vrot.slane %v1649, %v1653
      %v1656 = vadd.f32 %v1647, %v1654
      %v1657 = vadd.f32 %v1648, %v1654
      %v1658 = vmax.f32 %v1656, 0.0
      %v1659 = vmax.f32 %v1657, 0.0
      %v1660 = vpack.c.bf16 %v1659, %v1658
      %v1662 = vunpack.c.l.b16 %v1660
      %v1663 = vunpack.c.h.b16 %v1660
      %v1664 = vpack.c.b16 %v1662, %v1662
      %v1665 = vpack.c.b16 %v1663, %v1663
      %1668 = vst [vmem:[%s170] sm:$0xf] %v1664
      %1669 = vst [vmem:[%s170 + $0x4] sm:$0xf] %v1665
      %p1670 = scmp.lt.s32.totalorder %s14, 1
      %s1671 = scalar_select %p1670, %s14, 1
      %s1672 = smul.addr %s1671, 2
      %s1673 = smul.addr %s1672, 4
      %s1674 = scalar_lea.vmem %s3, %s1673
      // Predicated region
      $region33: #{_forward_impl.3} parent=31 // pred_check
        %p1675 = pneg %p100
      $region34: #{_forward_impl.3} parent=31 // pred_check_branch
        %1677 = sbr.rel (%p1675) target = $region36
      $region35: #{_forward_impl.3} parent=31 // pred_region
        _
      $region36: #{_forward_impl.3} parent=31 // pred_fallthru
        _
    $region32: #{_forward_impl.3} parent=5 // pred_fallthru
      _
    %p1678 = scmp.le.s32.totalorder 2, %s9
    // Predicated region
    $region37: #{_forward_impl.3} parent=5 // pred_check
      %p1679 = pneg %p1678
    $region38: #{_forward_impl.3} parent=5 // pred_check_branch
      %1681 = sbr.rel (%p1679) target = $region40
    $region39: #{_forward_impl.3} parent=5 // pred_region
      %s1682 = ssub.s32 %s9, 2
      // Predicated region
      $region41: #{_forward_impl.3} parent=39 // pred_check
        %p1683 = pneg %p106
      $region42: #{_forward_impl.3} parent=39 // pred_check_branch
        %1685 = sbr.rel (%p1683) target = $region44
      $region43: #{_forward_impl.3} parent=39 // pred_region
        %p1686 = scmp.lt.s32.totalorder %s15, 1
        %s1687 = scalar_select %p1686, %s15, 1
        %s1688 = smul.addr %s1687, 2
        %s1689 = smul.addr %s1688, 4
        %s1690 = scalar_lea.vmem %s3, %s1689
      $region44: #{_forward_impl.3} parent=39 // pred_fallthru
        _
    $region40: #{_forward_impl.3} parent=5 // pred_fallthru
      _
  $region6: #{_forward_impl.3} parent=0 // loop_footer
    %s13 = sadd.s32 1, %s9
  $region7: #{_forward_impl.3} parent=0 // loop_footer_branch
    %8 = sbr.rel target = $region3
  $region8: #{_forward_impl.3} parent=0 // loop_exit
    _

</llo_original>
